<compile_context>
chip_gen: v7x
topology: tpu7x:2x2x1
jax: 0.10.0
libtpu: 0.0.40
codegen_flags: <defaults>
</compile_context>

<pallas_src>
import functools

import jax
import jax.numpy as jnp
from jax.experimental import pallas as pl
from jax.experimental.pallas import tpu as pltpu


def _round_up(a, b):
    return (a + b - 1) // b * b


def _make_cgae_kernel(kh, th):
    """Kernel closure over the static height-kernel size and row tile."""

    def kernel(x_ref, m_ref, wx_ref, wm21_ref, b2_ref, wy_ref, out_ref):
        # x_ref:    (halo_rows, W)  zero-padded x rows covering this tile + halo
        # m_ref:    (th, C2)        mapping-layer-2 activations (token layout)
        # wx_ref:   (kh, W, F)      conv_x weight, one (W, F) slice per height tap
        # wm21_ref: (C2, F)         folded Wm2 @ Wm1
        # b2_ref:   (1, F)          folded bm1 @ Wm1 (f32)
        # wy_ref:   (F, W)          conv_y weight (used as transpose conv)
        # out_ref:  (th, W)         reconstruction rows
        #
        # Height conv as kh shifted matmuls against per-tap weights (f32 acc).
        fx = jnp.dot(x_ref[pl.ds(0, th), :], wx_ref[0],
                     preferred_element_type=jnp.float32)             # (th, F)
        for t in range(1, kh):                                       # kh static -> unrolled
            fx = fx + jnp.dot(x_ref[pl.ds(t, th), :], wx_ref[t],
                              preferred_element_type=jnp.float32)

        # Folded 1x1 deconvs: d2 = m @ (Wm2 @ Wm1) + bm1 @ Wm1   (f32 acc).
        d2 = jnp.dot(m_ref[...], wm21_ref[...],
                     preferred_element_type=jnp.float32) + b2_ref[...]  # (th, F)

        # Gate in f32 (v5e VPU has no bf16), cast only for the final MXU matmul.
        gated = (d2 * fx).astype(wy_ref.dtype)                       # (th, F)
        out_ref[...] = jnp.dot(gated, wy_ref[...],
                               preferred_element_type=jnp.float32
                               ).astype(out_ref.dtype)               # (th, W)

    return kernel


@functools.partial(jax.jit, static_argnames=("th", "compute_dtype"))
def cgae_forward(m_nchw, x_nchw, params, *, th=1024, compute_dtype=jnp.bfloat16):
    """Pallas implementation of C_GAE.forward(m, x) == recon_y_(m, x).

    m_nchw: (N, C2, H, 1)   (output of the second mapping layer)
    x_nchw: (N, 1,  H, W)
    returns (N, 1, H, W)    reconstruction of y (f32)
    """
    wx, wm2, bm1, wm1, wy = (params["wx"], params["wm2"], params["bm1"],
                             params["wm1"], params["wy"])
    n, _, h, w = x_nchw.shape
    c2 = m_nchw.shape[1]
    f = wx.shape[0]
    kh = wx.shape[2]
    pad = kh // 2

    # --- tile-size selection ------------------------------------------------
    # th = height rows per grid step; keep it sublane aligned (16 covers the
    # bf16 packed layout) and no larger than the rounded-up per-sample height.
    align = 16
    th = max(align, (min(th, _round_up(h, align)) // align) * align)
    # Prefer >= 2 total grid blocks so both v7x TensorCores get work.
    while n * pl.cdiv(h, th) < 2 and th > align:
        th = max(align, _round_up(th // 2, align))
    n_hb = pl.cdiv(h, th)
    h_pad = n_hb * th

    # --- fold the two 1x1 transpose convs (wrapper-side, tiny) ---------------
    wm2_flat = wm2[:, :, 0, 0].astype(jnp.float32)                 # (C2, C1)
    wm1_flat = wm1[:, :, 0, 0].astype(jnp.float32)                 # (C1, F)
    wm21 = (wm2_flat @ wm1_flat).astype(compute_dtype)             # (C2, F)
    b2 = bm1.astype(jnp.float32)[None, :] @ wm1_flat               # (1, F) keep f32
    wx_taps = jnp.transpose(wx[:, 0], (1, 2, 0)).astype(compute_dtype)  # (kh, W, F)
    wy_flat = wy[:, 0, 0, :].astype(compute_dtype)                 # (F, W)

    # --- glue: NCHW -> per-block token layout (no im2col) --------------------
    halo = th + kh - 1
    halo_rows = _round_up(halo, align)
    bottom = (h_pad - h) + pad + (halo_rows - halo)
    x_rows = x_nchw[:, 0].astype(compute_dtype)                    # (N, H, W)
    x_padded = jnp.pad(x_rows, ((0, 0), (pad, bottom), (0, 0)))
    # Overlapping halo slabs: block j of sample i covers padded x rows
    # [j*th, j*th + halo_rows).  Read amplification is halo_rows/th (~1.0x)
    # instead of kh x for im2col.
    # TODO(synk): a fully fused variant would DMA the halos in-kernel from a
    # memory_space=pl.ANY ref instead of materializing this slab in XLA glue.
    x_halo = jnp.stack(
        [x_padded[:, j * th: j * th + halo_rows, :] for j in range(n_hb)],
        axis=1)                                                    # (N, n_hb, halo_rows, W)

    m_tok = jnp.transpose(m_nchw[:, :, :, 0], (0, 2, 1)).astype(compute_dtype)
    m_tok = jnp.pad(m_tok, ((0, 0), (0, h_pad - h), (0, 0)))       # (N, h_pad, C2)

    kernel = _make_cgae_kernel(kh, th)
    out = pl.pallas_call(
        kernel,
        out_shape=jax.ShapeDtypeStruct((n, h_pad, w), jnp.float32),
        grid_spec=pltpu.PrefetchScalarGridSpec(
            num_scalar_prefetch=0,
            grid=(n, n_hb),
            in_specs=[
                pl.BlockSpec((pl.Squeezed(), pl.Squeezed(), halo_rows, w),
                             lambda i, j: (i, j, 0, 0)),            # x halo slab
                pl.BlockSpec((pl.Squeezed(), th, c2),
                             lambda i, j: (i, j, 0)),               # m tokens
                pl.BlockSpec((kh, w, f), lambda i, j: (0, 0, 0)),   # wx taps
                pl.BlockSpec((c2, f), lambda i, j: (0, 0)),         # Wm2 @ Wm1
                pl.BlockSpec((1, f), lambda i, j: (0, 0)),          # bm1 @ Wm1
                pl.BlockSpec((f, w), lambda i, j: (0, 0)),          # Wy
            ],
            out_specs=pl.BlockSpec((pl.Squeezed(), th, w),
                                   lambda i, j: (i, j, 0)),
        ),
        compiler_params=pltpu.CompilerParams(
            dimension_semantics=("parallel", "parallel"),
            vmem_limit_bytes=64 * 1024 * 1024),
    )(x_halo, m_tok, wx_taps, wm21, b2, wy_flat)

    out = out[:, :h, :]                                            # drop height padding
    return out[:, None, :, :]                                      # (N, 1, H, W)


def init_params(key, kernel_size, factors, mapping, dtype=jnp.float32):
    """Deterministic parameter init matching the torch module's shapes."""
    kh, w = kernel_size
    c1, c2 = mapping
    k = jax.random.split(key, 6)
    s = 0.05
    return {
        # conv_x.weight : (factors, 1, kh, W)
        "wx": s * jax.random.normal(k[0], (factors, 1, kh, w), dtype),
        # conv_m2.weight: (mapping[1], mapping[0], 1, 1)
        "wm2": s * jax.random.normal(k[1], (c2, c1, 1, 1), dtype),
        # conv_m1.bias  : (mapping[0],)
        "bm1": s * jax.random.normal(k[2], (c1,), dtype),
        # conv_m1.weight: (mapping[0], factors, 1, 1)
        "wm1": s * jax.random.normal(k[3], (c1, factors, 1, 1), dtype),
        # conv_y.weight : (factors, 1, 1, W)
        "wy": s * jax.random.normal(k[4], (factors, 1, 1, w), dtype),
        # bias_x exists in the torch module but is unused in forward
        "bias_x": jnp.zeros((w,), dtype),
    }


def cgae_forward_ref(m_nchw, x_nchw, params):
    """Pure-JAX reference (lax.conv + einsums), independent of the kernel math."""
    wx, wm2, bm1, wm1, wy = (params["wx"], params["wm2"], params["bm1"],
                             params["wm1"], params["wy"])
    kh = wx.shape[2]
    hp = jax.lax.Precision.HIGHEST
    fx = jax.lax.conv_general_dilated(
        x_nchw, wx, window_strides=(1, 1),
        padding=((kh // 2, kh // 2), (0, 0)),
        dimension_numbers=("NCHW", "OIHW", "NCHW"),
        precision=hp)                                              # (N, F, H, 1)
    d1 = jnp.einsum("nchw,cd->ndhw", m_nchw, wm2[:, :, 0, 0],
                    precision=hp) + bm1[None, :, None, None]       # (N, C1, H, 1)
    d2 = jnp.einsum("ndhw,df->nfhw", d1, wm1[:, :, 0, 0],
                    precision=hp)                                  # (N, F, H, 1)
    gated = d2 * fx
    out = jnp.einsum("nfh,fw->nhw", gated[..., 0], wy[:, 0, 0, :],
                     precision=hp)                                 # (N, H, W)
    return out[:, None, :, :]


if __name__ == "__main__":
    # Small instantiation of C_GAE(kernel_size=(3, 32), factors=64, mapping=(32, 16)).
    kernel_size = (3, 32)
    factors = 64
    mapping = (32, 16)
    N, H, W = 2, 512, kernel_size[1]

    key = jax.random.PRNGKey(0)
    kp, km, kx = jax.random.split(key, 3)
    params = init_params(kp, kernel_size, factors, mapping)

    # forward(m, x): m is the (second) mapping activation, x the input slab.
    m = jax.random.normal(km, (N, mapping[1], H, 1), jnp.float32)
    x = jax.random.normal(kx, (N, 1, H, W), jnp.float32)

    ref = cgae_forward_ref(m, x, params)

    # f32 compute path: tight-ish check against the independent reference.
    out_f32 = jax.block_until_ready(
        cgae_forward(m, x, params, compute_dtype=jnp.float32))
    assert out_f32.shape == (N, 1, H, W), out_f32.shape
    assert jnp.allclose(out_f32, ref, atol=2e-3, rtol=2e-2), "f32 kernel mismatch"

    # Default path (bf16 MXU inputs, f32 accumulation): looser tolerance.
    out = jax.block_until_ready(cgae_forward(m, x, params))
    assert out.shape == (N, 1, H, W), out.shape
    assert jnp.allclose(out, ref, atol=5e-3, rtol=5e-2), "bf16 kernel mismatch"

    print("KERNEL_OK")
</pallas_src>

<mosaic_0001>
module attributes {stable_mosaic.version = 11 : i64} {
  func.func @kernel(%arg0: i32, %arg1: i32, %arg2: memref<1x1x528x32xf32, #tpu.memory_space<vmem>>, %arg3: memref<1x512x16xf32, #tpu.memory_space<vmem>>, %arg4: memref<3x32x64xf32, #tpu.memory_space<vmem>>, %arg5: memref<16x64xf32, #tpu.memory_space<vmem>>, %arg6: memref<1x64xf32, #tpu.memory_space<vmem>>, %arg7: memref<64x32xf32, #tpu.memory_space<vmem>>, %arg8: memref<1x512x32xf32, #tpu.memory_space<vmem>>) attributes {dimension_semantics = [#tpu.dimension_semantics<parallel>, #tpu.dimension_semantics<parallel>], iteration_bounds = array<i64: 2, 1>, scalar_prefetch = 0 : i64, scratch_operands = 0 : i64, tpu.core_type = #tpu.core_type<tc>, window_params = [{transform_indices = @transform_0, window_bounds = array<i64: 1, 1, 528, 32>}, {transform_indices = @transform_1, window_bounds = array<i64: 1, 512, 16>}, {pipeline_mode = #tpu.pipeline_mode<synchronous>, transform_indices = @transform_2, window_bounds = array<i64: 3, 32, 64>}, {pipeline_mode = #tpu.pipeline_mode<synchronous>, transform_indices = @transform_3, window_bounds = array<i64: 16, 64>}, {pipeline_mode = #tpu.pipeline_mode<synchronous>, transform_indices = @transform_4, window_bounds = array<i64: 1, 64>}, {pipeline_mode = #tpu.pipeline_mode<synchronous>, transform_indices = @transform_5, window_bounds = array<i64: 64, 32>}, {transform_indices = @transform_6, window_bounds = array<i64: 1, 512, 32>}]} {
    %c0 = arith.constant 0 : index
    %c0_0 = arith.constant 0 : index
    %c0_1 = arith.constant 0 : index
    %c0_2 = arith.constant 0 : index
    %0 = vector.load %arg2[%c0, %c0_0, %c0_1, %c0_2] : memref<1x1x528x32xf32, #tpu.memory_space<vmem>>, vector<1x1x512x32xf32>
    %1 = vector.shape_cast %0 : vector<1x1x512x32xf32> to vector<512x32xf32>
    %c0_3 = arith.constant 0 : index
    %c0_4 = arith.constant 0 : index
    %c0_5 = arith.constant 0 : index
    %2 = vector.load %arg4[%c0_3, %c0_4, %c0_5] : memref<3x32x64xf32, #tpu.memory_space<vmem>>, vector<1x32x64xf32>
    %3 = vector.shape_cast %2 : vector<1x32x64xf32> to vector<32x64xf32>
    %cst = arith.constant dense<0.000000e+00> : vector<512x64xf32>
    %4 = tpu.matmul %1, %3, %cst {dimension_numbers = #tpu.dot_dimension_numbers<[1], [0], [0], [1], [0, 0, 1, 1], [], []>} : vector<512x32xf32>, vector<32x64xf32>, vector<512x64xf32> -> vector<512x64xf32>
    %c0_6 = arith.constant 0 : index
    %c0_7 = arith.constant 0 : index
    %c1 = arith.constant 1 : index
    %c0_8 = arith.constant 0 : index
    %5 = vector.load %arg2[%c0_6, %c0_7, %c1, %c0_8] : memref<1x1x528x32xf32, #tpu.memory_space<vmem>>, vector<1x1x512x32xf32>
    %6 = vector.shape_cast %5 : vector<1x1x512x32xf32> to vector<512x32xf32>
    %c1_9 = arith.constant 1 : index
    %c0_10 = arith.constant 0 : index
    %c0_11 = arith.constant 0 : index
    %7 = vector.load %arg4[%c1_9, %c0_10, %c0_11] : memref<3x32x64xf32, #tpu.memory_space<vmem>>, vector<1x32x64xf32>
    %8 = vector.shape_cast %7 : vector<1x32x64xf32> to vector<32x64xf32>
    %cst_12 = arith.constant dense<0.000000e+00> : vector<512x64xf32>
    %9 = tpu.matmul %6, %8, %cst_12 {dimension_numbers = #tpu.dot_dimension_numbers<[1], [0], [0], [1], [0, 0, 1, 1], [], []>} : vector<512x32xf32>, vector<32x64xf32>, vector<512x64xf32> -> vector<512x64xf32>
    %10 = arith.addf %4, %9 : vector<512x64xf32>
    %c0_13 = arith.constant 0 : index
    %c0_14 = arith.constant 0 : index
    %c2 = arith.constant 2 : index
    %c0_15 = arith.constant 0 : index
    %11 = vector.load %arg2[%c0_13, %c0_14, %c2, %c0_15] : memref<1x1x528x32xf32, #tpu.memory_space<vmem>>, vector<1x1x512x32xf32>
    %12 = vector.shape_cast %11 : vector<1x1x512x32xf32> to vector<512x32xf32>
    %c2_16 = arith.constant 2 : index
    %c0_17 = arith.constant 0 : index
    %c0_18 = arith.constant 0 : index
    %13 = vector.load %arg4[%c2_16, %c0_17, %c0_18] : memref<3x32x64xf32, #tpu.memory_space<vmem>>, vector<1x32x64xf32>
    %14 = vector.shape_cast %13 : vector<1x32x64xf32> to vector<32x64xf32>
    %cst_19 = arith.constant dense<0.000000e+00> : vector<512x64xf32>
    %15 = tpu.matmul %12, %14, %cst_19 {dimension_numbers = #tpu.dot_dimension_numbers<[1], [0], [0], [1], [0, 0, 1, 1], [], []>} : vector<512x32xf32>, vector<32x64xf32>, vector<512x64xf32> -> vector<512x64xf32>
    %16 = arith.addf %10, %15 : vector<512x64xf32>
    %c0_20 = arith.constant 0 : index
    %c0_21 = arith.constant 0 : index
    %c0_22 = arith.constant 0 : index
    %17 = vector.load %arg3[%c0_20, %c0_21, %c0_22] : memref<1x512x16xf32, #tpu.memory_space<vmem>>, vector<1x512x16xf32>
    %18 = vector.shape_cast %17 : vector<1x512x16xf32> to vector<512x16xf32>
    %c0_23 = arith.constant 0 : index
    %c0_24 = arith.constant 0 : index
    %19 = vector.load %arg5[%c0_23, %c0_24] : memref<16x64xf32, #tpu.memory_space<vmem>>, vector<16x64xf32>
    %cst_25 = arith.constant dense<0.000000e+00> : vector<512x64xf32>
    %20 = tpu.matmul %18, %19, %cst_25 {dimension_numbers = #tpu.dot_dimension_numbers<[1], [0], [0], [1], [0, 0, 1, 1], [], []>} : vector<512x16xf32>, vector<16x64xf32>, vector<512x64xf32> -> vector<512x64xf32>
    %c0_26 = arith.constant 0 : index
    %c0_27 = arith.constant 0 : index
    %21 = vector.load %arg6[%c0_26, %c0_27] : memref<1x64xf32, #tpu.memory_space<vmem>>, vector<1x64xf32>
    %22 = vector.broadcast %21 : vector<1x64xf32> to vector<512x64xf32>
    %23 = arith.addf %20, %22 : vector<512x64xf32>
    %24 = arith.mulf %23, %16 : vector<512x64xf32>
    %c0_28 = arith.constant 0 : index
    %c0_29 = arith.constant 0 : index
    %25 = vector.load %arg7[%c0_28, %c0_29] : memref<64x32xf32, #tpu.memory_space<vmem>>, vector<64x32xf32>
    %cst_30 = arith.constant dense<0.000000e+00> : vector<512x32xf32>
    %26 = tpu.matmul %24, %25, %cst_30 {dimension_numbers = #tpu.dot_dimension_numbers<[1], [0], [0], [1], [0, 0, 1, 1], [], []>} : vector<512x64xf32>, vector<64x32xf32>, vector<512x32xf32> -> vector<512x32xf32>
    %c0_31 = arith.constant 0 : index
    %c0_32 = arith.constant 0 : index
    %c0_33 = arith.constant 0 : index
    %27 = vector.load %arg8[%c0_31, %c0_32, %c0_33] : memref<1x512x32xf32, #tpu.memory_space<vmem>>, vector<1x512x32xf32>
    %28 = vector.shape_cast %27 : vector<1x512x32xf32> to vector<512x32xf32>
    %29 = vector.shape_cast %26 : vector<512x32xf32> to vector<1x512x32xf32>
    tpu.vector_store %arg8[%c0_31, %c0_32, %c0_33], %29 {strides = array<i32>} : memref<1x512x32xf32, #tpu.memory_space<vmem>>, vector<1x512x32xf32>,
    return
  }
  func.func @transform_0(%arg0: i32, %arg1: i32) -> (i32, i32, i32, i32) {
    %c0_i32 = arith.constant 0 : i32
    %c0_i32_0 = arith.constant 0 : i32
    %c0_i32_1 = arith.constant 0 : i32
    return %arg0, %arg1, %c0_i32, %c0_i32_0 : i32, i32, i32, i32
  }
  func.func @transform_1(%arg0: i32, %arg1: i32) -> (i32, i32, i32) {
    %c0_i32 = arith.constant 0 : i32
    %c0_i32_0 = arith.constant 0 : i32
    return %arg0, %arg1, %c0_i32 : i32, i32, i32
  }
  func.func @transform_2(%arg0: i32, %arg1: i32) -> (i32, i32, i32) {
    %c0_i32 = arith.constant 0 : i32
    %c0_i32_0 = arith.constant 0 : i32
    %c0_i32_1 = arith.constant 0 : i32
    %c0_i32_2 = arith.constant 0 : i32
    return %c0_i32, %c0_i32_0, %c0_i32_1 : i32, i32, i32
  }
  func.func @transform_3(%arg0: i32, %arg1: i32) -> (i32, i32) {
    %c0_i32 = arith.constant 0 : i32
    %c0_i32_0 = arith.constant 0 : i32
    %c0_i32_1 = arith.constant 0 : i32
    return %c0_i32, %c0_i32_0 : i32, i32
  }
  func.func @transform_4(%arg0: i32, %arg1: i32) -> (i32, i32) {
    %c0_i32 = arith.constant 0 : i32
    %c0_i32_0 = arith.constant 0 : i32
    %c0_i32_1 = arith.constant 0 : i32
    return %c0_i32, %c0_i32_0 : i32, i32
  }
  func.func @transform_5(%arg0: i32, %arg1: i32) -> (i32, i32) {
    %c0_i32 = arith.constant 0 : i32
    %c0_i32_0 = arith.constant 0 : i32
    %c0_i32_1 = arith.constant 0 : i32
    return %c0_i32, %c0_i32_0 : i32, i32
  }
  func.func @transform_6(%arg0: i32, %arg1: i32) -> (i32, i32, i32) {
    %c0_i32 = arith.constant 0 : i32
    %c0_i32_0 = arith.constant 0 : i32
    return %arg0, %arg1, %c0_i32 : i32, i32, i32
  }
}

</mosaic_0001>

<llo_original>
// kernel: cgae_forward.1
$region0: #{cgae_forward.1}
  #allocation0 [shape = 'u32[]', space=smem, size = 0x4, offset = 0x4, fixed_abs, tag = 'smem constant byte address 0x4 - core index']
  #allocation1 [shape = 'u32[144,128]{1,0:T(1,128)}', space=vmem, size = 0x12000, scoped, tag = 'internal scratch']
  %s0 = inlined_call_operand.hbm [shape: f32[2,1,528,32], index: 0, kind: input, shape index: {}]
  %s1 = inlined_call_operand.hbm [shape: f32[2,512,16], index: 1, kind: input, shape index: {}]
  %s2 = inlined_call_operand.hbm [shape: f32[3,32,64], index: 2, kind: input, shape index: {}]
  %s3 = inlined_call_operand.hbm [shape: f32[16,64], index: 3, kind: input, shape index: {}]
  %s4 = inlined_call_operand.hbm [shape: f32[1,64], index: 4, kind: input, shape index: {}]
  %s5 = inlined_call_operand.hbm [shape: f32[64,32], index: 5, kind: input, shape index: {}]
  %s6 = inlined_call_operand.hbm [shape: f32[2,512,32], index: 6, kind: output, shape index: {}]
  %s7 = sld [smem:[#allocation0]]
  $region81: #{cgae_forward.1} parent=0
    _
  %s9 = ssub.s32 1, %s7
  %s10 = scalar_select 0, %s9, %s7
  $region1: #{cgae_forward.1} parent=0
    #allocation2 [shape = 'u8[540672]{0}', space=vmem, size = 0x84000, scoped, tag = 'input window, operand 0']
    #allocation3 [shape = 's32[2]{0}', space=sflag, size = 0x8, scoped, tag = 'scoped memory for cgae_forward.1']
    #allocation4 [shape = 's32[2]{0}', space=sflag, size = 0x8, scoped, tag = 'scoped memory for cgae_forward.1']
    #allocation5 [shape = 'u8[524288]{0}', space=vmem, size = 0x80000, scoped, tag = 'input window, operand 1']
    #allocation6 [shape = 's32[2]{0}', space=sflag, size = 0x8, scoped, tag = 'scoped memory for cgae_forward.1']
    #allocation7 [shape = 'u8[49152]{0}', space=vmem, size = 0xc000, scoped, tag = 'input window, operand 2, single buffered']
    #allocation8 [shape = 'u8[8192]{0}', space=vmem, size = 0x2000, scoped, tag = 'input window, operand 3, single buffered']
    #allocation9 [shape = 's32[1]{0}', space=sflag, size = 0x4, scoped, tag = 'scoped memory for cgae_forward.1']
    #allocation10 [shape = 'u8[512]{0}', space=vmem, size = 0x400, scoped, tag = 'input window, operand 4, single buffered']
    #allocation11 [shape = 'u8[32768]{0}', space=vmem, size = 0x8000, scoped, tag = 'input window, operand 5, single buffered']
    #allocation12 [shape = 's32[1]{0}', space=sflag, size = 0x4, scoped, tag = 'scoped memory for cgae_forward.1']
    #allocation13 [shape = 'u8[524288]{0}', space=vmem, size = 0x80000, scoped, tag = 'output window, operand 0']
    %11 = vsyncpa [#allocation3], 0
    %s12 = scalar_lea.sflag [#allocation3], 1
    %13 = vsyncpa %s12, 0
    %14 = vsyncpa [#allocation6], 0
    %s15 = scalar_lea.sflag [#allocation6], 1
    %16 = vsyncpa %s15, 0
    %17 = vsyncpa [#allocation9], 0
    %18 = vsyncpa [#allocation12], 0
    %19 = vsyncpa [#allocation4], 0
    %s20 = scalar_lea.sflag [#allocation4], 1
    %21 = vsyncpa %s20, 0
    loop: start=0, step=1, limit=4
    $region2: #{cgae_forward.1} parent=1 // loop_pre_header
      _
    $region3: #{cgae_forward.1} parent=1 // loop_header
      %s23 = sphi 0, %s27
      %p24 = scmp.ge.s32.totalorder %s23, 4
      %s30 = sphi 0, %s42
      %s31 = sphi 0, %s38
      %s32 = sphi 0, %s30
      %s33 = sphi 0, %s31
      %s34 = sphi 0, %s32
      %s35 = sphi 0, %s33
      %s47 = sphi 0, %s49
      %s50 = sphi 0, %s47
      %s51 = sphi 0, %s50
      %s67 = sphi 0, %s51
      %s75 = sphi 0, %s77
      %s78 = sphi 0, %s75
      %s79 = sphi 0, %s78
      %s95 = sphi 0, %s79
      %s99 = sphi 0, %s99
      %s101 = sphi 0, %s99
      %s102 = sphi 0, %s101
      %s116 = sphi 0, %s102
      %s120 = sphi 0, %s120
      %s122 = sphi 0, %s120
      %s123 = sphi 0, %s122
      %s137 = sphi 0, %s123
      %s141 = sphi 0, %s141
      %s143 = sphi 0, %s141
      %s144 = sphi 0, %s143
      %s158 = sphi 0, %s144
      %s162 = sphi 0, %s162
      %s164 = sphi 0, %s162
      %s165 = sphi 0, %s164
      %s179 = sphi 0, %s165
      %s187 = sphi 0, %s189
      %s190 = sphi 0, %s187
      %s191 = sphi 0, %s190
      %s207 = sphi 0, %s191
    $region4: #{cgae_forward.1} parent=1 // loop_header_branch
      %26 = sbr.rel (%p24) target = $region8
    $region5: #{cgae_forward.1} parent=1 // loop_body
      %s28 = ssub.s32 %s23, 1
      %s29 = ssub.s32 %s23, 2
      %s36 = sadd.s32 1, %s31
      %p37 = scmp.ge.s32.totalorder %s36, 1
      %s38 = scalar_select %p37, 0, %s36
      %s39 = sadd.s32 1, %s30
      %s40 = scalar_select %p37, %s39, %s30
      %p41 = scmp.ge.s32.totalorder %s40, 2
      %s42 = scalar_select %p41, 0, %s40
      %s43 = ssub.s32 %s30, %s42
      %s44 = ssub.s32 %s31, %s38
      %s45 = sor.u32 %s43, %s44
      %p46 = scmp.eq.s32.totalorder %s45, 0
      %s48 = sadd.s32 %s47, 1
      %s49 = scalar_select %p46, %s47, %s48
      %p52 = pneg %p46
      %p53 = scmp.eq.s32.totalorder %s23, 1
      %p54 = por %p52, %p53
      %p55 = scmp.ne.s32.totalorder %s47, %s50
      %p56 = scmp.eq.s32.totalorder %s23, 0
      %p57 = por %p55, %p56
      %p58 = scmp.ne.s32.totalorder %s47, %s50
      %p59 = scmp.eq.s32.totalorder %s28, 1
      %p60 = por %p58, %p59
      %p61 = scmp.ne.s32.totalorder %s50, %s51
      %p62 = scmp.eq.s32.totalorder %s28, 0
      %p63 = por %p61, %p62
      %p64 = scmp.ne.s32.totalorder %s50, %s51
      %p65 = scmp.eq.s32.totalorder %s29, 1
      %p66 = por %p64, %p65
      %p68 = scmp.ne.s32.totalorder %s51, %s67
      %p69 = scmp.eq.s32.totalorder %s29, 0
      %p70 = por %p68, %p69
      %s71 = ssub.s32 %s30, %s42
      %s72 = ssub.s32 %s31, %s38
      %s73 = sor.u32 %s71, %s72
      %p74 = scmp.eq.s32.totalorder %s73, 0
      %s76 = sadd.s32 %s75, 1
      %s77 = scalar_select %p74, %s75, %s76
      %p80 = pneg %p74
      %p81 = scmp.eq.s32.totalorder %s23, 1
      %p82 = por %p80, %p81
      %p83 = scmp.ne.s32.totalorder %s75, %s78
      %p84 = scmp.eq.s32.totalorder %s23, 0
      %p85 = por %p83, %p84
      %p86 = scmp.ne.s32.totalorder %s75, %s78
      %p87 = scmp.eq.s32.totalorder %s28, 1
      %p88 = por %p86, %p87
      %p89 = scmp.ne.s32.totalorder %s78, %s79
      %p90 = scmp.eq.s32.totalorder %s28, 0
      %p91 = por %p89, %p90
      %p92 = scmp.ne.s32.totalorder %s78, %s79
      %p93 = scmp.eq.s32.totalorder %s29, 1
      %p94 = por %p92, %p93
      %p96 = scmp.ne.s32.totalorder %s79, %s95
      %p97 = scmp.eq.s32.totalorder %s29, 0
      %p98 = por %p96, %p97
      %s100 = sadd.s32 %s99, 1
      %p103 = scmp.eq.s32.totalorder %s23, 1
      %p104 = scmp.ne.s32.totalorder %s99, %s101
      %p105 = scmp.eq.s32.totalorder %s23, 0
      %p106 = por %p104, %p105
      %p107 = scmp.ne.s32.totalorder %s99, %s101
      %p108 = scmp.eq.s32.totalorder %s28, 1
      %p109 = por %p107, %p108
      %p110 = scmp.ne.s32.totalorder %s101, %s102
      %p111 = scmp.eq.s32.totalorder %s28, 0
      %p112 = por %p110, %p111
      %p113 = scmp.ne.s32.totalorder %s101, %s102
      %p114 = scmp.eq.s32.totalorder %s29, 1
      %p115 = por %p113, %p114
      %p117 = scmp.ne.s32.totalorder %s102, %s116
      %p118 = scmp.eq.s32.totalorder %s29, 0
      %p119 = por %p117, %p118
      %s121 = sadd.s32 %s120, 1
      %p124 = scmp.eq.s32.totalorder %s23, 1
      %p125 = scmp.ne.s32.totalorder %s120, %s122
      %p126 = scmp.eq.s32.totalorder %s23, 0
      %p127 = por %p125, %p126
      %p128 = scmp.ne.s32.totalorder %s120, %s122
      %p129 = scmp.eq.s32.totalorder %s28, 1
      %p130 = por %p128, %p129
      %p131 = scmp.ne.s32.totalorder %s122, %s123
      %p132 = scmp.eq.s32.totalorder %s28, 0
      %p133 = por %p131, %p132
      %p134 = scmp.ne.s32.totalorder %s122, %s123
      %p135 = scmp.eq.s32.totalorder %s29, 1
      %p136 = por %p134, %p135
      %p138 = scmp.ne.s32.totalorder %s123, %s137
      %p139 = scmp.eq.s32.totalorder %s29, 0
      %p140 = por %p138, %p139
      %s142 = sadd.s32 %s141, 1
      %p145 = scmp.eq.s32.totalorder %s23, 1
      %p146 = scmp.ne.s32.totalorder %s141, %s143
      %p147 = scmp.eq.s32.totalorder %s23, 0
      %p148 = por %p146, %p147
      %p149 = scmp.ne.s32.totalorder %s141, %s143
      %p150 = scmp.eq.s32.totalorder %s28, 1
      %p151 = por %p149, %p150
      %p152 = scmp.ne.s32.totalorder %s143, %s144
      %p153 = scmp.eq.s32.totalorder %s28, 0
      %p154 = por %p152, %p153
      %p155 = scmp.ne.s32.totalorder %s143, %s144
      %p156 = scmp.eq.s32.totalorder %s29, 1
      %p157 = por %p155, %p156
      %p159 = scmp.ne.s32.totalorder %s144, %s158
      %p160 = scmp.eq.s32.totalorder %s29, 0
      %p161 = por %p159, %p160
      %s163 = sadd.s32 %s162, 1
      %p166 = scmp.eq.s32.totalorder %s23, 1
      %p167 = scmp.ne.s32.totalorder %s162, %s164
      %p168 = scmp.eq.s32.totalorder %s23, 0
      %p169 = por %p167, %p168
      %p170 = scmp.ne.s32.totalorder %s162, %s164
      %p171 = scmp.eq.s32.totalorder %s28, 1
      %p172 = por %p170, %p171
      %p173 = scmp.ne.s32.totalorder %s164, %s165
      %p174 = scmp.eq.s32.totalorder %s28, 0
      %p175 = por %p173, %p174
      %p176 = scmp.ne.s32.totalorder %s164, %s165
      %p177 = scmp.eq.s32.totalorder %s29, 1
      %p178 = por %p176, %p177
      %p180 = scmp.ne.s32.totalorder %s165, %s179
      %p181 = scmp.eq.s32.totalorder %s29, 0
      %p182 = por %p180, %p181
      %s183 = ssub.s32 %s30, %s42
      %s184 = ssub.s32 %s31, %s38
      %s185 = sor.u32 %s183, %s184
      %p186 = scmp.eq.s32.totalorder %s185, 0
      %s188 = sadd.s32 %s187, 1
      %s189 = scalar_select %p186, %s187, %s188
      %p192 = pneg %p186
      %p193 = scmp.eq.s32.totalorder %s23, 1
      %p194 = por %p192, %p193
      %p195 = scmp.ne.s32.totalorder %s187, %s190
      %p196 = scmp.eq.s32.totalorder %s23, 0
      %p197 = por %p195, %p196
      %p198 = scmp.ne.s32.totalorder %s187, %s190
      %p199 = scmp.eq.s32.totalorder %s28, 1
      %p200 = por %p198, %p199
      %p201 = scmp.ne.s32.totalorder %s190, %s191
      %p202 = scmp.eq.s32.totalorder %s28, 0
      %p203 = por %p201, %p202
      %p204 = scmp.ne.s32.totalorder %s190, %s191
      %p205 = scmp.eq.s32.totalorder %s29, 1
      %p206 = por %p204, %p205
      %p208 = scmp.ne.s32.totalorder %s191, %s207
      %p209 = scmp.eq.s32.totalorder %s29, 0
      %p210 = por %p208, %p209
      %p211 = scmp.le.s32.totalorder 1, %s23
      %p212 = scmp.lt.s32.totalorder %s23, 3
      %p213 = pnand %p211, %p212
      %p214 = pneg %p213
      // Predicated region
      $region9: #{cgae_forward.1} parent=5 // pred_check
        _
      $region10: #{cgae_forward.1} parent=5 // pred_check_branch
        %216 = sbr.rel (%p213) target = $region12
      $region11: #{cgae_forward.1} parent=5 // pred_region
        %s217 = ssub.s32 %s23, 1
        // Predicated region
        $region13: #{cgae_forward.1} parent=11 // pred_check
          %p218 = pneg %p112
        $region14: #{cgae_forward.1} parent=11 // pred_check_branch
          %220 = sbr.rel (%p218) target = $region16
        $region15: #{cgae_forward.1} parent=11 // pred_region
          %s222 = ssub.s32 1536, 1536
          %223 = vsyncadd [#allocation6], %s222
          %s224 = sshll.u32 [#allocation7], 4
          %s225 = int_to_ptr.vmem [resolvable:$true] %s224
          %230 = dma.hbm_to_vmem [thread:$0]  %s2, 1536, %s225, [#allocation6], 128, 128, 8
        $region16: #{cgae_forward.1} parent=11 // pred_fallthru
          _
        // Predicated region
        $region17: #{cgae_forward.1} parent=11 // pred_check
          %p231 = pneg %p133
        $region18: #{cgae_forward.1} parent=11 // pred_check_branch
          %233 = sbr.rel (%p231) target = $region20
        $region19: #{cgae_forward.1} parent=11 // pred_region
          %s235 = ssub.s32 256, 256
          %236 = vsyncadd [#allocation9], %s235
          %s237 = sshll.u32 [#allocation8], 4
          %s238 = int_to_ptr.vmem [resolvable:$true] %s237
          %243 = dma.hbm_to_vmem [thread:$0]  %s3, 256, %s238, [#allocation9], 128, 128, 8
        $region20: #{cgae_forward.1} parent=11 // pred_fallthru
          _
        // Predicated region
        $region21: #{cgae_forward.1} parent=11 // pred_check
          %p244 = pneg %p154
        $region22: #{cgae_forward.1} parent=11 // pred_check_branch
          %246 = sbr.rel (%p244) target = $region24
        $region23: #{cgae_forward.1} parent=11 // pred_region
          %s248 = ssub.s32 16, 16
          %249 = vsyncadd [#allocation9], %s248
          %s251 = sshll.u32 [#allocation10], 4
          %s252 = int_to_ptr.vmem [resolvable:$true] %s251
          %254 = dma.hbm_to_vmem [thread:$0]  %s4, 16, %s252, [#allocation9]
        $region24: #{cgae_forward.1} parent=11 // pred_fallthru
          _
        // Predicated region
        $region25: #{cgae_forward.1} parent=11 // pred_check
          %p255 = pneg %p175
        $region26: #{cgae_forward.1} parent=11 // pred_check_branch
          %257 = sbr.rel (%p255) target = $region28
        $region27: #{cgae_forward.1} parent=11 // pred_region
          %s259 = ssub.s32 1024, 1024
          %260 = vsyncadd [#allocation12], %s259
          %s261 = sshll.u32 [#allocation11], 4
          %s262 = int_to_ptr.vmem [resolvable:$true] %s261
          %267 = dma.hbm_to_vmem [thread:$0]  %s5, 1024, %s262, [#allocation12], 128, 128, 8
        $region28: #{cgae_forward.1} parent=11 // pred_fallthru
          _
      $region12: #{cgae_forward.1} parent=5 // pred_fallthru
        _
      %p268 = scmp.lt.s32.totalorder %s23, 2
      // Predicated region
      $region29: #{cgae_forward.1} parent=5 // pred_check
        %p269 = pneg %p268
      $region30: #{cgae_forward.1} parent=5 // pred_check_branch
        %271 = sbr.rel (%p269) target = $region32
      $region31: #{cgae_forward.1} parent=5 // pred_region
        // Predicated region
        $region33: #{cgae_forward.1} parent=31 // pred_check
          %p272 = pneg %p57
        $region34: #{cgae_forward.1} parent=31 // pred_check_branch
          %274 = sbr.rel (%p272) target = $region36
        $region35: #{cgae_forward.1} parent=31 // pred_region
          %s275 = sand.u32 %s47, 1
          %s276 = scalar_lea.sflag [#allocation3], %s275
          %s277 = sand.u32 %s47, 1
          %s278 = smul.addr %s277, 528
          %s279 = scalar_lea.vmem [#allocation2], %s278
          %s281 = ssub.s32 8448, 8448
          %282 = vsyncadd %s276, %s281
          %s283 = smul.addr %s31, 66
          %s284 = smul.addr %s30, 66
          %s285 = sadd.s32 %s283, %s284
          %s286 = smul.addr %s285, 128
          %s287 = scalar_lea.hbm %s0, %s286
          %s288 = sshll.u32 %s279, 4
          %s289 = int_to_ptr.vmem [resolvable:$true] %s288
          %294 = dma.hbm_to_vmem [thread:$0]  %s287, 8448, %s289, %s276, 128, 128, 8
        $region36: #{cgae_forward.1} parent=31 // pred_fallthru
          _
        // Predicated region
        $region37: #{cgae_forward.1} parent=31 // pred_check
          %p295 = pneg %p85
        $region38: #{cgae_forward.1} parent=31 // pred_check_branch
          %297 = sbr.rel (%p295) target = $region40
        $region39: #{cgae_forward.1} parent=31 // pred_region
          %s298 = sand.u32 %s23, 1
          %s299 = scalar_lea.sflag [#allocation6], %s298
          %s300 = sand.u32 %s75, 1
          %s301 = smul.addr %s300, 512
          %s302 = scalar_lea.vmem [#allocation5], %s301
          %s303 = smul.u32 64, %s31
          %s305 = ssub.s32 8192, 8192
          %306 = vsyncadd %s299, %s305
          %s307 = smul.addr %s30, 64
          %s308 = sadd.s32 %s303, %s307
          %s309 = smul.addr %s308, 128
          %s310 = scalar_lea.hbm %s1, %s309
          %s311 = sshll.u32 %s302, 4
          %s312 = int_to_ptr.vmem [resolvable:$true] %s311
          %317 = dma.hbm_to_vmem [thread:$0]  %s310, 8192, %s312, %s299, 128, 128, 8
        $region40: #{cgae_forward.1} parent=31 // pred_fallthru
          _
      $region32: #{cgae_forward.1} parent=5 // pred_fallthru
        _
      %p318 = scmp.le.s32.totalorder 1, %s23
      %p319 = scmp.lt.s32.totalorder %s23, 3
      %p320 = pnand %p318, %p319
      %p321 = pneg %p320
      // Predicated region
      $region41: #{cgae_forward.1} parent=5 // pred_check
        _
      $region42: #{cgae_forward.1} parent=5 // pred_check_branch
        %323 = sbr.rel (%p320) target = $region44
      $region43: #{cgae_forward.1} parent=5 // pred_region
        %s324 = ssub.s32 %s23, 1
        %s325 = sand.u32 %s50, 1
        %s326 = scalar_lea.sflag [#allocation3], %s325
        %s327 = sand.u32 %s50, 1
        %s328 = smul.addr %s327, 528
        %s329 = scalar_lea.vmem [#allocation2], %s328
        // Predicated region
        $region45: #{cgae_forward.1} parent=43 // pred_check
          %p330 = pneg %p63
        $region46: #{cgae_forward.1} parent=43 // pred_check_branch
          %332 = sbr.rel (%p330) target = $region48
        $region47: #{cgae_forward.1} parent=43 // pred_region
          %333 = dma.done %s326, 8448
        $region48: #{cgae_forward.1} parent=43 // pred_fallthru
          _
        %s334 = sand.u32 %s28, 1
        %s335 = scalar_lea.sflag [#allocation6], %s334
        %s336 = sand.u32 %s78, 1
        %s337 = smul.addr %s336, 512
        %s338 = scalar_lea.vmem [#allocation5], %s337
        // Predicated region
        $region49: #{cgae_forward.1} parent=43 // pred_check
          %p339 = pneg %p91
        $region50: #{cgae_forward.1} parent=43 // pred_check_branch
          %341 = sbr.rel (%p339) target = $region52
        $region51: #{cgae_forward.1} parent=43 // pred_region
          %342 = dma.done %s335, 8192
        $region52: #{cgae_forward.1} parent=43 // pred_fallthru
          _
        // Predicated region
        $region53: #{cgae_forward.1} parent=43 // pred_check
          %p343 = pneg %p112
        $region54: #{cgae_forward.1} parent=43 // pred_check_branch
          %345 = sbr.rel (%p343) target = $region56
        $region55: #{cgae_forward.1} parent=43 // pred_region
          %346 = dma.done [#allocation6], 1536
        $region56: #{cgae_forward.1} parent=43 // pred_fallthru
          _
        // Predicated region
        $region57: #{cgae_forward.1} parent=43 // pred_check
          %p347 = pneg %p133
        $region58: #{cgae_forward.1} parent=43 // pred_check_branch
          %349 = sbr.rel (%p347) target = $region60
        $region59: #{cgae_forward.1} parent=43 // pred_region
          %350 = dma.done [#allocation9], 256
        $region60: #{cgae_forward.1} parent=43 // pred_fallthru
          _
        // Predicated region
        $region61: #{cgae_forward.1} parent=43 // pred_check
          %p351 = pneg %p154
        $region62: #{cgae_forward.1} parent=43 // pred_check_branch
          %353 = sbr.rel (%p351) target = $region64
        $region63: #{cgae_forward.1} parent=43 // pred_region
          %354 = dma.done [#allocation9], 16
        $region64: #{cgae_forward.1} parent=43 // pred_fallthru
          _
        // Predicated region
        $region65: #{cgae_forward.1} parent=43 // pred_check
          %p355 = pneg %p175
        $region66: #{cgae_forward.1} parent=43 // pred_check_branch
          %357 = sbr.rel (%p355) target = $region68
        $region67: #{cgae_forward.1} parent=43 // pred_region
          %358 = dma.done [#allocation12], 1024
        $region68: #{cgae_forward.1} parent=43 // pred_fallthru
          _
        %s359 = sand.u32 %s50, 1
        %s360 = scalar_lea.sflag [#allocation3], %s359
        %s361 = sand.u32 %s50, 1
        %s362 = smul.addr %s361, 528
        %s363 = scalar_lea.vmem [#allocation2], %s362
        %p364 = pneg %p63
        %p365 = pneg %p60
        %s366 = sand.u32 %s28, 1
        %s367 = scalar_lea.sflag [#allocation6], %s366
        %s368 = sand.u32 %s78, 1
        %s369 = smul.addr %s368, 512
        %s370 = scalar_lea.vmem [#allocation5], %s369
        %p371 = pneg %p91
        %p372 = pneg %p88
        %p373 = pneg %p112
        %p374 = pneg %p109
        %p375 = pneg %p133
        %p376 = pneg %p130
        %p377 = pneg %p154
        %p378 = pneg %p151
        %p379 = pneg %p175
        %p380 = pneg %p172
        %p381 = pneg %p203
        %p382 = pneg %p200
        %s383 = sand.u32 %s190, 1
        %s384 = scalar_lea.sflag [#allocation4], %s383
        %s385 = sand.u32 %s190, 1
        %s386 = smul.addr %s385, 512
        %s387 = scalar_lea.vmem [#allocation13], %s386
        %s388 = smul.u32 64, %s33
        %s389 = smul.u32 64, %s33
        %v390 = vld [vmem:[%s329] sm:$0xff]
        %v391 = vld [vmem:[%s329 + $0x8] sm:$0xff]
        %v392 = vld [vmem:[%s329 + $0x10] sm:$0xff]
        %v393 = vld [vmem:[%s329 + $0x18] sm:$0xff]
        %v394 = vld [vmem:[%s329 + $0x20] sm:$0xff]
        %v395 = vld [vmem:[%s329 + $0x28] sm:$0xff]
        %v396 = vld [vmem:[%s329 + $0x30] sm:$0xff]
        %v397 = vld [vmem:[%s329 + $0x38] sm:$0xff]
        %v398 = vld [vmem:[%s329 + $0x40] sm:$0xff]
        %v399 = vld [vmem:[%s329 + $0x48] sm:$0xff]
        %v400 = vld [vmem:[%s329 + $0x50] sm:$0xff]
        %v401 = vld [vmem:[%s329 + $0x58] sm:$0xff]
        %v402 = vld [vmem:[%s329 + $0x60] sm:$0xff]
        %v403 = vld [vmem:[%s329 + $0x68] sm:$0xff]
        %v404 = vld [vmem:[%s329 + $0x70] sm:$0xff]
        %v405 = vld [vmem:[%s329 + $0x78] sm:$0xff]
        %v406 = vld [vmem:[%s329 + $0x80] sm:$0xff]
        %v407 = vld [vmem:[%s329 + $0x88] sm:$0xff]
        %v408 = vld [vmem:[%s329 + $0x90] sm:$0xff]
        %v409 = vld [vmem:[%s329 + $0x98] sm:$0xff]
        %v410 = vld [vmem:[%s329 + $0xa0] sm:$0xff]
        %v411 = vld [vmem:[%s329 + $0xa8] sm:$0xff]
        %v412 = vld [vmem:[%s329 + $0xb0] sm:$0xff]
        %v413 = vld [vmem:[%s329 + $0xb8] sm:$0xff]
        %v414 = vld [vmem:[%s329 + $0xc0] sm:$0xff]
        %v415 = vld [vmem:[%s329 + $0xc8] sm:$0xff]
        %v416 = vld [vmem:[%s329 + $0xd0] sm:$0xff]
        %v417 = vld [vmem:[%s329 + $0xd8] sm:$0xff]
        %v418 = vld [vmem:[%s329 + $0xe0] sm:$0xff]
        %v419 = vld [vmem:[%s329 + $0xe8] sm:$0xff]
        %v420 = vld [vmem:[%s329 + $0xf0] sm:$0xff]
        %v421 = vld [vmem:[%s329 + $0xf8] sm:$0xff]
        %v422 = vld [vmem:[%s329 + $0x100] sm:$0xff]
        %v423 = vld [vmem:[%s329 + $0x108] sm:$0xff]
        %v424 = vld [vmem:[%s329 + $0x110] sm:$0xff]
        %v425 = vld [vmem:[%s329 + $0x118] sm:$0xff]
        %v426 = vld [vmem:[%s329 + $0x120] sm:$0xff]
        %v427 = vld [vmem:[%s329 + $0x128] sm:$0xff]
        %v428 = vld [vmem:[%s329 + $0x130] sm:$0xff]
        %v429 = vld [vmem:[%s329 + $0x138] sm:$0xff]
        %v430 = vld [vmem:[%s329 + $0x140] sm:$0xff]
        %v431 = vld [vmem:[%s329 + $0x148] sm:$0xff]
        %v432 = vld [vmem:[%s329 + $0x150] sm:$0xff]
        %v433 = vld [vmem:[%s329 + $0x158] sm:$0xff]
        %v434 = vld [vmem:[%s329 + $0x160] sm:$0xff]
        %v435 = vld [vmem:[%s329 + $0x168] sm:$0xff]
        %v436 = vld [vmem:[%s329 + $0x170] sm:$0xff]
        %v437 = vld [vmem:[%s329 + $0x178] sm:$0xff]
        %v438 = vld [vmem:[%s329 + $0x180] sm:$0xff]
        %v439 = vld [vmem:[%s329 + $0x188] sm:$0xff]
        %v440 = vld [vmem:[%s329 + $0x190] sm:$0xff]
        %v441 = vld [vmem:[%s329 + $0x198] sm:$0xff]
        %v442 = vld [vmem:[%s329 + $0x1a0] sm:$0xff]
        %v443 = vld [vmem:[%s329 + $0x1a8] sm:$0xff]
        %v444 = vld [vmem:[%s329 + $0x1b0] sm:$0xff]
        %v445 = vld [vmem:[%s329 + $0x1b8] sm:$0xff]
        %v446 = vld [vmem:[%s329 + $0x1c0] sm:$0xff]
        %v447 = vld [vmem:[%s329 + $0x1c8] sm:$0xff]
        %v448 = vld [vmem:[%s329 + $0x1d0] sm:$0xff]
        %v449 = vld [vmem:[%s329 + $0x1d8] sm:$0xff]
        %v450 = vld [vmem:[%s329 + $0x1e0] sm:$0xff]
        %v451 = vld [vmem:[%s329 + $0x1e8] sm:$0xff]
        %v452 = vld [vmem:[%s329 + $0x1f0] sm:$0xff]
        %v453 = vld [vmem:[%s329 + $0x1f8] sm:$0xff]
        %v454 = vld [vmem:[#allocation7] sm:$0xff]
        %v455 = vld [vmem:[#allocation7 + $0x8] sm:$0xff]
        %v456 = vld [vmem:[#allocation7 + $0x10] sm:$0xff]
        %v457 = vld [vmem:[#allocation7 + $0x18] sm:$0xff]
        %v458 = vld [vmem:[%s329 + $0x1] sm:$0xff]
        %v459 = vld [vmem:[%s329 + $0x9] sm:$0xff]
        %v460 = vld [vmem:[%s329 + $0x11] sm:$0xff]
        %v461 = vld [vmem:[%s329 + $0x19] sm:$0xff]
        %v462 = vld [vmem:[%s329 + $0x21] sm:$0xff]
        %v463 = vld [vmem:[%s329 + $0x29] sm:$0xff]
        %v464 = vld [vmem:[%s329 + $0x31] sm:$0xff]
        %v465 = vld [vmem:[%s329 + $0x39] sm:$0xff]
        %v466 = vld [vmem:[%s329 + $0x41] sm:$0xff]
        %v467 = vld [vmem:[%s329 + $0x49] sm:$0xff]
        %v468 = vld [vmem:[%s329 + $0x51] sm:$0xff]
        %v469 = vld [vmem:[%s329 + $0x59] sm:$0xff]
        %v470 = vld [vmem:[%s329 + $0x61] sm:$0xff]
        %v471 = vld [vmem:[%s329 + $0x69] sm:$0xff]
        %v472 = vld [vmem:[%s329 + $0x71] sm:$0xff]
        %v473 = vld [vmem:[%s329 + $0x79] sm:$0xff]
        %v474 = vld [vmem:[%s329 + $0x81] sm:$0xff]
        %v475 = vld [vmem:[%s329 + $0x89] sm:$0xff]
        %v476 = vld [vmem:[%s329 + $0x91] sm:$0xff]
        %v477 = vld [vmem:[%s329 + $0x99] sm:$0xff]
        %v478 = vld [vmem:[%s329 + $0xa1] sm:$0xff]
        %v479 = vld [vmem:[%s329 + $0xa9] sm:$0xff]
        %v480 = vld [vmem:[%s329 + $0xb1] sm:$0xff]
        %v481 = vld [vmem:[%s329 + $0xb9] sm:$0xff]
        %v482 = vld [vmem:[%s329 + $0xc1] sm:$0xff]
        %v483 = vld [vmem:[%s329 + $0xc9] sm:$0xff]
        %v484 = vld [vmem:[%s329 + $0xd1] sm:$0xff]
        %v485 = vld [vmem:[%s329 + $0xd9] sm:$0xff]
        %v486 = vld [vmem:[%s329 + $0xe1] sm:$0xff]
        %v487 = vld [vmem:[%s329 + $0xe9] sm:$0xff]
        %v488 = vld [vmem:[%s329 + $0xf1] sm:$0xff]
        %v489 = vld [vmem:[%s329 + $0xf9] sm:$0xff]
        %v490 = vld [vmem:[%s329 + $0x101] sm:$0xff]
        %v491 = vld [vmem:[%s329 + $0x109] sm:$0xff]
        %v492 = vld [vmem:[%s329 + $0x111] sm:$0xff]
        %v493 = vld [vmem:[%s329 + $0x119] sm:$0xff]
        %v494 = vld [vmem:[%s329 + $0x121] sm:$0xff]
        %v495 = vld [vmem:[%s329 + $0x129] sm:$0xff]
        %v496 = vld [vmem:[%s329 + $0x131] sm:$0xff]
        %v497 = vld [vmem:[%s329 + $0x139] sm:$0xff]
        %v498 = vld [vmem:[%s329 + $0x141] sm:$0xff]
        %v499 = vld [vmem:[%s329 + $0x149] sm:$0xff]
        %v500 = vld [vmem:[%s329 + $0x151] sm:$0xff]
        %v501 = vld [vmem:[%s329 + $0x159] sm:$0xff]
        %v502 = vld [vmem:[%s329 + $0x161] sm:$0xff]
        %v503 = vld [vmem:[%s329 + $0x169] sm:$0xff]
        %v504 = vld [vmem:[%s329 + $0x171] sm:$0xff]
        %v505 = vld [vmem:[%s329 + $0x179] sm:$0xff]
        %v506 = vld [vmem:[%s329 + $0x181] sm:$0xff]
        %v507 = vld [vmem:[%s329 + $0x189] sm:$0xff]
        %v508 = vld [vmem:[%s329 + $0x191] sm:$0xff]
        %v509 = vld [vmem:[%s329 + $0x199] sm:$0xff]
        %v510 = vld [vmem:[%s329 + $0x1a1] sm:$0xff]
        %v511 = vld [vmem:[%s329 + $0x1a9] sm:$0xff]
        %v512 = vld [vmem:[%s329 + $0x1b1] sm:$0xff]
        %v513 = vld [vmem:[%s329 + $0x1b9] sm:$0xff]
        %v514 = vld [vmem:[%s329 + $0x1c1] sm:$0xff]
        %v515 = vld [vmem:[%s329 + $0x1c9] sm:$0xff]
        %v516 = vld [vmem:[%s329 + $0x1d1] sm:$0xff]
        %v517 = vld [vmem:[%s329 + $0x1d9] sm:$0xff]
        %v518 = vld [vmem:[%s329 + $0x1e1] sm:$0xff]
        %v519 = vld [vmem:[%s329 + $0x1e9] sm:$0xff]
        %v520 = vld [vmem:[%s329 + $0x1f1] sm:$0xff]
        %v521 = vld [vmem:[%s329 + $0x1f9] sm:$0xff]
        %s522 = scalar_lea.vmem [#allocation7], 32
        %v523 = vld [vmem:[%s522] sm:$0xff]
        %v524 = vld [vmem:[%s522 + $0x8] sm:$0xff]
        %v525 = vld [vmem:[%s522 + $0x10] sm:$0xff]
        %v526 = vld [vmem:[%s522 + $0x18] sm:$0xff]
        %vm527 = vcmask 261120
        %v529 = vsel %vm527, %v458, 0
        %v532 = vsel %vm527, %v459, 0
        %v535 = vsel %vm527, %v460, 0
        %v538 = vsel %vm527, %v461, 0
        %v541 = vsel %vm527, %v462, 0
        %v544 = vsel %vm527, %v463, 0
        %v547 = vsel %vm527, %v464, 0
        %v550 = vsel %vm527, %v465, 0
        %v553 = vsel %vm527, %v466, 0
        %v556 = vsel %vm527, %v467, 0
        %v559 = vsel %vm527, %v468, 0
        %v562 = vsel %vm527, %v469, 0
        %v565 = vsel %vm527, %v470, 0
        %v568 = vsel %vm527, %v471, 0
        %v571 = vsel %vm527, %v472, 0
        %v574 = vsel %vm527, %v473, 0
        %v577 = vsel %vm527, %v474, 0
        %v580 = vsel %vm527, %v475, 0
        %v583 = vsel %vm527, %v476, 0
        %v586 = vsel %vm527, %v477, 0
        %v589 = vsel %vm527, %v478, 0
        %v592 = vsel %vm527, %v479, 0
        %v595 = vsel %vm527, %v480, 0
        %v598 = vsel %vm527, %v481, 0
        %v601 = vsel %vm527, %v482, 0
        %v604 = vsel %vm527, %v483, 0
        %v607 = vsel %vm527, %v484, 0
        %v610 = vsel %vm527, %v485, 0
        %v613 = vsel %vm527, %v486, 0
        %v616 = vsel %vm527, %v487, 0
        %v619 = vsel %vm527, %v488, 0
        %v622 = vsel %vm527, %v489, 0
        %v625 = vsel %vm527, %v490, 0
        %v628 = vsel %vm527, %v491, 0
        %v631 = vsel %vm527, %v492, 0
        %v634 = vsel %vm527, %v493, 0
        %v637 = vsel %vm527, %v494, 0
        %v640 = vsel %vm527, %v495, 0
        %v643 = vsel %vm527, %v496, 0
        %v646 = vsel %vm527, %v497, 0
        %v649 = vsel %vm527, %v498, 0
        %v652 = vsel %vm527, %v499, 0
        %v655 = vsel %vm527, %v500, 0
        %v658 = vsel %vm527, %v501, 0
        %v661 = vsel %vm527, %v502, 0
        %v664 = vsel %vm527, %v503, 0
        %v667 = vsel %vm527, %v504, 0
        %v670 = vsel %vm527, %v505, 0
        %v673 = vsel %vm527, %v506, 0
        %v676 = vsel %vm527, %v507, 0
        %v679 = vsel %vm527, %v508, 0
        %v682 = vsel %vm527, %v509, 0
        %v685 = vsel %vm527, %v510, 0
        %v688 = vsel %vm527, %v511, 0
        %v691 = vsel %vm527, %v512, 0
        %v694 = vsel %vm527, %v513, 0
        %v697 = vsel %vm527, %v514, 0
        %v700 = vsel %vm527, %v515, 0
        %v703 = vsel %vm527, %v516, 0
        %v706 = vsel %vm527, %v517, 0
        %v709 = vsel %vm527, %v518, 0
        %v712 = vsel %vm527, %v519, 0
        %v715 = vsel %vm527, %v520, 0
        %v718 = vsel %vm527, %v521, 0
        %720 = vmatprep.subr.mxu0 0.0
        %721 = vmatpush1.msra.mxu0 %v523
        %722 = vmatprep.subr.mxu0 0.0
        %723 = vmatpush1.msra.mxu0 %v524
        %724 = vmatprep.subr.mxu0 0.0
        %725 = vmatpush1.msra.mxu0 %v525
        %726 = vmatprep.subr.mxu0 0.0
        %727 = vmatpush1.msra.mxu0 %v526
        %728 = vmatprep.subr.mxu0 0.0
        %729 = vmatpush1.msra.mxu0 0.0
        %730 = vmatprep.subr.mxu0 0.0
        %731 = vmatpush1.msra.mxu0 0.0
        %732 = vmatprep.subr.mxu0 0.0
        %733 = vmatpush1.msra.mxu0 0.0
        %734 = vmatprep.subr.mxu0 0.0
        %735 = vmatpush1.msra.mxu0 0.0
        %736 = vmatprep.subr.mxu0 0.0
        %737 = vmatpush1.msra.mxu0 0.0
        %738 = vmatprep.subr.mxu0 0.0
        %739 = vmatpush1.msra.mxu0 0.0
        %740 = vmatprep.subr.mxu0 0.0
        %741 = vmatpush1.msra.mxu0 0.0
        %742 = vmatprep.subr.mxu0 0.0
        %743 = vmatpush1.msra.mxu0 0.0
        %744 = vmatprep.subr.mxu0 0.0
        %745 = vmatpush1.msra.mxu0 0.0
        %746 = vmatprep.subr.mxu0 0.0
        %747 = vmatpush1.msra.mxu0 0.0
        %748 = vmatprep.subr.mxu0 0.0
        %749 = vmatpush1.msra.mxu0 0.0
        %750 = vmatprep.subr.mxu0 0.0
        %751 = vmatpush1.msra.mxu0 0.0
        %752 = vmatprep.subr.mxu0 0.0
        %753 = vmatpush1.msra.mxu0 0.0
        %754 = vmatprep.subr.mxu0 0.0
        %755 = vmatpush1.msra.mxu0 0.0
        %756 = vmatprep.subr.mxu0 0.0
        %757 = vmatpush1.msra.mxu0 0.0
        %758 = vmatprep.subr.mxu0 0.0
        %759 = vmatpush1.msra.mxu0 0.0
        %760 = vmatprep.subr.mxu0 0.0
        %761 = vmatpush1.msra.mxu0 0.0
        %762 = vmatprep.subr.mxu0 0.0
        %763 = vmatpush1.msra.mxu0 0.0
        %764 = vmatprep.subr.mxu0 0.0
        %765 = vmatpush1.msra.mxu0 0.0
        %766 = vmatprep.subr.mxu0 0.0
        %767 = vmatpush1.msra.mxu0 0.0
        %768 = vmatprep.subr.mxu0 0.0
        %769 = vmatpush1.msra.mxu0 0.0
        %770 = vmatprep.subr.mxu0 0.0
        %771 = vmatpush1.msra.mxu0 0.0
        %772 = vmatprep.subr.mxu0 0.0
        %773 = vmatpush1.msra.mxu0 0.0
        %774 = vmatprep.subr.mxu0 0.0
        %775 = vmatpush1.msra.mxu0 0.0
        %776 = vmatprep.subr.mxu0 0.0
        %777 = vmatpush1.msra.mxu0 0.0
        %778 = vmatprep.subr.mxu0 0.0
        %779 = vmatpush1.msra.mxu0 0.0
        %780 = vmatprep.subr.mxu0 0.0
        %781 = vmatpush1.msra.mxu0 0.0
        %782 = vmatprep.subr.mxu0 0.0
        %783 = vmatpush1.msra.mxu0 0.0
        %784 = vmatprep.mubr.f32.mxu0 0.0
        %785 = vmatmul.mubr.f32.gmra.mrb[0].mxu0 %v529
        %v786 = vpop.f32.mrb[0].mxu0
        %v787 = vadd.f32 0.0, %v786
        %v788 = vpop.f32.mrb[0].mxu0
        %789 = vmatprep.mubr.f32.mxu0 0.0
        %790 = vmatmul.mubr.f32.gmra.mrb[0].mxu0 %v532
        %v791 = vpop.f32.mrb[0].mxu0
        %v792 = vadd.f32 0.0, %v791
        %v793 = vpop.f32.mrb[0].mxu0
        %794 = vmatprep.mubr.f32.mxu0 0.0
        %795 = vmatmul.mubr.f32.gmra.mrb[0].mxu0 %v535
        %v796 = vpop.f32.mrb[0].mxu0
        %v797 = vadd.f32 0.0, %v796
        %v798 = vpop.f32.mrb[0].mxu0
        %799 = vmatprep.mubr.f32.mxu0 0.0
        %800 = vmatmul.mubr.f32.gmra.mrb[0].mxu0 %v538
        %v801 = vpop.f32.mrb[0].mxu0
        %v802 = vadd.f32 0.0, %v801
        %v803 = vpop.f32.mrb[0].mxu0
        %804 = vmatprep.mubr.f32.mxu0 0.0
        %805 = vmatmul.mubr.f32.gmra.mrb[0].mxu0 %v541
        %v806 = vpop.f32.mrb[0].mxu0
        %v807 = vadd.f32 0.0, %v806
        %v808 = vpop.f32.mrb[0].mxu0
        %809 = vmatprep.mubr.f32.mxu0 0.0
        %810 = vmatmul.mubr.f32.gmra.mrb[0].mxu0 %v544
        %v811 = vpop.f32.mrb[0].mxu0
        %v812 = vadd.f32 0.0, %v811
        %v813 = vpop.f32.mrb[0].mxu0
        %814 = vmatprep.mubr.f32.mxu0 0.0
        %815 = vmatmul.mubr.f32.gmra.mrb[0].mxu0 %v547
        %v816 = vpop.f32.mrb[0].mxu0
        %v817 = vadd.f32 0.0, %v816
        %v818 = vpop.f32.mrb[0].mxu0
        %819 = vmatprep.mubr.f32.mxu0 0.0
        %820 = vmatmul.mubr.f32.gmra.mrb[0].mxu0 %v550
        %v821 = vpop.f32.mrb[0].mxu0
        %v822 = vadd.f32 0.0, %v821
        %v823 = vpop.f32.mrb[0].mxu0
        %824 = vmatprep.mubr.f32.mxu0 0.0
        %825 = vmatmul.mubr.f32.gmra.mrb[0].mxu0 %v553
        %v826 = vpop.f32.mrb[0].mxu0
        %v827 = vadd.f32 0.0, %v826
        %v828 = vpop.f32.mrb[0].mxu0
        %829 = vmatprep.mubr.f32.mxu0 0.0
        %830 = vmatmul.mubr.f32.gmra.mrb[0].mxu0 %v556
        %v831 = vpop.f32.mrb[0].mxu0
        %v832 = vadd.f32 0.0, %v831
        %v833 = vpop.f32.mrb[0].mxu0
        %834 = vmatprep.mubr.f32.mxu0 0.0
        %835 = vmatmul.mubr.f32.gmra.mrb[0].mxu0 %v559
        %v836 = vpop.f32.mrb[0].mxu0
        %v837 = vadd.f32 0.0, %v836
        %v838 = vpop.f32.mrb[0].mxu0
        %839 = vmatprep.mubr.f32.mxu0 0.0
        %840 = vmatmul.mubr.f32.gmra.mrb[0].mxu0 %v562
        %v841 = vpop.f32.mrb[0].mxu0
        %v842 = vadd.f32 0.0, %v841
        %v843 = vpop.f32.mrb[0].mxu0
        %844 = vmatprep.mubr.f32.mxu0 0.0
        %845 = vmatmul.mubr.f32.gmra.mrb[0].mxu0 %v565
        %v846 = vpop.f32.mrb[0].mxu0
        %v847 = vadd.f32 0.0, %v846
        %v848 = vpop.f32.mrb[0].mxu0
        %849 = vmatprep.mubr.f32.mxu0 0.0
        %850 = vmatmul.mubr.f32.gmra.mrb[0].mxu0 %v568
        %v851 = vpop.f32.mrb[0].mxu0
        %v852 = vadd.f32 0.0, %v851
        %v853 = vpop.f32.mrb[0].mxu0
        %854 = vmatprep.mubr.f32.mxu0 0.0
        %855 = vmatmul.mubr.f32.gmra.mrb[0].mxu0 %v571
        %v856 = vpop.f32.mrb[0].mxu0
        %v857 = vadd.f32 0.0, %v856
        %v858 = vpop.f32.mrb[0].mxu0
        %859 = vmatprep.mubr.f32.mxu0 0.0
        %860 = vmatmul.mubr.f32.gmra.mrb[0].mxu0 %v574
        %v861 = vpop.f32.mrb[0].mxu0
        %v862 = vadd.f32 0.0, %v861
        %v863 = vpop.f32.mrb[0].mxu0
        %864 = vmatprep.mubr.f32.mxu0 0.0
        %865 = vmatmul.mubr.f32.gmra.mrb[0].mxu0 %v577
        %v866 = vpop.f32.mrb[0].mxu0
        %v867 = vadd.f32 0.0, %v866
        %v868 = vpop.f32.mrb[0].mxu0
        %869 = vmatprep.mubr.f32.mxu0 0.0
        %870 = vmatmul.mubr.f32.gmra.mrb[0].mxu0 %v580
        %v871 = vpop.f32.mrb[0].mxu0
        %v872 = vadd.f32 0.0, %v871
        %v873 = vpop.f32.mrb[0].mxu0
        %874 = vmatprep.mubr.f32.mxu0 0.0
        %875 = vmatmul.mubr.f32.gmra.mrb[0].mxu0 %v583
        %v876 = vpop.f32.mrb[0].mxu0
        %v877 = vadd.f32 0.0, %v876
        %v878 = vpop.f32.mrb[0].mxu0
        %879 = vmatprep.mubr.f32.mxu0 0.0
        %880 = vmatmul.mubr.f32.gmra.mrb[0].mxu0 %v586
        %v881 = vpop.f32.mrb[0].mxu0
        %v882 = vadd.f32 0.0, %v881
        %v883 = vpop.f32.mrb[0].mxu0
        %884 = vmatprep.mubr.f32.mxu0 0.0
        %885 = vmatmul.mubr.f32.gmra.mrb[0].mxu0 %v589
        %v886 = vpop.f32.mrb[0].mxu0
        %v887 = vadd.f32 0.0, %v886
        %v888 = vpop.f32.mrb[0].mxu0
        %889 = vmatprep.mubr.f32.mxu0 0.0
        %890 = vmatmul.mubr.f32.gmra.mrb[0].mxu0 %v592
        %v891 = vpop.f32.mrb[0].mxu0
        %v892 = vadd.f32 0.0, %v891
        %v893 = vpop.f32.mrb[0].mxu0
        %894 = vmatprep.mubr.f32.mxu0 0.0
        %895 = vmatmul.mubr.f32.gmra.mrb[0].mxu0 %v595
        %v896 = vpop.f32.mrb[0].mxu0
        %v897 = vadd.f32 0.0, %v896
        %v898 = vpop.f32.mrb[0].mxu0
        %899 = vmatprep.mubr.f32.mxu0 0.0
        %900 = vmatmul.mubr.f32.gmra.mrb[0].mxu0 %v598
        %v901 = vpop.f32.mrb[0].mxu0
        %v902 = vadd.f32 0.0, %v901
        %v903 = vpop.f32.mrb[0].mxu0
        %904 = vmatprep.mubr.f32.mxu0 0.0
        %905 = vmatmul.mubr.f32.gmra.mrb[0].mxu0 %v601
        %v906 = vpop.f32.mrb[0].mxu0
        %v907 = vadd.f32 0.0, %v906
        %v908 = vpop.f32.mrb[0].mxu0
        %909 = vmatprep.mubr.f32.mxu0 0.0
        %910 = vmatmul.mubr.f32.gmra.mrb[0].mxu0 %v604
        %v911 = vpop.f32.mrb[0].mxu0
        %v912 = vadd.f32 0.0, %v911
        %v913 = vpop.f32.mrb[0].mxu0
        %914 = vmatprep.mubr.f32.mxu0 0.0
        %915 = vmatmul.mubr.f32.gmra.mrb[0].mxu0 %v607
        %v916 = vpop.f32.mrb[0].mxu0
        %v917 = vadd.f32 0.0, %v916
        %v918 = vpop.f32.mrb[0].mxu0
        %919 = vmatprep.mubr.f32.mxu0 0.0
        %920 = vmatmul.mubr.f32.gmra.mrb[0].mxu0 %v610
        %v921 = vpop.f32.mrb[0].mxu0
        %v922 = vadd.f32 0.0, %v921
        %v923 = vpop.f32.mrb[0].mxu0
        %924 = vmatprep.mubr.f32.mxu0 0.0
        %925 = vmatmul.mubr.f32.gmra.mrb[0].mxu0 %v613
        %v926 = vpop.f32.mrb[0].mxu0
        %v927 = vadd.f32 0.0, %v926
        %v928 = vpop.f32.mrb[0].mxu0
        %929 = vmatprep.mubr.f32.mxu0 0.0
        %930 = vmatmul.mubr.f32.gmra.mrb[0].mxu0 %v616
        %v931 = vpop.f32.mrb[0].mxu0
        %v932 = vadd.f32 0.0, %v931
        %v933 = vpop.f32.mrb[0].mxu0
        %934 = vmatprep.mubr.f32.mxu0 0.0
        %935 = vmatmul.mubr.f32.gmra.mrb[0].mxu0 %v619
        %v936 = vpop.f32.mrb[0].mxu0
        %v937 = vadd.f32 0.0, %v936
        %v938 = vpop.f32.mrb[0].mxu0
        %939 = vmatprep.mubr.f32.mxu0 0.0
        %940 = vmatmul.mubr.f32.gmra.mrb[0].mxu0 %v622
        %v941 = vpop.f32.mrb[0].mxu0
        %v942 = vadd.f32 0.0, %v941
        %v943 = vpop.f32.mrb[0].mxu0
        %944 = vmatprep.mubr.f32.mxu0 0.0
        %945 = vmatmul.mubr.f32.gmra.mrb[0].mxu0 %v625
        %v946 = vpop.f32.mrb[0].mxu0
        %v947 = vadd.f32 0.0, %v946
        %v948 = vpop.f32.mrb[0].mxu0
        %949 = vmatprep.mubr.f32.mxu0 0.0
        %950 = vmatmul.mubr.f32.gmra.mrb[0].mxu0 %v628
        %v951 = vpop.f32.mrb[0].mxu0
        %v952 = vadd.f32 0.0, %v951
        %v953 = vpop.f32.mrb[0].mxu0
        %954 = vmatprep.mubr.f32.mxu0 0.0
        %955 = vmatmul.mubr.f32.gmra.mrb[0].mxu0 %v631
        %v956 = vpop.f32.mrb[0].mxu0
        %v957 = vadd.f32 0.0, %v956
        %v958 = vpop.f32.mrb[0].mxu0
        %959 = vmatprep.mubr.f32.mxu0 0.0
        %960 = vmatmul.mubr.f32.gmra.mrb[0].mxu0 %v634
        %v961 = vpop.f32.mrb[0].mxu0
        %v962 = vadd.f32 0.0, %v961
        %v963 = vpop.f32.mrb[0].mxu0
        %964 = vmatprep.mubr.f32.mxu0 0.0
        %965 = vmatmul.mubr.f32.gmra.mrb[0].mxu0 %v637
        %v966 = vpop.f32.mrb[0].mxu0
        %v967 = vadd.f32 0.0, %v966
        %v968 = vpop.f32.mrb[0].mxu0
        %969 = vmatprep.mubr.f32.mxu0 0.0
        %970 = vmatmul.mubr.f32.gmra.mrb[0].mxu0 %v640
        %v971 = vpop.f32.mrb[0].mxu0
        %v972 = vadd.f32 0.0, %v971
        %v973 = vpop.f32.mrb[0].mxu0
        %974 = vmatprep.mubr.f32.mxu0 0.0
        %975 = vmatmul.mubr.f32.gmra.mrb[0].mxu0 %v643
        %v976 = vpop.f32.mrb[0].mxu0
        %v977 = vadd.f32 0.0, %v976
        %v978 = vpop.f32.mrb[0].mxu0
        %979 = vmatprep.mubr.f32.mxu0 0.0
        %980 = vmatmul.mubr.f32.gmra.mrb[0].mxu0 %v646
        %v981 = vpop.f32.mrb[0].mxu0
        %v982 = vadd.f32 0.0, %v981
        %v983 = vpop.f32.mrb[0].mxu0
        %984 = vmatprep.mubr.f32.mxu0 0.0
        %985 = vmatmul.mubr.f32.gmra.mrb[0].mxu0 %v649
        %v986 = vpop.f32.mrb[0].mxu0
        %v987 = vadd.f32 0.0, %v986
        %v988 = vpop.f32.mrb[0].mxu0
        %989 = vmatprep.mubr.f32.mxu0 0.0
        %990 = vmatmul.mubr.f32.gmra.mrb[0].mxu0 %v652
        %v991 = vpop.f32.mrb[0].mxu0
        %v992 = vadd.f32 0.0, %v991
        %v993 = vpop.f32.mrb[0].mxu0
        %994 = vmatprep.mubr.f32.mxu0 0.0
        %995 = vmatmul.mubr.f32.gmra.mrb[0].mxu0 %v655
        %v996 = vpop.f32.mrb[0].mxu0
        %v997 = vadd.f32 0.0, %v996
        %v998 = vpop.f32.mrb[0].mxu0
        %999 = vmatprep.mubr.f32.mxu0 0.0
        %1000 = vmatmul.mubr.f32.gmra.mrb[0].mxu0 %v658
        %v1001 = vpop.f32.mrb[0].mxu0
        %v1002 = vadd.f32 0.0, %v1001
        %v1003 = vpop.f32.mrb[0].mxu0
        %1004 = vmatprep.mubr.f32.mxu0 0.0
        %1005 = vmatmul.mubr.f32.gmra.mrb[0].mxu0 %v661
        %v1006 = vpop.f32.mrb[0].mxu0
        %v1007 = vadd.f32 0.0, %v1006
        %v1008 = vpop.f32.mrb[0].mxu0
        %1009 = vmatprep.mubr.f32.mxu0 0.0
        %1010 = vmatmul.mubr.f32.gmra.mrb[0].mxu0 %v664
        %v1011 = vpop.f32.mrb[0].mxu0
        %v1012 = vadd.f32 0.0, %v1011
        %v1013 = vpop.f32.mrb[0].mxu0
        %1014 = vmatprep.mubr.f32.mxu0 0.0
        %1015 = vmatmul.mubr.f32.gmra.mrb[0].mxu0 %v667
        %v1016 = vpop.f32.mrb[0].mxu0
        %v1017 = vadd.f32 0.0, %v1016
        %v1018 = vpop.f32.mrb[0].mxu0
        %1019 = vmatprep.mubr.f32.mxu0 0.0
        %1020 = vmatmul.mubr.f32.gmra.mrb[0].mxu0 %v670
        %v1021 = vpop.f32.mrb[0].mxu0
        %v1022 = vadd.f32 0.0, %v1021
        %v1023 = vpop.f32.mrb[0].mxu0
        %1024 = vmatprep.mubr.f32.mxu0 0.0
        %1025 = vmatmul.mubr.f32.gmra.mrb[0].mxu0 %v673
        %v1026 = vpop.f32.mrb[0].mxu0
        %v1027 = vadd.f32 0.0, %v1026
        %v1028 = vpop.f32.mrb[0].mxu0
        %1029 = vmatprep.mubr.f32.mxu0 0.0
        %1030 = vmatmul.mubr.f32.gmra.mrb[0].mxu0 %v676
        %v1031 = vpop.f32.mrb[0].mxu0
        %v1032 = vadd.f32 0.0, %v1031
        %v1033 = vpop.f32.mrb[0].mxu0
        %1034 = vmatprep.mubr.f32.mxu0 0.0
        %1035 = vmatmul.mubr.f32.gmra.mrb[0].mxu0 %v679
        %v1036 = vpop.f32.mrb[0].mxu0
        %v1037 = vadd.f32 0.0, %v1036
        %v1038 = vpop.f32.mrb[0].mxu0
        %1039 = vmatprep.mubr.f32.mxu0 0.0
        %1040 = vmatmul.mubr.f32.gmra.mrb[0].mxu0 %v682
        %v1041 = vpop.f32.mrb[0].mxu0
        %v1042 = vadd.f32 0.0, %v1041
        %v1043 = vpop.f32.mrb[0].mxu0
        %1044 = vmatprep.mubr.f32.mxu0 0.0
        %1045 = vmatmul.mubr.f32.gmra.mrb[0].mxu0 %v685
        %v1046 = vpop.f32.mrb[0].mxu0
        %v1047 = vadd.f32 0.0, %v1046
        %v1048 = vpop.f32.mrb[0].mxu0
        %1049 = vmatprep.mubr.f32.mxu0 0.0
        %1050 = vmatmul.mubr.f32.gmra.mrb[0].mxu0 %v688
        %v1051 = vpop.f32.mrb[0].mxu0
        %v1052 = vadd.f32 0.0, %v1051
        %v1053 = vpop.f32.mrb[0].mxu0
        %1054 = vmatprep.mubr.f32.mxu0 0.0
        %1055 = vmatmul.mubr.f32.gmra.mrb[0].mxu0 %v691
        %v1056 = vpop.f32.mrb[0].mxu0
        %v1057 = vadd.f32 0.0, %v1056
        %v1058 = vpop.f32.mrb[0].mxu0
        %1059 = vmatprep.mubr.f32.mxu0 0.0
        %1060 = vmatmul.mubr.f32.gmra.mrb[0].mxu0 %v694
        %v1061 = vpop.f32.mrb[0].mxu0
        %v1062 = vadd.f32 0.0, %v1061
        %v1063 = vpop.f32.mrb[0].mxu0
        %1064 = vmatprep.mubr.f32.mxu0 0.0
        %1065 = vmatmul.mubr.f32.gmra.mrb[0].mxu0 %v697
        %v1066 = vpop.f32.mrb[0].mxu0
        %v1067 = vadd.f32 0.0, %v1066
        %v1068 = vpop.f32.mrb[0].mxu0
        %1069 = vmatprep.mubr.f32.mxu0 0.0
        %1070 = vmatmul.mubr.f32.gmra.mrb[0].mxu0 %v700
        %v1071 = vpop.f32.mrb[0].mxu0
        %v1072 = vadd.f32 0.0, %v1071
        %v1073 = vpop.f32.mrb[0].mxu0
        %1074 = vmatprep.mubr.f32.mxu0 0.0
        %1075 = vmatmul.mubr.f32.gmra.mrb[0].mxu0 %v703
        %v1076 = vpop.f32.mrb[0].mxu0
        %v1077 = vadd.f32 0.0, %v1076
        %v1078 = vpop.f32.mrb[0].mxu0
        %1079 = vmatprep.mubr.f32.mxu0 0.0
        %1080 = vmatmul.mubr.f32.gmra.mrb[0].mxu0 %v706
        %v1081 = vpop.f32.mrb[0].mxu0
        %v1082 = vadd.f32 0.0, %v1081
        %v1083 = vpop.f32.mrb[0].mxu0
        %1084 = vmatprep.mubr.f32.mxu0 0.0
        %1085 = vmatmul.mubr.f32.gmra.mrb[0].mxu0 %v709
        %v1086 = vpop.f32.mrb[0].mxu0
        %v1087 = vadd.f32 0.0, %v1086
        %v1088 = vpop.f32.mrb[0].mxu0
        %1089 = vmatprep.mubr.f32.mxu0 0.0
        %1090 = vmatmul.mubr.f32.gmra.mrb[0].mxu0 %v712
        %v1091 = vpop.f32.mrb[0].mxu0
        %v1092 = vadd.f32 0.0, %v1091
        %v1093 = vpop.f32.mrb[0].mxu0
        %1094 = vmatprep.mubr.f32.mxu0 0.0
        %1095 = vmatmul.mubr.f32.gmra.mrb[0].mxu0 %v715
        %v1096 = vpop.f32.mrb[0].mxu0
        %v1097 = vadd.f32 0.0, %v1096
        %v1098 = vpop.f32.mrb[0].mxu0
        %1099 = vmatprep.mubr.f32.mxu0 0.0
        %1100 = vmatmul.mubr.f32.gmra.mrb[0].mxu0 %v718
        %v1101 = vpop.f32.mrb[0].mxu0
        %v1102 = vadd.f32 0.0, %v1101
        %v1103 = vpop.f32.mrb[0].mxu0
        %1104 = vdwg.mxu0
        %v1106 = vsel %vm527, %v390, 0
        %v1109 = vsel %vm527, %v391, 0
        %v1112 = vsel %vm527, %v392, 0
        %v1115 = vsel %vm527, %v393, 0
        %v1118 = vsel %vm527, %v394, 0
        %v1121 = vsel %vm527, %v395, 0
        %v1124 = vsel %vm527, %v396, 0
        %v1127 = vsel %vm527, %v397, 0
        %v1130 = vsel %vm527, %v398, 0
        %v1133 = vsel %vm527, %v399, 0
        %v1136 = vsel %vm527, %v400, 0
        %v1139 = vsel %vm527, %v401, 0
        %v1142 = vsel %vm527, %v402, 0
        %v1145 = vsel %vm527, %v403, 0
        %v1148 = vsel %vm527, %v404, 0
        %v1151 = vsel %vm527, %v405, 0
        %v1154 = vsel %vm527, %v406, 0
        %v1157 = vsel %vm527, %v407, 0
        %v1160 = vsel %vm527, %v408, 0
        %v1163 = vsel %vm527, %v409, 0
        %v1166 = vsel %vm527, %v410, 0
        %v1169 = vsel %vm527, %v411, 0
        %v1172 = vsel %vm527, %v412, 0
        %v1175 = vsel %vm527, %v413, 0
        %v1178 = vsel %vm527, %v414, 0
        %v1181 = vsel %vm527, %v415, 0
        %v1184 = vsel %vm527, %v416, 0
        %v1187 = vsel %vm527, %v417, 0
        %v1190 = vsel %vm527, %v418, 0
        %v1193 = vsel %vm527, %v419, 0
        %v1196 = vsel %vm527, %v420, 0
        %v1199 = vsel %vm527, %v421, 0
        %v1202 = vsel %vm527, %v422, 0
        %v1205 = vsel %vm527, %v423, 0
        %v1208 = vsel %vm527, %v424, 0
        %v1211 = vsel %vm527, %v425, 0
        %v1214 = vsel %vm527, %v426, 0
        %v1217 = vsel %vm527, %v427, 0
        %v1220 = vsel %vm527, %v428, 0
        %v1223 = vsel %vm527, %v429, 0
        %v1226 = vsel %vm527, %v430, 0
        %v1229 = vsel %vm527, %v431, 0
        %v1232 = vsel %vm527, %v432, 0
        %v1235 = vsel %vm527, %v433, 0
        %v1238 = vsel %vm527, %v434, 0
        %v1241 = vsel %vm527, %v435, 0
        %v1244 = vsel %vm527, %v436, 0
        %v1247 = vsel %vm527, %v437, 0
        %v1250 = vsel %vm527, %v438, 0
        %v1253 = vsel %vm527, %v439, 0
        %v1256 = vsel %vm527, %v440, 0
        %v1259 = vsel %vm527, %v441, 0
        %v1262 = vsel %vm527, %v442, 0
        %v1265 = vsel %vm527, %v443, 0
        %v1268 = vsel %vm527, %v444, 0
        %v1271 = vsel %vm527, %v445, 0
        %v1274 = vsel %vm527, %v446, 0
        %v1277 = vsel %vm527, %v447, 0
        %v1280 = vsel %vm527, %v448, 0
        %v1283 = vsel %vm527, %v449, 0
        %v1286 = vsel %vm527, %v450, 0
        %v1289 = vsel %vm527, %v451, 0
        %v1292 = vsel %vm527, %v452, 0
        %v1295 = vsel %vm527, %v453, 0
        %1297 = vmatprep.subr.mxu0 0.0
        %1298 = vmatpush1.msra.mxu0 %v454
        %1299 = vmatprep.subr.mxu0 0.0
        %1300 = vmatpush1.msra.mxu0 %v455
        %1301 = vmatprep.subr.mxu0 0.0
        %1302 = vmatpush1.msra.mxu0 %v456
        %1303 = vmatprep.subr.mxu0 0.0
        %1304 = vmatpush1.msra.mxu0 %v457
        %1305 = vmatprep.subr.mxu0 0.0
        %1306 = vmatpush1.msra.mxu0 0.0
        %1307 = vmatprep.subr.mxu0 0.0
        %1308 = vmatpush1.msra.mxu0 0.0
        %1309 = vmatprep.subr.mxu0 0.0
        %1310 = vmatpush1.msra.mxu0 0.0
        %1311 = vmatprep.subr.mxu0 0.0
        %1312 = vmatpush1.msra.mxu0 0.0
        %1313 = vmatprep.subr.mxu0 0.0
        %1314 = vmatpush1.msra.mxu0 0.0
        %1315 = vmatprep.subr.mxu0 0.0
        %1316 = vmatpush1.msra.mxu0 0.0
        %1317 = vmatprep.subr.mxu0 0.0
        %1318 = vmatpush1.msra.mxu0 0.0
        %1319 = vmatprep.subr.mxu0 0.0
        %1320 = vmatpush1.msra.mxu0 0.0
        %1321 = vmatprep.subr.mxu0 0.0
        %1322 = vmatpush1.msra.mxu0 0.0
        %1323 = vmatprep.subr.mxu0 0.0
        %1324 = vmatpush1.msra.mxu0 0.0
        %1325 = vmatprep.subr.mxu0 0.0
        %1326 = vmatpush1.msra.mxu0 0.0
        %1327 = vmatprep.subr.mxu0 0.0
        %1328 = vmatpush1.msra.mxu0 0.0
        %1329 = vmatprep.subr.mxu0 0.0
        %1330 = vmatpush1.msra.mxu0 0.0
        %1331 = vmatprep.subr.mxu0 0.0
        %1332 = vmatpush1.msra.mxu0 0.0
        %1333 = vmatprep.subr.mxu0 0.0
        %1334 = vmatpush1.msra.mxu0 0.0
        %1335 = vmatprep.subr.mxu0 0.0
        %1336 = vmatpush1.msra.mxu0 0.0
        %1337 = vmatprep.subr.mxu0 0.0
        %1338 = vmatpush1.msra.mxu0 0.0
        %1339 = vmatprep.subr.mxu0 0.0
        %1340 = vmatpush1.msra.mxu0 0.0
        %1341 = vmatprep.subr.mxu0 0.0
        %1342 = vmatpush1.msra.mxu0 0.0
        %1343 = vmatprep.subr.mxu0 0.0
        %1344 = vmatpush1.msra.mxu0 0.0
        %1345 = vmatprep.subr.mxu0 0.0
        %1346 = vmatpush1.msra.mxu0 0.0
        %1347 = vmatprep.subr.mxu0 0.0
        %1348 = vmatpush1.msra.mxu0 0.0
        %1349 = vmatprep.subr.mxu0 0.0
        %1350 = vmatpush1.msra.mxu0 0.0
        %1351 = vmatprep.subr.mxu0 0.0
        %1352 = vmatpush1.msra.mxu0 0.0
        %1353 = vmatprep.subr.mxu0 0.0
        %1354 = vmatpush1.msra.mxu0 0.0
        %1355 = vmatprep.subr.mxu0 0.0
        %1356 = vmatpush1.msra.mxu0 0.0
        %1357 = vmatprep.subr.mxu0 0.0
        %1358 = vmatpush1.msra.mxu0 0.0
        %1359 = vmatprep.subr.mxu0 0.0
        %1360 = vmatpush1.msra.mxu0 0.0
        %1361 = vmatprep.mubr.f32.mxu0 0.0
        %1362 = vmatmul.mubr.f32.gmra.mrb[0].mxu0 %v1106
        %v1363 = vpop.f32.mrb[0].mxu0
        %v1364 = vadd.f32 %v787, %v1363
        %v1365 = vpop.f32.mrb[0].mxu0
        %1366 = vmatprep.mubr.f32.mxu0 0.0
        %1367 = vmatmul.mubr.f32.gmra.mrb[0].mxu0 %v1109
        %v1368 = vpop.f32.mrb[0].mxu0
        %v1369 = vadd.f32 %v792, %v1368
        %v1370 = vpop.f32.mrb[0].mxu0
        %1371 = vmatprep.mubr.f32.mxu0 0.0
        %1372 = vmatmul.mubr.f32.gmra.mrb[0].mxu0 %v1112
        %v1373 = vpop.f32.mrb[0].mxu0
        %v1374 = vadd.f32 %v797, %v1373
        %v1375 = vpop.f32.mrb[0].mxu0
        %1376 = vmatprep.mubr.f32.mxu0 0.0
        %1377 = vmatmul.mubr.f32.gmra.mrb[0].mxu0 %v1115
        %v1378 = vpop.f32.mrb[0].mxu0
        %v1379 = vadd.f32 %v802, %v1378
        %v1380 = vpop.f32.mrb[0].mxu0
        %1381 = vmatprep.mubr.f32.mxu0 0.0
        %1382 = vmatmul.mubr.f32.gmra.mrb[0].mxu0 %v1118
        %v1383 = vpop.f32.mrb[0].mxu0
        %v1384 = vadd.f32 %v807, %v1383
        %v1385 = vpop.f32.mrb[0].mxu0
        %1386 = vmatprep.mubr.f32.mxu0 0.0
        %1387 = vmatmul.mubr.f32.gmra.mrb[0].mxu0 %v1121
        %v1388 = vpop.f32.mrb[0].mxu0
        %v1389 = vadd.f32 %v812, %v1388
        %v1390 = vpop.f32.mrb[0].mxu0
        %1391 = vmatprep.mubr.f32.mxu0 0.0
        %1392 = vmatmul.mubr.f32.gmra.mrb[0].mxu0 %v1124
        %v1393 = vpop.f32.mrb[0].mxu0
        %v1394 = vadd.f32 %v817, %v1393
        %v1395 = vpop.f32.mrb[0].mxu0
        %1396 = vmatprep.mubr.f32.mxu0 0.0
        %1397 = vmatmul.mubr.f32.gmra.mrb[0].mxu0 %v1127
        %v1398 = vpop.f32.mrb[0].mxu0
        %v1399 = vadd.f32 %v822, %v1398
        %v1400 = vpop.f32.mrb[0].mxu0
        %1401 = vmatprep.mubr.f32.mxu0 0.0
        %1402 = vmatmul.mubr.f32.gmra.mrb[0].mxu0 %v1130
        %v1403 = vpop.f32.mrb[0].mxu0
        %v1404 = vadd.f32 %v827, %v1403
        %v1405 = vpop.f32.mrb[0].mxu0
        %1406 = vmatprep.mubr.f32.mxu0 0.0
        %1407 = vmatmul.mubr.f32.gmra.mrb[0].mxu0 %v1133
        %v1408 = vpop.f32.mrb[0].mxu0
        %v1409 = vadd.f32 %v832, %v1408
        %v1410 = vpop.f32.mrb[0].mxu0
        %1411 = vmatprep.mubr.f32.mxu0 0.0
        %1412 = vmatmul.mubr.f32.gmra.mrb[0].mxu0 %v1136
        %v1413 = vpop.f32.mrb[0].mxu0
        %v1414 = vadd.f32 %v837, %v1413
        %v1415 = vpop.f32.mrb[0].mxu0
        %1416 = vmatprep.mubr.f32.mxu0 0.0
        %1417 = vmatmul.mubr.f32.gmra.mrb[0].mxu0 %v1139
        %v1418 = vpop.f32.mrb[0].mxu0
        %v1419 = vadd.f32 %v842, %v1418
        %v1420 = vpop.f32.mrb[0].mxu0
        %1421 = vmatprep.mubr.f32.mxu0 0.0
        %1422 = vmatmul.mubr.f32.gmra.mrb[0].mxu0 %v1142
        %v1423 = vpop.f32.mrb[0].mxu0
        %v1424 = vadd.f32 %v847, %v1423
        %v1425 = vpop.f32.mrb[0].mxu0
        %1426 = vmatprep.mubr.f32.mxu0 0.0
        %1427 = vmatmul.mubr.f32.gmra.mrb[0].mxu0 %v1145
        %v1428 = vpop.f32.mrb[0].mxu0
        %v1429 = vadd.f32 %v852, %v1428
        %v1430 = vpop.f32.mrb[0].mxu0
        %1431 = vmatprep.mubr.f32.mxu0 0.0
        %1432 = vmatmul.mubr.f32.gmra.mrb[0].mxu0 %v1148
        %v1433 = vpop.f32.mrb[0].mxu0
        %v1434 = vadd.f32 %v857, %v1433
        %v1435 = vpop.f32.mrb[0].mxu0
        %1436 = vmatprep.mubr.f32.mxu0 0.0
        %1437 = vmatmul.mubr.f32.gmra.mrb[0].mxu0 %v1151
        %v1438 = vpop.f32.mrb[0].mxu0
        %v1439 = vadd.f32 %v862, %v1438
        %v1440 = vpop.f32.mrb[0].mxu0
        %1441 = vmatprep.mubr.f32.mxu0 0.0
        %1442 = vmatmul.mubr.f32.gmra.mrb[0].mxu0 %v1154
        %v1443 = vpop.f32.mrb[0].mxu0
        %v1444 = vadd.f32 %v867, %v1443
        %v1445 = vpop.f32.mrb[0].mxu0
        %1446 = vmatprep.mubr.f32.mxu0 0.0
        %1447 = vmatmul.mubr.f32.gmra.mrb[0].mxu0 %v1157
        %v1448 = vpop.f32.mrb[0].mxu0
        %v1449 = vadd.f32 %v872, %v1448
        %v1450 = vpop.f32.mrb[0].mxu0
        %1451 = vmatprep.mubr.f32.mxu0 0.0
        %1452 = vmatmul.mubr.f32.gmra.mrb[0].mxu0 %v1160
        %v1453 = vpop.f32.mrb[0].mxu0
        %v1454 = vadd.f32 %v877, %v1453
        %v1455 = vpop.f32.mrb[0].mxu0
        %1456 = vmatprep.mubr.f32.mxu0 0.0
        %1457 = vmatmul.mubr.f32.gmra.mrb[0].mxu0 %v1163
        %v1458 = vpop.f32.mrb[0].mxu0
        %v1459 = vadd.f32 %v882, %v1458
        %v1460 = vpop.f32.mrb[0].mxu0
        %1461 = vmatprep.mubr.f32.mxu0 0.0
        %1462 = vmatmul.mubr.f32.gmra.mrb[0].mxu0 %v1166
        %v1463 = vpop.f32.mrb[0].mxu0
        %v1464 = vadd.f32 %v887, %v1463
        %v1465 = vpop.f32.mrb[0].mxu0
        %1466 = vmatprep.mubr.f32.mxu0 0.0
        %1467 = vmatmul.mubr.f32.gmra.mrb[0].mxu0 %v1169
        %v1468 = vpop.f32.mrb[0].mxu0
        %v1469 = vadd.f32 %v892, %v1468
        %v1470 = vpop.f32.mrb[0].mxu0
        %1471 = vmatprep.mubr.f32.mxu0 0.0
        %1472 = vmatmul.mubr.f32.gmra.mrb[0].mxu0 %v1172
        %v1473 = vpop.f32.mrb[0].mxu0
        %v1474 = vadd.f32 %v897, %v1473
        %v1475 = vpop.f32.mrb[0].mxu0
        %1476 = vmatprep.mubr.f32.mxu0 0.0
        %1477 = vmatmul.mubr.f32.gmra.mrb[0].mxu0 %v1175
        %v1478 = vpop.f32.mrb[0].mxu0
        %v1479 = vadd.f32 %v902, %v1478
        %v1480 = vpop.f32.mrb[0].mxu0
        %1481 = vmatprep.mubr.f32.mxu0 0.0
        %1482 = vmatmul.mubr.f32.gmra.mrb[0].mxu0 %v1178
        %v1483 = vpop.f32.mrb[0].mxu0
        %v1484 = vadd.f32 %v907, %v1483
        %v1485 = vpop.f32.mrb[0].mxu0
        %1486 = vmatprep.mubr.f32.mxu0 0.0
        %1487 = vmatmul.mubr.f32.gmra.mrb[0].mxu0 %v1181
        %v1488 = vpop.f32.mrb[0].mxu0
        %v1489 = vadd.f32 %v912, %v1488
        %v1490 = vpop.f32.mrb[0].mxu0
        %1491 = vmatprep.mubr.f32.mxu0 0.0
        %1492 = vmatmul.mubr.f32.gmra.mrb[0].mxu0 %v1184
        %v1493 = vpop.f32.mrb[0].mxu0
        %v1494 = vadd.f32 %v917, %v1493
        %v1495 = vpop.f32.mrb[0].mxu0
        %1496 = vmatprep.mubr.f32.mxu0 0.0
        %1497 = vmatmul.mubr.f32.gmra.mrb[0].mxu0 %v1187
        %v1498 = vpop.f32.mrb[0].mxu0
        %v1499 = vadd.f32 %v922, %v1498
        %v1500 = vpop.f32.mrb[0].mxu0
        %1501 = vmatprep.mubr.f32.mxu0 0.0
        %1502 = vmatmul.mubr.f32.gmra.mrb[0].mxu0 %v1190
        %v1503 = vpop.f32.mrb[0].mxu0
        %v1504 = vadd.f32 %v927, %v1503
        %v1505 = vpop.f32.mrb[0].mxu0
        %1506 = vmatprep.mubr.f32.mxu0 0.0
        %1507 = vmatmul.mubr.f32.gmra.mrb[0].mxu0 %v1193
        %v1508 = vpop.f32.mrb[0].mxu0
        %v1509 = vadd.f32 %v932, %v1508
        %v1510 = vpop.f32.mrb[0].mxu0
        %1511 = vmatprep.mubr.f32.mxu0 0.0
        %1512 = vmatmul.mubr.f32.gmra.mrb[0].mxu0 %v1196
        %v1513 = vpop.f32.mrb[0].mxu0
        %v1514 = vadd.f32 %v937, %v1513
        %v1515 = vpop.f32.mrb[0].mxu0
        %1516 = vmatprep.mubr.f32.mxu0 0.0
        %1517 = vmatmul.mubr.f32.gmra.mrb[0].mxu0 %v1199
        %v1518 = vpop.f32.mrb[0].mxu0
        %v1519 = vadd.f32 %v942, %v1518
        %v1520 = vpop.f32.mrb[0].mxu0
        %1521 = vmatprep.mubr.f32.mxu0 0.0
        %1522 = vmatmul.mubr.f32.gmra.mrb[0].mxu0 %v1202
        %v1523 = vpop.f32.mrb[0].mxu0
        %v1524 = vadd.f32 %v947, %v1523
        %v1525 = vpop.f32.mrb[0].mxu0
        %1526 = vmatprep.mubr.f32.mxu0 0.0
        %1527 = vmatmul.mubr.f32.gmra.mrb[0].mxu0 %v1205
        %v1528 = vpop.f32.mrb[0].mxu0
        %v1529 = vadd.f32 %v952, %v1528
        %v1530 = vpop.f32.mrb[0].mxu0
        %1531 = vmatprep.mubr.f32.mxu0 0.0
        %1532 = vmatmul.mubr.f32.gmra.mrb[0].mxu0 %v1208
        %v1533 = vpop.f32.mrb[0].mxu0
        %v1534 = vadd.f32 %v957, %v1533
        %v1535 = vpop.f32.mrb[0].mxu0
        %1536 = vmatprep.mubr.f32.mxu0 0.0
        %1537 = vmatmul.mubr.f32.gmra.mrb[0].mxu0 %v1211
        %v1538 = vpop.f32.mrb[0].mxu0
        %v1539 = vadd.f32 %v962, %v1538
        %v1540 = vpop.f32.mrb[0].mxu0
        %1541 = vmatprep.mubr.f32.mxu0 0.0
        %1542 = vmatmul.mubr.f32.gmra.mrb[0].mxu0 %v1214
        %v1543 = vpop.f32.mrb[0].mxu0
        %v1544 = vadd.f32 %v967, %v1543
        %v1545 = vpop.f32.mrb[0].mxu0
        %1546 = vmatprep.mubr.f32.mxu0 0.0
        %1547 = vmatmul.mubr.f32.gmra.mrb[0].mxu0 %v1217
        %v1548 = vpop.f32.mrb[0].mxu0
        %v1549 = vadd.f32 %v972, %v1548
        %v1550 = vpop.f32.mrb[0].mxu0
        %1551 = vmatprep.mubr.f32.mxu0 0.0
        %1552 = vmatmul.mubr.f32.gmra.mrb[0].mxu0 %v1220
        %v1553 = vpop.f32.mrb[0].mxu0
        %v1554 = vadd.f32 %v977, %v1553
        %v1555 = vpop.f32.mrb[0].mxu0
        %1556 = vmatprep.mubr.f32.mxu0 0.0
        %1557 = vmatmul.mubr.f32.gmra.mrb[0].mxu0 %v1223
        %v1558 = vpop.f32.mrb[0].mxu0
        %v1559 = vadd.f32 %v982, %v1558
        %v1560 = vpop.f32.mrb[0].mxu0
        %1561 = vmatprep.mubr.f32.mxu0 0.0
        %1562 = vmatmul.mubr.f32.gmra.mrb[0].mxu0 %v1226
        %v1563 = vpop.f32.mrb[0].mxu0
        %v1564 = vadd.f32 %v987, %v1563
        %v1565 = vpop.f32.mrb[0].mxu0
        %1566 = vmatprep.mubr.f32.mxu0 0.0
        %1567 = vmatmul.mubr.f32.gmra.mrb[0].mxu0 %v1229
        %v1568 = vpop.f32.mrb[0].mxu0
        %v1569 = vadd.f32 %v992, %v1568
        %v1570 = vpop.f32.mrb[0].mxu0
        %1571 = vmatprep.mubr.f32.mxu0 0.0
        %1572 = vmatmul.mubr.f32.gmra.mrb[0].mxu0 %v1232
        %v1573 = vpop.f32.mrb[0].mxu0
        %v1574 = vadd.f32 %v997, %v1573
        %v1575 = vpop.f32.mrb[0].mxu0
        %1576 = vmatprep.mubr.f32.mxu0 0.0
        %1577 = vmatmul.mubr.f32.gmra.mrb[0].mxu0 %v1235
        %v1578 = vpop.f32.mrb[0].mxu0
        %v1579 = vadd.f32 %v1002, %v1578
        %v1580 = vpop.f32.mrb[0].mxu0
        %1581 = vmatprep.mubr.f32.mxu0 0.0
        %1582 = vmatmul.mubr.f32.gmra.mrb[0].mxu0 %v1238
        %v1583 = vpop.f32.mrb[0].mxu0
        %v1584 = vadd.f32 %v1007, %v1583
        %v1585 = vpop.f32.mrb[0].mxu0
        %1586 = vmatprep.mubr.f32.mxu0 0.0
        %1587 = vmatmul.mubr.f32.gmra.mrb[0].mxu0 %v1241
        %v1588 = vpop.f32.mrb[0].mxu0
        %v1589 = vadd.f32 %v1012, %v1588
        %v1590 = vpop.f32.mrb[0].mxu0
        %1591 = vmatprep.mubr.f32.mxu0 0.0
        %1592 = vmatmul.mubr.f32.gmra.mrb[0].mxu0 %v1244
        %v1593 = vpop.f32.mrb[0].mxu0
        %v1594 = vadd.f32 %v1017, %v1593
        %v1595 = vpop.f32.mrb[0].mxu0
        %1596 = vmatprep.mubr.f32.mxu0 0.0
        %1597 = vmatmul.mubr.f32.gmra.mrb[0].mxu0 %v1247
        %v1598 = vpop.f32.mrb[0].mxu0
        %v1599 = vadd.f32 %v1022, %v1598
        %v1600 = vpop.f32.mrb[0].mxu0
        %1601 = vmatprep.mubr.f32.mxu0 0.0
        %1602 = vmatmul.mubr.f32.gmra.mrb[0].mxu0 %v1250
        %v1603 = vpop.f32.mrb[0].mxu0
        %v1604 = vadd.f32 %v1027, %v1603
        %v1605 = vpop.f32.mrb[0].mxu0
        %1606 = vmatprep.mubr.f32.mxu0 0.0
        %1607 = vmatmul.mubr.f32.gmra.mrb[0].mxu0 %v1253
        %v1608 = vpop.f32.mrb[0].mxu0
        %v1609 = vadd.f32 %v1032, %v1608
        %v1610 = vpop.f32.mrb[0].mxu0
        %1611 = vmatprep.mubr.f32.mxu0 0.0
        %1612 = vmatmul.mubr.f32.gmra.mrb[0].mxu0 %v1256
        %v1613 = vpop.f32.mrb[0].mxu0
        %v1614 = vadd.f32 %v1037, %v1613
        %v1615 = vpop.f32.mrb[0].mxu0
        %1616 = vmatprep.mubr.f32.mxu0 0.0
        %1617 = vmatmul.mubr.f32.gmra.mrb[0].mxu0 %v1259
        %v1618 = vpop.f32.mrb[0].mxu0
        %v1619 = vadd.f32 %v1042, %v1618
        %v1620 = vpop.f32.mrb[0].mxu0
        %1621 = vmatprep.mubr.f32.mxu0 0.0
        %1622 = vmatmul.mubr.f32.gmra.mrb[0].mxu0 %v1262
        %v1623 = vpop.f32.mrb[0].mxu0
        %v1624 = vadd.f32 %v1047, %v1623
        %v1625 = vpop.f32.mrb[0].mxu0
        %1626 = vmatprep.mubr.f32.mxu0 0.0
        %1627 = vmatmul.mubr.f32.gmra.mrb[0].mxu0 %v1265
        %v1628 = vpop.f32.mrb[0].mxu0
        %v1629 = vadd.f32 %v1052, %v1628
        %v1630 = vpop.f32.mrb[0].mxu0
        %1631 = vmatprep.mubr.f32.mxu0 0.0
        %1632 = vmatmul.mubr.f32.gmra.mrb[0].mxu0 %v1268
        %v1633 = vpop.f32.mrb[0].mxu0
        %v1634 = vadd.f32 %v1057, %v1633
        %v1635 = vpop.f32.mrb[0].mxu0
        %1636 = vmatprep.mubr.f32.mxu0 0.0
        %1637 = vmatmul.mubr.f32.gmra.mrb[0].mxu0 %v1271
        %v1638 = vpop.f32.mrb[0].mxu0
        %v1639 = vadd.f32 %v1062, %v1638
        %v1640 = vpop.f32.mrb[0].mxu0
        %1641 = vmatprep.mubr.f32.mxu0 0.0
        %1642 = vmatmul.mubr.f32.gmra.mrb[0].mxu0 %v1274
        %v1643 = vpop.f32.mrb[0].mxu0
        %v1644 = vadd.f32 %v1067, %v1643
        %v1645 = vpop.f32.mrb[0].mxu0
        %1646 = vmatprep.mubr.f32.mxu0 0.0
        %1647 = vmatmul.mubr.f32.gmra.mrb[0].mxu0 %v1277
        %v1648 = vpop.f32.mrb[0].mxu0
        %v1649 = vadd.f32 %v1072, %v1648
        %v1650 = vpop.f32.mrb[0].mxu0
        %1651 = vmatprep.mubr.f32.mxu0 0.0
        %1652 = vmatmul.mubr.f32.gmra.mrb[0].mxu0 %v1280
        %v1653 = vpop.f32.mrb[0].mxu0
        %v1654 = vadd.f32 %v1077, %v1653
        %v1655 = vpop.f32.mrb[0].mxu0
        %1656 = vmatprep.mubr.f32.mxu0 0.0
        %1657 = vmatmul.mubr.f32.gmra.mrb[0].mxu0 %v1283
        %v1658 = vpop.f32.mrb[0].mxu0
        %v1659 = vadd.f32 %v1082, %v1658
        %v1660 = vpop.f32.mrb[0].mxu0
        %1661 = vmatprep.mubr.f32.mxu0 0.0
        %1662 = vmatmul.mubr.f32.gmra.mrb[0].mxu0 %v1286
        %v1663 = vpop.f32.mrb[0].mxu0
        %v1664 = vadd.f32 %v1087, %v1663
        %v1665 = vpop.f32.mrb[0].mxu0
        %1666 = vmatprep.mubr.f32.mxu0 0.0
        %1667 = vmatmul.mubr.f32.gmra.mrb[0].mxu0 %v1289
        %v1668 = vpop.f32.mrb[0].mxu0
        %v1669 = vadd.f32 %v1092, %v1668
        %v1670 = vpop.f32.mrb[0].mxu0
        %1671 = vmatprep.mubr.f32.mxu0 0.0
        %1672 = vmatmul.mubr.f32.gmra.mrb[0].mxu0 %v1292
        %v1673 = vpop.f32.mrb[0].mxu0
        %v1674 = vadd.f32 %v1097, %v1673
        %v1675 = vpop.f32.mrb[0].mxu0
        %1676 = vmatprep.mubr.f32.mxu0 0.0
        %1677 = vmatmul.mubr.f32.gmra.mrb[0].mxu0 %v1295
        %v1678 = vpop.f32.mrb[0].mxu0
        %v1679 = vadd.f32 %v1102, %v1678
        %v1680 = vpop.f32.mrb[0].mxu0
        %1681 = vdwg.mxu0
        %v1682 = vld [vmem:[%s329 + $0x2] sm:$0xff]
        %v1683 = vld [vmem:[%s329 + $0xa] sm:$0xff]
        %v1684 = vld [vmem:[%s329 + $0x12] sm:$0xff]
        %v1685 = vld [vmem:[%s329 + $0x1a] sm:$0xff]
        %v1686 = vld [vmem:[%s329 + $0x22] sm:$0xff]
        %v1687 = vld [vmem:[%s329 + $0x2a] sm:$0xff]
        %v1688 = vld [vmem:[%s329 + $0x32] sm:$0xff]
        %v1689 = vld [vmem:[%s329 + $0x3a] sm:$0xff]
        %v1690 = vld [vmem:[%s329 + $0x42] sm:$0xff]
        %v1691 = vld [vmem:[%s329 + $0x4a] sm:$0xff]
        %v1692 = vld [vmem:[%s329 + $0x52] sm:$0xff]
        %v1693 = vld [vmem:[%s329 + $0x5a] sm:$0xff]
        %v1694 = vld [vmem:[%s329 + $0x62] sm:$0xff]
        %v1695 = vld [vmem:[%s329 + $0x6a] sm:$0xff]
        %v1696 = vld [vmem:[%s329 + $0x72] sm:$0xff]
        %v1697 = vld [vmem:[%s329 + $0x7a] sm:$0xff]
        %v1698 = vld [vmem:[%s329 + $0x82] sm:$0xff]
        %v1699 = vld [vmem:[%s329 + $0x8a] sm:$0xff]
        %v1700 = vld [vmem:[%s329 + $0x92] sm:$0xff]
        %v1701 = vld [vmem:[%s329 + $0x9a] sm:$0xff]
        %v1702 = vld [vmem:[%s329 + $0xa2] sm:$0xff]
        %v1703 = vld [vmem:[%s329 + $0xaa] sm:$0xff]
        %v1704 = vld [vmem:[%s329 + $0xb2] sm:$0xff]
        %v1705 = vld [vmem:[%s329 + $0xba] sm:$0xff]
        %v1706 = vld [vmem:[%s329 + $0xc2] sm:$0xff]
        %v1707 = vld [vmem:[%s329 + $0xca] sm:$0xff]
        %v1708 = vld [vmem:[%s329 + $0xd2] sm:$0xff]
        %v1709 = vld [vmem:[%s329 + $0xda] sm:$0xff]
        %v1710 = vld [vmem:[%s329 + $0xe2] sm:$0xff]
        %v1711 = vld [vmem:[%s329 + $0xea] sm:$0xff]
        %v1712 = vld [vmem:[%s329 + $0xf2] sm:$0xff]
        %v1713 = vld [vmem:[%s329 + $0xfa] sm:$0xff]
        %v1714 = vld [vmem:[%s329 + $0x102] sm:$0xff]
        %v1715 = vld [vmem:[%s329 + $0x10a] sm:$0xff]
        %v1716 = vld [vmem:[%s329 + $0x112] sm:$0xff]
        %v1717 = vld [vmem:[%s329 + $0x11a] sm:$0xff]
        %v1718 = vld [vmem:[%s329 + $0x122] sm:$0xff]
        %v1719 = vld [vmem:[%s329 + $0x12a] sm:$0xff]
        %v1720 = vld [vmem:[%s329 + $0x132] sm:$0xff]
        %v1721 = vld [vmem:[%s329 + $0x13a] sm:$0xff]
        %v1722 = vld [vmem:[%s329 + $0x142] sm:$0xff]
        %v1723 = vld [vmem:[%s329 + $0x14a] sm:$0xff]
        %v1724 = vld [vmem:[%s329 + $0x152] sm:$0xff]
        %v1725 = vld [vmem:[%s329 + $0x15a] sm:$0xff]
        %v1726 = vld [vmem:[%s329 + $0x162] sm:$0xff]
        %v1727 = vld [vmem:[%s329 + $0x16a] sm:$0xff]
        %v1728 = vld [vmem:[%s329 + $0x172] sm:$0xff]
        %v1729 = vld [vmem:[%s329 + $0x17a] sm:$0xff]
        %v1730 = vld [vmem:[%s329 + $0x182] sm:$0xff]
        %v1731 = vld [vmem:[%s329 + $0x18a] sm:$0xff]
        %v1732 = vld [vmem:[%s329 + $0x192] sm:$0xff]
        %v1733 = vld [vmem:[%s329 + $0x19a] sm:$0xff]
        %v1734 = vld [vmem:[%s329 + $0x1a2] sm:$0xff]
        %v1735 = vld [vmem:[%s329 + $0x1aa] sm:$0xff]
        %v1736 = vld [vmem:[%s329 + $0x1b2] sm:$0xff]
        %v1737 = vld [vmem:[%s329 + $0x1ba] sm:$0xff]
        %v1738 = vld [vmem:[%s329 + $0x1c2] sm:$0xff]
        %v1739 = vld [vmem:[%s329 + $0x1ca] sm:$0xff]
        %v1740 = vld [vmem:[%s329 + $0x1d2] sm:$0xff]
        %v1741 = vld [vmem:[%s329 + $0x1da] sm:$0xff]
        %v1742 = vld [vmem:[%s329 + $0x1e2] sm:$0xff]
        %v1743 = vld [vmem:[%s329 + $0x1ea] sm:$0xff]
        %v1744 = vld [vmem:[%s329 + $0x1f2] sm:$0xff]
        %v1745 = vld [vmem:[%s329 + $0x1fa] sm:$0xff]
        %s1746 = scalar_lea.vmem [#allocation7], 64
        %v1747 = vld [vmem:[%s1746] sm:$0xff]
        %v1748 = vld [vmem:[%s1746 + $0x8] sm:$0xff]
        %v1749 = vld [vmem:[%s1746 + $0x10] sm:$0xff]
        %v1750 = vld [vmem:[%s1746 + $0x18] sm:$0xff]
        %v1752 = vsel %vm527, %v1682, 0
        %v1755 = vsel %vm527, %v1683, 0
        %v1758 = vsel %vm527, %v1684, 0
        %v1761 = vsel %vm527, %v1685, 0
        %v1764 = vsel %vm527, %v1686, 0
        %v1767 = vsel %vm527, %v1687, 0
        %v1770 = vsel %vm527, %v1688, 0
        %v1773 = vsel %vm527, %v1689, 0
        %v1776 = vsel %vm527, %v1690, 0
        %v1779 = vsel %vm527, %v1691, 0
        %v1782 = vsel %vm527, %v1692, 0
        %v1785 = vsel %vm527, %v1693, 0
        %v1788 = vsel %vm527, %v1694, 0
        %v1791 = vsel %vm527, %v1695, 0
        %v1794 = vsel %vm527, %v1696, 0
        %v1797 = vsel %vm527, %v1697, 0
        %v1800 = vsel %vm527, %v1698, 0
        %v1803 = vsel %vm527, %v1699, 0
        %v1806 = vsel %vm527, %v1700, 0
        %v1809 = vsel %vm527, %v1701, 0
        %v1812 = vsel %vm527, %v1702, 0
        %v1815 = vsel %vm527, %v1703, 0
        %v1818 = vsel %vm527, %v1704, 0
        %v1821 = vsel %vm527, %v1705, 0
        %v1824 = vsel %vm527, %v1706, 0
        %v1827 = vsel %vm527, %v1707, 0
        %v1830 = vsel %vm527, %v1708, 0
        %v1833 = vsel %vm527, %v1709, 0
        %v1836 = vsel %vm527, %v1710, 0
        %v1839 = vsel %vm527, %v1711, 0
        %v1842 = vsel %vm527, %v1712, 0
        %v1845 = vsel %vm527, %v1713, 0
        %v1848 = vsel %vm527, %v1714, 0
        %v1851 = vsel %vm527, %v1715, 0
        %v1854 = vsel %vm527, %v1716, 0
        %v1857 = vsel %vm527, %v1717, 0
        %v1860 = vsel %vm527, %v1718, 0
        %v1863 = vsel %vm527, %v1719, 0
        %v1866 = vsel %vm527, %v1720, 0
        %v1869 = vsel %vm527, %v1721, 0
        %v1872 = vsel %vm527, %v1722, 0
        %v1875 = vsel %vm527, %v1723, 0
        %v1878 = vsel %vm527, %v1724, 0
        %v1881 = vsel %vm527, %v1725, 0
        %v1884 = vsel %vm527, %v1726, 0
        %v1887 = vsel %vm527, %v1727, 0
        %v1890 = vsel %vm527, %v1728, 0
        %v1893 = vsel %vm527, %v1729, 0
        %v1896 = vsel %vm527, %v1730, 0
        %v1899 = vsel %vm527, %v1731, 0
        %v1902 = vsel %vm527, %v1732, 0
        %v1905 = vsel %vm527, %v1733, 0
        %v1908 = vsel %vm527, %v1734, 0
        %v1911 = vsel %vm527, %v1735, 0
        %v1914 = vsel %vm527, %v1736, 0
        %v1917 = vsel %vm527, %v1737, 0
        %v1920 = vsel %vm527, %v1738, 0
        %v1923 = vsel %vm527, %v1739, 0
        %v1926 = vsel %vm527, %v1740, 0
        %v1929 = vsel %vm527, %v1741, 0
        %v1932 = vsel %vm527, %v1742, 0
        %v1935 = vsel %vm527, %v1743, 0
        %v1938 = vsel %vm527, %v1744, 0
        %v1941 = vsel %vm527, %v1745, 0
        %1943 = vmatprep.subr.mxu0 0.0
        %1944 = vmatpush1.msra.mxu0 %v1747
        %1945 = vmatprep.subr.mxu0 0.0
        %1946 = vmatpush1.msra.mxu0 %v1748
        %1947 = vmatprep.subr.mxu0 0.0
        %1948 = vmatpush1.msra.mxu0 %v1749
        %1949 = vmatprep.subr.mxu0 0.0
        %1950 = vmatpush1.msra.mxu0 %v1750
        %1951 = vmatprep.subr.mxu0 0.0
        %1952 = vmatpush1.msra.mxu0 0.0
        %1953 = vmatprep.subr.mxu0 0.0
        %1954 = vmatpush1.msra.mxu0 0.0
        %1955 = vmatprep.subr.mxu0 0.0
        %1956 = vmatpush1.msra.mxu0 0.0
        %1957 = vmatprep.subr.mxu0 0.0
        %1958 = vmatpush1.msra.mxu0 0.0
        %1959 = vmatprep.subr.mxu0 0.0
        %1960 = vmatpush1.msra.mxu0 0.0
        %1961 = vmatprep.subr.mxu0 0.0
        %1962 = vmatpush1.msra.mxu0 0.0
        %1963 = vmatprep.subr.mxu0 0.0
        %1964 = vmatpush1.msra.mxu0 0.0
        %1965 = vmatprep.subr.mxu0 0.0
        %1966 = vmatpush1.msra.mxu0 0.0
        %1967 = vmatprep.subr.mxu0 0.0
        %1968 = vmatpush1.msra.mxu0 0.0
        %1969 = vmatprep.subr.mxu0 0.0
        %1970 = vmatpush1.msra.mxu0 0.0
        %1971 = vmatprep.subr.mxu0 0.0
        %1972 = vmatpush1.msra.mxu0 0.0
        %1973 = vmatprep.subr.mxu0 0.0
        %1974 = vmatpush1.msra.mxu0 0.0
        %1975 = vmatprep.subr.mxu0 0.0
        %1976 = vmatpush1.msra.mxu0 0.0
        %1977 = vmatprep.subr.mxu0 0.0
        %1978 = vmatpush1.msra.mxu0 0.0
        %1979 = vmatprep.subr.mxu0 0.0
        %1980 = vmatpush1.msra.mxu0 0.0
        %1981 = vmatprep.subr.mxu0 0.0
        %1982 = vmatpush1.msra.mxu0 0.0
        %1983 = vmatprep.subr.mxu0 0.0
        %1984 = vmatpush1.msra.mxu0 0.0
        %1985 = vmatprep.subr.mxu0 0.0
        %1986 = vmatpush1.msra.mxu0 0.0
        %1987 = vmatprep.subr.mxu0 0.0
        %1988 = vmatpush1.msra.mxu0 0.0
        %1989 = vmatprep.subr.mxu0 0.0
        %1990 = vmatpush1.msra.mxu0 0.0
        %1991 = vmatprep.subr.mxu0 0.0
        %1992 = vmatpush1.msra.mxu0 0.0
        %1993 = vmatprep.subr.mxu0 0.0
        %1994 = vmatpush1.msra.mxu0 0.0
        %1995 = vmatprep.subr.mxu0 0.0
        %1996 = vmatpush1.msra.mxu0 0.0
        %1997 = vmatprep.subr.mxu0 0.0
        %1998 = vmatpush1.msra.mxu0 0.0
        %1999 = vmatprep.subr.mxu0 0.0
        %2000 = vmatpush1.msra.mxu0 0.0
        %2001 = vmatprep.subr.mxu0 0.0
        %2002 = vmatpush1.msra.mxu0 0.0
        %2003 = vmatprep.subr.mxu0 0.0
        %2004 = vmatpush1.msra.mxu0 0.0
        %2005 = vmatprep.subr.mxu0 0.0
        %2006 = vmatpush1.msra.mxu0 0.0
        %2007 = vmatprep.mubr.f32.mxu0 0.0
        %2008 = vmatmul.mubr.f32.gmra.mrb[0].mxu0 %v1752
        %v2009 = vpop.f32.mrb[0].mxu0
        %v2010 = vadd.f32 0.0, %v2009
        %v2011 = vpop.f32.mrb[0].mxu0
        %2012 = vmatprep.mubr.f32.mxu0 0.0
        %2013 = vmatmul.mubr.f32.gmra.mrb[0].mxu0 %v1755
        %v2014 = vpop.f32.mrb[0].mxu0
        %v2015 = vadd.f32 0.0, %v2014
        %v2016 = vpop.f32.mrb[0].mxu0
        %2017 = vmatprep.mubr.f32.mxu0 0.0
        %2018 = vmatmul.mubr.f32.gmra.mrb[0].mxu0 %v1758
        %v2019 = vpop.f32.mrb[0].mxu0
        %v2020 = vadd.f32 0.0, %v2019
        %v2021 = vpop.f32.mrb[0].mxu0
        %2022 = vmatprep.mubr.f32.mxu0 0.0
        %2023 = vmatmul.mubr.f32.gmra.mrb[0].mxu0 %v1761
        %v2024 = vpop.f32.mrb[0].mxu0
        %v2025 = vadd.f32 0.0, %v2024
        %v2026 = vpop.f32.mrb[0].mxu0
        %2027 = vmatprep.mubr.f32.mxu0 0.0
        %2028 = vmatmul.mubr.f32.gmra.mrb[0].mxu0 %v1764
        %v2029 = vpop.f32.mrb[0].mxu0
        %v2030 = vadd.f32 0.0, %v2029
        %v2031 = vpop.f32.mrb[0].mxu0
        %2032 = vmatprep.mubr.f32.mxu0 0.0
        %2033 = vmatmul.mubr.f32.gmra.mrb[0].mxu0 %v1767
        %v2034 = vpop.f32.mrb[0].mxu0
        %v2035 = vadd.f32 0.0, %v2034
        %v2036 = vpop.f32.mrb[0].mxu0
        %2037 = vmatprep.mubr.f32.mxu0 0.0
        %2038 = vmatmul.mubr.f32.gmra.mrb[0].mxu0 %v1770
        %v2039 = vpop.f32.mrb[0].mxu0
        %v2040 = vadd.f32 0.0, %v2039
        %v2041 = vpop.f32.mrb[0].mxu0
        %2042 = vmatprep.mubr.f32.mxu0 0.0
        %2043 = vmatmul.mubr.f32.gmra.mrb[0].mxu0 %v1773
        %v2044 = vpop.f32.mrb[0].mxu0
        %v2045 = vadd.f32 0.0, %v2044
        %v2046 = vpop.f32.mrb[0].mxu0
        %2047 = vmatprep.mubr.f32.mxu0 0.0
        %2048 = vmatmul.mubr.f32.gmra.mrb[0].mxu0 %v1776
        %v2049 = vpop.f32.mrb[0].mxu0
        %v2050 = vadd.f32 0.0, %v2049
        %v2051 = vpop.f32.mrb[0].mxu0
        %2052 = vmatprep.mubr.f32.mxu0 0.0
        %2053 = vmatmul.mubr.f32.gmra.mrb[0].mxu0 %v1779
        %v2054 = vpop.f32.mrb[0].mxu0
        %v2055 = vadd.f32 0.0, %v2054
        %v2056 = vpop.f32.mrb[0].mxu0
        %2057 = vmatprep.mubr.f32.mxu0 0.0
        %2058 = vmatmul.mubr.f32.gmra.mrb[0].mxu0 %v1782
        %v2059 = vpop.f32.mrb[0].mxu0
        %v2060 = vadd.f32 0.0, %v2059
        %v2061 = vpop.f32.mrb[0].mxu0
        %2062 = vmatprep.mubr.f32.mxu0 0.0
        %2063 = vmatmul.mubr.f32.gmra.mrb[0].mxu0 %v1785
        %v2064 = vpop.f32.mrb[0].mxu0
        %v2065 = vadd.f32 0.0, %v2064
        %v2066 = vpop.f32.mrb[0].mxu0
        %2067 = vmatprep.mubr.f32.mxu0 0.0
        %2068 = vmatmul.mubr.f32.gmra.mrb[0].mxu0 %v1788
        %v2069 = vpop.f32.mrb[0].mxu0
        %v2070 = vadd.f32 0.0, %v2069
        %v2071 = vpop.f32.mrb[0].mxu0
        %2072 = vmatprep.mubr.f32.mxu0 0.0
        %2073 = vmatmul.mubr.f32.gmra.mrb[0].mxu0 %v1791
        %v2074 = vpop.f32.mrb[0].mxu0
        %v2075 = vadd.f32 0.0, %v2074
        %v2076 = vpop.f32.mrb[0].mxu0
        %2077 = vmatprep.mubr.f32.mxu0 0.0
        %2078 = vmatmul.mubr.f32.gmra.mrb[0].mxu0 %v1794
        %v2079 = vpop.f32.mrb[0].mxu0
        %v2080 = vadd.f32 0.0, %v2079
        %v2081 = vpop.f32.mrb[0].mxu0
        %2082 = vmatprep.mubr.f32.mxu0 0.0
        %2083 = vmatmul.mubr.f32.gmra.mrb[0].mxu0 %v1797
        %v2084 = vpop.f32.mrb[0].mxu0
        %v2085 = vadd.f32 0.0, %v2084
        %v2086 = vpop.f32.mrb[0].mxu0
        %2087 = vmatprep.mubr.f32.mxu0 0.0
        %2088 = vmatmul.mubr.f32.gmra.mrb[0].mxu0 %v1800
        %v2089 = vpop.f32.mrb[0].mxu0
        %v2090 = vadd.f32 0.0, %v2089
        %v2091 = vpop.f32.mrb[0].mxu0
        %2092 = vmatprep.mubr.f32.mxu0 0.0
        %2093 = vmatmul.mubr.f32.gmra.mrb[0].mxu0 %v1803
        %v2094 = vpop.f32.mrb[0].mxu0
        %v2095 = vadd.f32 0.0, %v2094
        %v2096 = vpop.f32.mrb[0].mxu0
        %2097 = vmatprep.mubr.f32.mxu0 0.0
        %2098 = vmatmul.mubr.f32.gmra.mrb[0].mxu0 %v1806
        %v2099 = vpop.f32.mrb[0].mxu0
        %v2100 = vadd.f32 0.0, %v2099
        %v2101 = vpop.f32.mrb[0].mxu0
        %2102 = vmatprep.mubr.f32.mxu0 0.0
        %2103 = vmatmul.mubr.f32.gmra.mrb[0].mxu0 %v1809
        %v2104 = vpop.f32.mrb[0].mxu0
        %v2105 = vadd.f32 0.0, %v2104
        %v2106 = vpop.f32.mrb[0].mxu0
        %2107 = vmatprep.mubr.f32.mxu0 0.0
        %2108 = vmatmul.mubr.f32.gmra.mrb[0].mxu0 %v1812
        %v2109 = vpop.f32.mrb[0].mxu0
        %v2110 = vadd.f32 0.0, %v2109
        %v2111 = vpop.f32.mrb[0].mxu0
        %2112 = vmatprep.mubr.f32.mxu0 0.0
        %2113 = vmatmul.mubr.f32.gmra.mrb[0].mxu0 %v1815
        %v2114 = vpop.f32.mrb[0].mxu0
        %v2115 = vadd.f32 0.0, %v2114
        %v2116 = vpop.f32.mrb[0].mxu0
        %2117 = vmatprep.mubr.f32.mxu0 0.0
        %2118 = vmatmul.mubr.f32.gmra.mrb[0].mxu0 %v1818
        %v2119 = vpop.f32.mrb[0].mxu0
        %v2120 = vadd.f32 0.0, %v2119
        %v2121 = vpop.f32.mrb[0].mxu0
        %2122 = vmatprep.mubr.f32.mxu0 0.0
        %2123 = vmatmul.mubr.f32.gmra.mrb[0].mxu0 %v1821
        %v2124 = vpop.f32.mrb[0].mxu0
        %v2125 = vadd.f32 0.0, %v2124
        %v2126 = vpop.f32.mrb[0].mxu0
        %2127 = vmatprep.mubr.f32.mxu0 0.0
        %2128 = vmatmul.mubr.f32.gmra.mrb[0].mxu0 %v1824
        %v2129 = vpop.f32.mrb[0].mxu0
        %v2130 = vadd.f32 0.0, %v2129
        %v2131 = vpop.f32.mrb[0].mxu0
        %2132 = vmatprep.mubr.f32.mxu0 0.0
        %2133 = vmatmul.mubr.f32.gmra.mrb[0].mxu0 %v1827
        %v2134 = vpop.f32.mrb[0].mxu0
        %v2135 = vadd.f32 0.0, %v2134
        %v2136 = vpop.f32.mrb[0].mxu0
        %2137 = vmatprep.mubr.f32.mxu0 0.0
        %2138 = vmatmul.mubr.f32.gmra.mrb[0].mxu0 %v1830
        %v2139 = vpop.f32.mrb[0].mxu0
        %v2140 = vadd.f32 0.0, %v2139
        %v2141 = vpop.f32.mrb[0].mxu0
        %2142 = vmatprep.mubr.f32.mxu0 0.0
        %2143 = vmatmul.mubr.f32.gmra.mrb[0].mxu0 %v1833
        %v2144 = vpop.f32.mrb[0].mxu0
        %v2145 = vadd.f32 0.0, %v2144
        %v2146 = vpop.f32.mrb[0].mxu0
        %2147 = vmatprep.mubr.f32.mxu0 0.0
        %2148 = vmatmul.mubr.f32.gmra.mrb[0].mxu0 %v1836
        %v2149 = vpop.f32.mrb[0].mxu0
        %v2150 = vadd.f32 0.0, %v2149
        %v2151 = vpop.f32.mrb[0].mxu0
        %2152 = vmatprep.mubr.f32.mxu0 0.0
        %2153 = vmatmul.mubr.f32.gmra.mrb[0].mxu0 %v1839
        %v2154 = vpop.f32.mrb[0].mxu0
        %v2155 = vadd.f32 0.0, %v2154
        %v2156 = vpop.f32.mrb[0].mxu0
        %2157 = vmatprep.mubr.f32.mxu0 0.0
        %2158 = vmatmul.mubr.f32.gmra.mrb[0].mxu0 %v1842
        %v2159 = vpop.f32.mrb[0].mxu0
        %v2160 = vadd.f32 0.0, %v2159
        %v2161 = vpop.f32.mrb[0].mxu0
        %2162 = vmatprep.mubr.f32.mxu0 0.0
        %2163 = vmatmul.mubr.f32.gmra.mrb[0].mxu0 %v1845
        %v2164 = vpop.f32.mrb[0].mxu0
        %v2165 = vadd.f32 0.0, %v2164
        %v2166 = vpop.f32.mrb[0].mxu0
        %2167 = vmatprep.mubr.f32.mxu0 0.0
        %2168 = vmatmul.mubr.f32.gmra.mrb[0].mxu0 %v1848
        %v2169 = vpop.f32.mrb[0].mxu0
        %v2170 = vadd.f32 0.0, %v2169
        %v2171 = vpop.f32.mrb[0].mxu0
        %2172 = vmatprep.mubr.f32.mxu0 0.0
        %2173 = vmatmul.mubr.f32.gmra.mrb[0].mxu0 %v1851
        %v2174 = vpop.f32.mrb[0].mxu0
        %v2175 = vadd.f32 0.0, %v2174
        %v2176 = vpop.f32.mrb[0].mxu0
        %2177 = vmatprep.mubr.f32.mxu0 0.0
        %2178 = vmatmul.mubr.f32.gmra.mrb[0].mxu0 %v1854
        %v2179 = vpop.f32.mrb[0].mxu0
        %v2180 = vadd.f32 0.0, %v2179
        %v2181 = vpop.f32.mrb[0].mxu0
        %2182 = vmatprep.mubr.f32.mxu0 0.0
        %2183 = vmatmul.mubr.f32.gmra.mrb[0].mxu0 %v1857
        %v2184 = vpop.f32.mrb[0].mxu0
        %v2185 = vadd.f32 0.0, %v2184
        %v2186 = vpop.f32.mrb[0].mxu0
        %2187 = vmatprep.mubr.f32.mxu0 0.0
        %2188 = vmatmul.mubr.f32.gmra.mrb[0].mxu0 %v1860
        %v2189 = vpop.f32.mrb[0].mxu0
        %v2190 = vadd.f32 0.0, %v2189
        %v2191 = vpop.f32.mrb[0].mxu0
        %2192 = vmatprep.mubr.f32.mxu0 0.0
        %2193 = vmatmul.mubr.f32.gmra.mrb[0].mxu0 %v1863
        %v2194 = vpop.f32.mrb[0].mxu0
        %v2195 = vadd.f32 0.0, %v2194
        %v2196 = vpop.f32.mrb[0].mxu0
        %2197 = vmatprep.mubr.f32.mxu0 0.0
        %2198 = vmatmul.mubr.f32.gmra.mrb[0].mxu0 %v1866
        %v2199 = vpop.f32.mrb[0].mxu0
        %v2200 = vadd.f32 0.0, %v2199
        %v2201 = vpop.f32.mrb[0].mxu0
        %2202 = vmatprep.mubr.f32.mxu0 0.0
        %2203 = vmatmul.mubr.f32.gmra.mrb[0].mxu0 %v1869
        %v2204 = vpop.f32.mrb[0].mxu0
        %v2205 = vadd.f32 0.0, %v2204
        %v2206 = vpop.f32.mrb[0].mxu0
        %2207 = vmatprep.mubr.f32.mxu0 0.0
        %2208 = vmatmul.mubr.f32.gmra.mrb[0].mxu0 %v1872
        %v2209 = vpop.f32.mrb[0].mxu0
        %v2210 = vadd.f32 0.0, %v2209
        %v2211 = vpop.f32.mrb[0].mxu0
        %2212 = vmatprep.mubr.f32.mxu0 0.0
        %2213 = vmatmul.mubr.f32.gmra.mrb[0].mxu0 %v1875
        %v2214 = vpop.f32.mrb[0].mxu0
        %v2215 = vadd.f32 0.0, %v2214
        %v2216 = vpop.f32.mrb[0].mxu0
        %2217 = vmatprep.mubr.f32.mxu0 0.0
        %2218 = vmatmul.mubr.f32.gmra.mrb[0].mxu0 %v1878
        %v2219 = vpop.f32.mrb[0].mxu0
        %v2220 = vadd.f32 0.0, %v2219
        %v2221 = vpop.f32.mrb[0].mxu0
        %2222 = vmatprep.mubr.f32.mxu0 0.0
        %2223 = vmatmul.mubr.f32.gmra.mrb[0].mxu0 %v1881
        %v2224 = vpop.f32.mrb[0].mxu0
        %v2225 = vadd.f32 0.0, %v2224
        %v2226 = vpop.f32.mrb[0].mxu0
        %2227 = vmatprep.mubr.f32.mxu0 0.0
        %2228 = vmatmul.mubr.f32.gmra.mrb[0].mxu0 %v1884
        %v2229 = vpop.f32.mrb[0].mxu0
        %v2230 = vadd.f32 0.0, %v2229
        %v2231 = vpop.f32.mrb[0].mxu0
        %2232 = vmatprep.mubr.f32.mxu0 0.0
        %2233 = vmatmul.mubr.f32.gmra.mrb[0].mxu0 %v1887
        %v2234 = vpop.f32.mrb[0].mxu0
        %v2235 = vadd.f32 0.0, %v2234
        %v2236 = vpop.f32.mrb[0].mxu0
        %2237 = vmatprep.mubr.f32.mxu0 0.0
        %2238 = vmatmul.mubr.f32.gmra.mrb[0].mxu0 %v1890
        %v2239 = vpop.f32.mrb[0].mxu0
        %v2240 = vadd.f32 0.0, %v2239
        %v2241 = vpop.f32.mrb[0].mxu0
        %2242 = vmatprep.mubr.f32.mxu0 0.0
        %2243 = vmatmul.mubr.f32.gmra.mrb[0].mxu0 %v1893
        %v2244 = vpop.f32.mrb[0].mxu0
        %v2245 = vadd.f32 0.0, %v2244
        %v2246 = vpop.f32.mrb[0].mxu0
        %2247 = vmatprep.mubr.f32.mxu0 0.0
        %2248 = vmatmul.mubr.f32.gmra.mrb[0].mxu0 %v1896
        %v2249 = vpop.f32.mrb[0].mxu0
        %v2250 = vadd.f32 0.0, %v2249
        %v2251 = vpop.f32.mrb[0].mxu0
        %2252 = vmatprep.mubr.f32.mxu0 0.0
        %2253 = vmatmul.mubr.f32.gmra.mrb[0].mxu0 %v1899
        %v2254 = vpop.f32.mrb[0].mxu0
        %v2255 = vadd.f32 0.0, %v2254
        %v2256 = vpop.f32.mrb[0].mxu0
        %2257 = vmatprep.mubr.f32.mxu0 0.0
        %2258 = vmatmul.mubr.f32.gmra.mrb[0].mxu0 %v1902
        %v2259 = vpop.f32.mrb[0].mxu0
        %v2260 = vadd.f32 0.0, %v2259
        %v2261 = vpop.f32.mrb[0].mxu0
        %2262 = vmatprep.mubr.f32.mxu0 0.0
        %2263 = vmatmul.mubr.f32.gmra.mrb[0].mxu0 %v1905
        %v2264 = vpop.f32.mrb[0].mxu0
        %v2265 = vadd.f32 0.0, %v2264
        %v2266 = vpop.f32.mrb[0].mxu0
        %2267 = vmatprep.mubr.f32.mxu0 0.0
        %2268 = vmatmul.mubr.f32.gmra.mrb[0].mxu0 %v1908
        %v2269 = vpop.f32.mrb[0].mxu0
        %v2270 = vadd.f32 0.0, %v2269
        %v2271 = vpop.f32.mrb[0].mxu0
        %2272 = vmatprep.mubr.f32.mxu0 0.0
        %2273 = vmatmul.mubr.f32.gmra.mrb[0].mxu0 %v1911
        %v2274 = vpop.f32.mrb[0].mxu0
        %v2275 = vadd.f32 0.0, %v2274
        %v2276 = vpop.f32.mrb[0].mxu0
        %2277 = vmatprep.mubr.f32.mxu0 0.0
        %2278 = vmatmul.mubr.f32.gmra.mrb[0].mxu0 %v1914
        %v2279 = vpop.f32.mrb[0].mxu0
        %v2280 = vadd.f32 0.0, %v2279
        %v2281 = vpop.f32.mrb[0].mxu0
        %2282 = vmatprep.mubr.f32.mxu0 0.0
        %2283 = vmatmul.mubr.f32.gmra.mrb[0].mxu0 %v1917
        %v2284 = vpop.f32.mrb[0].mxu0
        %v2285 = vadd.f32 0.0, %v2284
        %v2286 = vpop.f32.mrb[0].mxu0
        %2287 = vmatprep.mubr.f32.mxu0 0.0
        %2288 = vmatmul.mubr.f32.gmra.mrb[0].mxu0 %v1920
        %v2289 = vpop.f32.mrb[0].mxu0
        %v2290 = vadd.f32 0.0, %v2289
        %v2291 = vpop.f32.mrb[0].mxu0
        %2292 = vmatprep.mubr.f32.mxu0 0.0
        %2293 = vmatmul.mubr.f32.gmra.mrb[0].mxu0 %v1923
        %v2294 = vpop.f32.mrb[0].mxu0
        %v2295 = vadd.f32 0.0, %v2294
        %v2296 = vpop.f32.mrb[0].mxu0
        %2297 = vmatprep.mubr.f32.mxu0 0.0
        %2298 = vmatmul.mubr.f32.gmra.mrb[0].mxu0 %v1926
        %v2299 = vpop.f32.mrb[0].mxu0
        %v2300 = vadd.f32 0.0, %v2299
        %v2301 = vpop.f32.mrb[0].mxu0
        %2302 = vmatprep.mubr.f32.mxu0 0.0
        %2303 = vmatmul.mubr.f32.gmra.mrb[0].mxu0 %v1929
        %v2304 = vpop.f32.mrb[0].mxu0
        %v2305 = vadd.f32 0.0, %v2304
        %v2306 = vpop.f32.mrb[0].mxu0
        %2307 = vmatprep.mubr.f32.mxu0 0.0
        %2308 = vmatmul.mubr.f32.gmra.mrb[0].mxu0 %v1932
        %v2309 = vpop.f32.mrb[0].mxu0
        %v2310 = vadd.f32 0.0, %v2309
        %v2311 = vpop.f32.mrb[0].mxu0
        %2312 = vmatprep.mubr.f32.mxu0 0.0
        %2313 = vmatmul.mubr.f32.gmra.mrb[0].mxu0 %v1935
        %v2314 = vpop.f32.mrb[0].mxu0
        %v2315 = vadd.f32 0.0, %v2314
        %v2316 = vpop.f32.mrb[0].mxu0
        %2317 = vmatprep.mubr.f32.mxu0 0.0
        %2318 = vmatmul.mubr.f32.gmra.mrb[0].mxu0 %v1938
        %v2319 = vpop.f32.mrb[0].mxu0
        %v2320 = vadd.f32 0.0, %v2319
        %v2321 = vpop.f32.mrb[0].mxu0
        %2322 = vmatprep.mubr.f32.mxu0 0.0
        %2323 = vmatmul.mubr.f32.gmra.mrb[0].mxu0 %v1941
        %v2324 = vpop.f32.mrb[0].mxu0
        %v2325 = vadd.f32 0.0, %v2324
        %v2326 = vpop.f32.mrb[0].mxu0
        %2327 = vdwg.mxu0
        %v2328 = vadd.f32 %v1364, %v2010
        %v2329 = vadd.f32 %v1369, %v2015
        %v2330 = vadd.f32 %v1374, %v2020
        %v2331 = vadd.f32 %v1379, %v2025
        %v2332 = vadd.f32 %v1384, %v2030
        %v2333 = vadd.f32 %v1389, %v2035
        %v2334 = vadd.f32 %v1394, %v2040
        %v2335 = vadd.f32 %v1399, %v2045
        %v2336 = vadd.f32 %v1404, %v2050
        %v2337 = vadd.f32 %v1409, %v2055
        %v2338 = vadd.f32 %v1414, %v2060
        %v2339 = vadd.f32 %v1419, %v2065
        %v2340 = vadd.f32 %v1424, %v2070
        %v2341 = vadd.f32 %v1429, %v2075
        %v2342 = vadd.f32 %v1434, %v2080
        %v2343 = vadd.f32 %v1439, %v2085
        %v2344 = vadd.f32 %v1444, %v2090
        %v2345 = vadd.f32 %v1449, %v2095
        %v2346 = vadd.f32 %v1454, %v2100
        %v2347 = vadd.f32 %v1459, %v2105
        %v2348 = vadd.f32 %v1464, %v2110
        %v2349 = vadd.f32 %v1469, %v2115
        %v2350 = vadd.f32 %v1474, %v2120
        %v2351 = vadd.f32 %v1479, %v2125
        %v2352 = vadd.f32 %v1484, %v2130
        %v2353 = vadd.f32 %v1489, %v2135
        %v2354 = vadd.f32 %v1494, %v2140
        %v2355 = vadd.f32 %v1499, %v2145
        %v2356 = vadd.f32 %v1504, %v2150
        %v2357 = vadd.f32 %v1509, %v2155
        %v2358 = vadd.f32 %v1514, %v2160
        %v2359 = vadd.f32 %v1519, %v2165
        %v2360 = vadd.f32 %v1524, %v2170
        %v2361 = vadd.f32 %v1529, %v2175
        %v2362 = vadd.f32 %v1534, %v2180
        %v2363 = vadd.f32 %v1539, %v2185
        %v2364 = vadd.f32 %v1544, %v2190
        %v2365 = vadd.f32 %v1549, %v2195
        %v2366 = vadd.f32 %v1554, %v2200
        %v2367 = vadd.f32 %v1559, %v2205
        %v2368 = vadd.f32 %v1564, %v2210
        %v2369 = vadd.f32 %v1569, %v2215
        %v2370 = vadd.f32 %v1574, %v2220
        %v2371 = vadd.f32 %v1579, %v2225
        %v2372 = vadd.f32 %v1584, %v2230
        %v2373 = vadd.f32 %v1589, %v2235
        %v2374 = vadd.f32 %v1594, %v2240
        %v2375 = vadd.f32 %v1599, %v2245
        %v2376 = vadd.f32 %v1604, %v2250
        %v2377 = vadd.f32 %v1609, %v2255
        %v2378 = vadd.f32 %v1614, %v2260
        %v2379 = vadd.f32 %v1619, %v2265
        %v2380 = vadd.f32 %v1624, %v2270
        %v2381 = vadd.f32 %v1629, %v2275
        %v2382 = vadd.f32 %v1634, %v2280
        %v2383 = vadd.f32 %v1639, %v2285
        %v2384 = vadd.f32 %v1644, %v2290
        %v2385 = vadd.f32 %v1649, %v2295
        %v2386 = vadd.f32 %v1654, %v2300
        %v2387 = vadd.f32 %v1659, %v2305
        %v2388 = vadd.f32 %v1664, %v2310
        %v2389 = vadd.f32 %v1669, %v2315
        %v2390 = vadd.f32 %v1674, %v2320
        %v2391 = vadd.f32 %v1679, %v2325
        %v2392 = vld [vmem:[%s338] sm:$0xff]
        %v2393 = vld [vmem:[%s338 + $0x8] sm:$0xff]
        %v2394 = vld [vmem:[%s338 + $0x10] sm:$0xff]
        %v2395 = vld [vmem:[%s338 + $0x18] sm:$0xff]
        %v2396 = vld [vmem:[%s338 + $0x20] sm:$0xff]
        %v2397 = vld [vmem:[%s338 + $0x28] sm:$0xff]
        %v2398 = vld [vmem:[%s338 + $0x30] sm:$0xff]
        %v2399 = vld [vmem:[%s338 + $0x38] sm:$0xff]
        %v2400 = vld [vmem:[%s338 + $0x40] sm:$0xff]
        %v2401 = vld [vmem:[%s338 + $0x48] sm:$0xff]
        %v2402 = vld [vmem:[%s338 + $0x50] sm:$0xff]
        %v2403 = vld [vmem:[%s338 + $0x58] sm:$0xff]
        %v2404 = vld [vmem:[%s338 + $0x60] sm:$0xff]
        %v2405 = vld [vmem:[%s338 + $0x68] sm:$0xff]
        %v2406 = vld [vmem:[%s338 + $0x70] sm:$0xff]
        %v2407 = vld [vmem:[%s338 + $0x78] sm:$0xff]
        %v2408 = vld [vmem:[%s338 + $0x80] sm:$0xff]
        %v2409 = vld [vmem:[%s338 + $0x88] sm:$0xff]
        %v2410 = vld [vmem:[%s338 + $0x90] sm:$0xff]
        %v2411 = vld [vmem:[%s338 + $0x98] sm:$0xff]
        %v2412 = vld [vmem:[%s338 + $0xa0] sm:$0xff]
        %v2413 = vld [vmem:[%s338 + $0xa8] sm:$0xff]
        %v2414 = vld [vmem:[%s338 + $0xb0] sm:$0xff]
        %v2415 = vld [vmem:[%s338 + $0xb8] sm:$0xff]
        %v2416 = vld [vmem:[%s338 + $0xc0] sm:$0xff]
        %v2417 = vld [vmem:[%s338 + $0xc8] sm:$0xff]
        %v2418 = vld [vmem:[%s338 + $0xd0] sm:$0xff]
        %v2419 = vld [vmem:[%s338 + $0xd8] sm:$0xff]
        %v2420 = vld [vmem:[%s338 + $0xe0] sm:$0xff]
        %v2421 = vld [vmem:[%s338 + $0xe8] sm:$0xff]
        %v2422 = vld [vmem:[%s338 + $0xf0] sm:$0xff]
        %v2423 = vld [vmem:[%s338 + $0xf8] sm:$0xff]
        %v2424 = vld [vmem:[%s338 + $0x100] sm:$0xff]
        %v2425 = vld [vmem:[%s338 + $0x108] sm:$0xff]
        %v2426 = vld [vmem:[%s338 + $0x110] sm:$0xff]
        %v2427 = vld [vmem:[%s338 + $0x118] sm:$0xff]
        %v2428 = vld [vmem:[%s338 + $0x120] sm:$0xff]
        %v2429 = vld [vmem:[%s338 + $0x128] sm:$0xff]
        %v2430 = vld [vmem:[%s338 + $0x130] sm:$0xff]
        %v2431 = vld [vmem:[%s338 + $0x138] sm:$0xff]
        %v2432 = vld [vmem:[%s338 + $0x140] sm:$0xff]
        %v2433 = vld [vmem:[%s338 + $0x148] sm:$0xff]
        %v2434 = vld [vmem:[%s338 + $0x150] sm:$0xff]
        %v2435 = vld [vmem:[%s338 + $0x158] sm:$0xff]
        %v2436 = vld [vmem:[%s338 + $0x160] sm:$0xff]
        %v2437 = vld [vmem:[%s338 + $0x168] sm:$0xff]
        %v2438 = vld [vmem:[%s338 + $0x170] sm:$0xff]
        %v2439 = vld [vmem:[%s338 + $0x178] sm:$0xff]
        %v2440 = vld [vmem:[%s338 + $0x180] sm:$0xff]
        %v2441 = vld [vmem:[%s338 + $0x188] sm:$0xff]
        %v2442 = vld [vmem:[%s338 + $0x190] sm:$0xff]
        %v2443 = vld [vmem:[%s338 + $0x198] sm:$0xff]
        %v2444 = vld [vmem:[%s338 + $0x1a0] sm:$0xff]
        %v2445 = vld [vmem:[%s338 + $0x1a8] sm:$0xff]
        %v2446 = vld [vmem:[%s338 + $0x1b0] sm:$0xff]
        %v2447 = vld [vmem:[%s338 + $0x1b8] sm:$0xff]
        %v2448 = vld [vmem:[%s338 + $0x1c0] sm:$0xff]
        %v2449 = vld [vmem:[%s338 + $0x1c8] sm:$0xff]
        %v2450 = vld [vmem:[%s338 + $0x1d0] sm:$0xff]
        %v2451 = vld [vmem:[%s338 + $0x1d8] sm:$0xff]
        %v2452 = vld [vmem:[%s338 + $0x1e0] sm:$0xff]
        %v2453 = vld [vmem:[%s338 + $0x1e8] sm:$0xff]
        %v2454 = vld [vmem:[%s338 + $0x1f0] sm:$0xff]
        %v2455 = vld [vmem:[%s338 + $0x1f8] sm:$0xff]
        %v2456 = vld [vmem:[#allocation8] sm:$0xff]
        %v2457 = vld [vmem:[#allocation8 + $0x8] sm:$0xff]
        %v2458 = vld [vmem:[#allocation10] sm:$0x1]
        %v2460 = vlaneseq
        %v2461 = vshrl.u32 %v2460, 7
        %v2462 = vsub.s32 0, %v2461
        %v2463 = vrot.slane %v2458, %v2462
        %vm2465 = vcmask 130048
        %v2467 = vsel %vm2465, %v2392, 0
        %v2470 = vsel %vm2465, %v2393, 0
        %v2473 = vsel %vm2465, %v2394, 0
        %v2476 = vsel %vm2465, %v2395, 0
        %v2479 = vsel %vm2465, %v2396, 0
        %v2482 = vsel %vm2465, %v2397, 0
        %v2485 = vsel %vm2465, %v2398, 0
        %v2488 = vsel %vm2465, %v2399, 0
        %v2491 = vsel %vm2465, %v2400, 0
        %v2494 = vsel %vm2465, %v2401, 0
        %v2497 = vsel %vm2465, %v2402, 0
        %v2500 = vsel %vm2465, %v2403, 0
        %v2503 = vsel %vm2465, %v2404, 0
        %v2506 = vsel %vm2465, %v2405, 0
        %v2509 = vsel %vm2465, %v2406, 0
        %v2512 = vsel %vm2465, %v2407, 0
        %v2515 = vsel %vm2465, %v2408, 0
        %v2518 = vsel %vm2465, %v2409, 0
        %v2521 = vsel %vm2465, %v2410, 0
        %v2524 = vsel %vm2465, %v2411, 0
        %v2527 = vsel %vm2465, %v2412, 0
        %v2530 = vsel %vm2465, %v2413, 0
        %v2533 = vsel %vm2465, %v2414, 0
        %v2536 = vsel %vm2465, %v2415, 0
        %v2539 = vsel %vm2465, %v2416, 0
        %v2542 = vsel %vm2465, %v2417, 0
        %v2545 = vsel %vm2465, %v2418, 0
        %v2548 = vsel %vm2465, %v2419, 0
        %v2551 = vsel %vm2465, %v2420, 0
        %v2554 = vsel %vm2465, %v2421, 0
        %v2557 = vsel %vm2465, %v2422, 0
        %v2560 = vsel %vm2465, %v2423, 0
        %v2563 = vsel %vm2465, %v2424, 0
        %v2566 = vsel %vm2465, %v2425, 0
        %v2569 = vsel %vm2465, %v2426, 0
        %v2572 = vsel %vm2465, %v2427, 0
        %v2575 = vsel %vm2465, %v2428, 0
        %v2578 = vsel %vm2465, %v2429, 0
        %v2581 = vsel %vm2465, %v2430, 0
        %v2584 = vsel %vm2465, %v2431, 0
        %v2587 = vsel %vm2465, %v2432, 0
        %v2590 = vsel %vm2465, %v2433, 0
        %v2593 = vsel %vm2465, %v2434, 0
        %v2596 = vsel %vm2465, %v2435, 0
        %v2599 = vsel %vm2465, %v2436, 0
        %v2602 = vsel %vm2465, %v2437, 0
        %v2605 = vsel %vm2465, %v2438, 0
        %v2608 = vsel %vm2465, %v2439, 0
        %v2611 = vsel %vm2465, %v2440, 0
        %v2614 = vsel %vm2465, %v2441, 0
        %v2617 = vsel %vm2465, %v2442, 0
        %v2620 = vsel %vm2465, %v2443, 0
        %v2623 = vsel %vm2465, %v2444, 0
        %v2626 = vsel %vm2465, %v2445, 0
        %v2629 = vsel %vm2465, %v2446, 0
        %v2632 = vsel %vm2465, %v2447, 0
        %v2635 = vsel %vm2465, %v2448, 0
        %v2638 = vsel %vm2465, %v2449, 0
        %v2641 = vsel %vm2465, %v2450, 0
        %v2644 = vsel %vm2465, %v2451, 0
        %v2647 = vsel %vm2465, %v2452, 0
        %v2650 = vsel %vm2465, %v2453, 0
        %v2653 = vsel %vm2465, %v2454, 0
        %v2656 = vsel %vm2465, %v2455, 0
        %2658 = vmatprep.subr.mxu0 0.0
        %2659 = vmatpush1.msra.mxu0 %v2456
        %2660 = vmatprep.subr.mxu0 0.0
        %2661 = vmatpush1.msra.mxu0 %v2457
        %2662 = vmatprep.subr.mxu0 0.0
        %2663 = vmatpush1.msra.mxu0 0.0
        %2664 = vmatprep.subr.mxu0 0.0
        %2665 = vmatpush1.msra.mxu0 0.0
        %2666 = vmatprep.subr.mxu0 0.0
        %2667 = vmatpush1.msra.mxu0 0.0
        %2668 = vmatprep.subr.mxu0 0.0
        %2669 = vmatpush1.msra.mxu0 0.0
        %2670 = vmatprep.subr.mxu0 0.0
        %2671 = vmatpush1.msra.mxu0 0.0
        %2672 = vmatprep.subr.mxu0 0.0
        %2673 = vmatpush1.msra.mxu0 0.0
        %2674 = vmatprep.subr.mxu0 0.0
        %2675 = vmatpush1.msra.mxu0 0.0
        %2676 = vmatprep.subr.mxu0 0.0
        %2677 = vmatpush1.msra.mxu0 0.0
        %2678 = vmatprep.subr.mxu0 0.0
        %2679 = vmatpush1.msra.mxu0 0.0
        %2680 = vmatprep.subr.mxu0 0.0
        %2681 = vmatpush1.msra.mxu0 0.0
        %2682 = vmatprep.subr.mxu0 0.0
        %2683 = vmatpush1.msra.mxu0 0.0
        %2684 = vmatprep.subr.mxu0 0.0
        %2685 = vmatpush1.msra.mxu0 0.0
        %2686 = vmatprep.subr.mxu0 0.0
        %2687 = vmatpush1.msra.mxu0 0.0
        %2688 = vmatprep.subr.mxu0 0.0
        %2689 = vmatpush1.msra.mxu0 0.0
        %2690 = vmatprep.subr.mxu0 0.0
        %2691 = vmatpush1.msra.mxu0 0.0
        %2692 = vmatprep.subr.mxu0 0.0
        %2693 = vmatpush1.msra.mxu0 0.0
        %2694 = vmatprep.subr.mxu0 0.0
        %2695 = vmatpush1.msra.mxu0 0.0
        %2696 = vmatprep.subr.mxu0 0.0
        %2697 = vmatpush1.msra.mxu0 0.0
        %2698 = vmatprep.subr.mxu0 0.0
        %2699 = vmatpush1.msra.mxu0 0.0
        %2700 = vmatprep.subr.mxu0 0.0
        %2701 = vmatpush1.msra.mxu0 0.0
        %2702 = vmatprep.subr.mxu0 0.0
        %2703 = vmatpush1.msra.mxu0 0.0
        %2704 = vmatprep.subr.mxu0 0.0
        %2705 = vmatpush1.msra.mxu0 0.0
        %2706 = vmatprep.subr.mxu0 0.0
        %2707 = vmatpush1.msra.mxu0 0.0
        %2708 = vmatprep.subr.mxu0 0.0
        %2709 = vmatpush1.msra.mxu0 0.0
        %2710 = vmatprep.subr.mxu0 0.0
        %2711 = vmatpush1.msra.mxu0 0.0
        %2712 = vmatprep.subr.mxu0 0.0
        %2713 = vmatpush1.msra.mxu0 0.0
        %2714 = vmatprep.subr.mxu0 0.0
        %2715 = vmatpush1.msra.mxu0 0.0
        %2716 = vmatprep.subr.mxu0 0.0
        %2717 = vmatpush1.msra.mxu0 0.0
        %2718 = vmatprep.subr.mxu0 0.0
        %2719 = vmatpush1.msra.mxu0 0.0
        %2720 = vmatprep.subr.mxu0 0.0
        %2721 = vmatpush1.msra.mxu0 0.0
        %2722 = vmatprep.mubr.f32.mxu0 0.0
        %2723 = vmatmul.mubr.f32.gmra.mrb[0].mxu0 %v2467
        %v2724 = vpop.f32.mrb[0].mxu0
        %v2725 = vadd.f32 %v2463, %v2724
        %v2726 = vpop.f32.mrb[0].mxu0
        %2727 = vmatprep.mubr.f32.mxu0 0.0
        %2728 = vmatmul.mubr.f32.gmra.mrb[0].mxu0 %v2470
        %v2729 = vpop.f32.mrb[0].mxu0
        %v2730 = vadd.f32 %v2463, %v2729
        %v2731 = vpop.f32.mrb[0].mxu0
        %2732 = vmatprep.mubr.f32.mxu0 0.0
        %2733 = vmatmul.mubr.f32.gmra.mrb[0].mxu0 %v2473
        %v2734 = vpop.f32.mrb[0].mxu0
        %v2735 = vadd.f32 %v2463, %v2734
        %v2736 = vpop.f32.mrb[0].mxu0
        %2737 = vmatprep.mubr.f32.mxu0 0.0
        %2738 = vmatmul.mubr.f32.gmra.mrb[0].mxu0 %v2476
        %v2739 = vpop.f32.mrb[0].mxu0
        %v2740 = vadd.f32 %v2463, %v2739
        %v2741 = vpop.f32.mrb[0].mxu0
        %2742 = vmatprep.mubr.f32.mxu0 0.0
        %2743 = vmatmul.mubr.f32.gmra.mrb[0].mxu0 %v2479
        %v2744 = vpop.f32.mrb[0].mxu0
        %v2745 = vadd.f32 %v2463, %v2744
        %v2746 = vpop.f32.mrb[0].mxu0
        %2747 = vmatprep.mubr.f32.mxu0 0.0
        %2748 = vmatmul.mubr.f32.gmra.mrb[0].mxu0 %v2482
        %v2749 = vpop.f32.mrb[0].mxu0
        %v2750 = vadd.f32 %v2463, %v2749
        %v2751 = vpop.f32.mrb[0].mxu0
        %2752 = vmatprep.mubr.f32.mxu0 0.0
        %2753 = vmatmul.mubr.f32.gmra.mrb[0].mxu0 %v2485
        %v2754 = vpop.f32.mrb[0].mxu0
        %v2755 = vadd.f32 %v2463, %v2754
        %v2756 = vpop.f32.mrb[0].mxu0
        %2757 = vmatprep.mubr.f32.mxu0 0.0
        %2758 = vmatmul.mubr.f32.gmra.mrb[0].mxu0 %v2488
        %v2759 = vpop.f32.mrb[0].mxu0
        %v2760 = vadd.f32 %v2463, %v2759
        %v2761 = vpop.f32.mrb[0].mxu0
        %2762 = vmatprep.mubr.f32.mxu0 0.0
        %2763 = vmatmul.mubr.f32.gmra.mrb[0].mxu0 %v2491
        %v2764 = vpop.f32.mrb[0].mxu0
        %v2765 = vadd.f32 %v2463, %v2764
        %v2766 = vpop.f32.mrb[0].mxu0
        %2767 = vmatprep.mubr.f32.mxu0 0.0
        %2768 = vmatmul.mubr.f32.gmra.mrb[0].mxu0 %v2494
        %v2769 = vpop.f32.mrb[0].mxu0
        %v2770 = vadd.f32 %v2463, %v2769
        %v2771 = vpop.f32.mrb[0].mxu0
        %2772 = vmatprep.mubr.f32.mxu0 0.0
        %2773 = vmatmul.mubr.f32.gmra.mrb[0].mxu0 %v2497
        %v2774 = vpop.f32.mrb[0].mxu0
        %v2775 = vadd.f32 %v2463, %v2774
        %v2776 = vpop.f32.mrb[0].mxu0
        %2777 = vmatprep.mubr.f32.mxu0 0.0
        %2778 = vmatmul.mubr.f32.gmra.mrb[0].mxu0 %v2500
        %v2779 = vpop.f32.mrb[0].mxu0
        %v2780 = vadd.f32 %v2463, %v2779
        %v2781 = vpop.f32.mrb[0].mxu0
        %2782 = vmatprep.mubr.f32.mxu0 0.0
        %2783 = vmatmul.mubr.f32.gmra.mrb[0].mxu0 %v2503
        %v2784 = vpop.f32.mrb[0].mxu0
        %v2785 = vadd.f32 %v2463, %v2784
        %v2786 = vpop.f32.mrb[0].mxu0
        %2787 = vmatprep.mubr.f32.mxu0 0.0
        %2788 = vmatmul.mubr.f32.gmra.mrb[0].mxu0 %v2506
        %v2789 = vpop.f32.mrb[0].mxu0
        %v2790 = vadd.f32 %v2463, %v2789
        %v2791 = vpop.f32.mrb[0].mxu0
        %2792 = vmatprep.mubr.f32.mxu0 0.0
        %2793 = vmatmul.mubr.f32.gmra.mrb[0].mxu0 %v2509
        %v2794 = vpop.f32.mrb[0].mxu0
        %v2795 = vadd.f32 %v2463, %v2794
        %v2796 = vpop.f32.mrb[0].mxu0
        %2797 = vmatprep.mubr.f32.mxu0 0.0
        %2798 = vmatmul.mubr.f32.gmra.mrb[0].mxu0 %v2512
        %v2799 = vpop.f32.mrb[0].mxu0
        %v2800 = vadd.f32 %v2463, %v2799
        %v2801 = vpop.f32.mrb[0].mxu0
        %2802 = vmatprep.mubr.f32.mxu0 0.0
        %2803 = vmatmul.mubr.f32.gmra.mrb[0].mxu0 %v2515
        %v2804 = vpop.f32.mrb[0].mxu0
        %v2805 = vadd.f32 %v2463, %v2804
        %v2806 = vpop.f32.mrb[0].mxu0
        %2807 = vmatprep.mubr.f32.mxu0 0.0
        %2808 = vmatmul.mubr.f32.gmra.mrb[0].mxu0 %v2518
        %v2809 = vpop.f32.mrb[0].mxu0
        %v2810 = vadd.f32 %v2463, %v2809
        %v2811 = vpop.f32.mrb[0].mxu0
        %2812 = vmatprep.mubr.f32.mxu0 0.0
        %2813 = vmatmul.mubr.f32.gmra.mrb[0].mxu0 %v2521
        %v2814 = vpop.f32.mrb[0].mxu0
        %v2815 = vadd.f32 %v2463, %v2814
        %v2816 = vpop.f32.mrb[0].mxu0
        %2817 = vmatprep.mubr.f32.mxu0 0.0
        %2818 = vmatmul.mubr.f32.gmra.mrb[0].mxu0 %v2524
        %v2819 = vpop.f32.mrb[0].mxu0
        %v2820 = vadd.f32 %v2463, %v2819
        %v2821 = vpop.f32.mrb[0].mxu0
        %2822 = vmatprep.mubr.f32.mxu0 0.0
        %2823 = vmatmul.mubr.f32.gmra.mrb[0].mxu0 %v2527
        %v2824 = vpop.f32.mrb[0].mxu0
        %v2825 = vadd.f32 %v2463, %v2824
        %v2826 = vpop.f32.mrb[0].mxu0
        %2827 = vmatprep.mubr.f32.mxu0 0.0
        %2828 = vmatmul.mubr.f32.gmra.mrb[0].mxu0 %v2530
        %v2829 = vpop.f32.mrb[0].mxu0
        %v2830 = vadd.f32 %v2463, %v2829
        %v2831 = vpop.f32.mrb[0].mxu0
        %2832 = vmatprep.mubr.f32.mxu0 0.0
        %2833 = vmatmul.mubr.f32.gmra.mrb[0].mxu0 %v2533
        %v2834 = vpop.f32.mrb[0].mxu0
        %v2835 = vadd.f32 %v2463, %v2834
        %v2836 = vpop.f32.mrb[0].mxu0
        %2837 = vmatprep.mubr.f32.mxu0 0.0
        %2838 = vmatmul.mubr.f32.gmra.mrb[0].mxu0 %v2536
        %v2839 = vpop.f32.mrb[0].mxu0
        %v2840 = vadd.f32 %v2463, %v2839
        %v2841 = vpop.f32.mrb[0].mxu0
        %2842 = vmatprep.mubr.f32.mxu0 0.0
        %2843 = vmatmul.mubr.f32.gmra.mrb[0].mxu0 %v2539
        %v2844 = vpop.f32.mrb[0].mxu0
        %v2845 = vadd.f32 %v2463, %v2844
        %v2846 = vpop.f32.mrb[0].mxu0
        %2847 = vmatprep.mubr.f32.mxu0 0.0
        %2848 = vmatmul.mubr.f32.gmra.mrb[0].mxu0 %v2542
        %v2849 = vpop.f32.mrb[0].mxu0
        %v2850 = vadd.f32 %v2463, %v2849
        %v2851 = vpop.f32.mrb[0].mxu0
        %2852 = vmatprep.mubr.f32.mxu0 0.0
        %2853 = vmatmul.mubr.f32.gmra.mrb[0].mxu0 %v2545
        %v2854 = vpop.f32.mrb[0].mxu0
        %v2855 = vadd.f32 %v2463, %v2854
        %v2856 = vpop.f32.mrb[0].mxu0
        %2857 = vmatprep.mubr.f32.mxu0 0.0
        %2858 = vmatmul.mubr.f32.gmra.mrb[0].mxu0 %v2548
        %v2859 = vpop.f32.mrb[0].mxu0
        %v2860 = vadd.f32 %v2463, %v2859
        %v2861 = vpop.f32.mrb[0].mxu0
        %2862 = vmatprep.mubr.f32.mxu0 0.0
        %2863 = vmatmul.mubr.f32.gmra.mrb[0].mxu0 %v2551
        %v2864 = vpop.f32.mrb[0].mxu0
        %v2865 = vadd.f32 %v2463, %v2864
        %v2866 = vpop.f32.mrb[0].mxu0
        %2867 = vmatprep.mubr.f32.mxu0 0.0
        %2868 = vmatmul.mubr.f32.gmra.mrb[0].mxu0 %v2554
        %v2869 = vpop.f32.mrb[0].mxu0
        %v2870 = vadd.f32 %v2463, %v2869
        %v2871 = vpop.f32.mrb[0].mxu0
        %2872 = vmatprep.mubr.f32.mxu0 0.0
        %2873 = vmatmul.mubr.f32.gmra.mrb[0].mxu0 %v2557
        %v2874 = vpop.f32.mrb[0].mxu0
        %v2875 = vadd.f32 %v2463, %v2874
        %v2876 = vpop.f32.mrb[0].mxu0
        %2877 = vmatprep.mubr.f32.mxu0 0.0
        %2878 = vmatmul.mubr.f32.gmra.mrb[0].mxu0 %v2560
        %v2879 = vpop.f32.mrb[0].mxu0
        %v2880 = vadd.f32 %v2463, %v2879
        %v2881 = vpop.f32.mrb[0].mxu0
        %2882 = vmatprep.mubr.f32.mxu0 0.0
        %2883 = vmatmul.mubr.f32.gmra.mrb[0].mxu0 %v2563
        %v2884 = vpop.f32.mrb[0].mxu0
        %v2885 = vadd.f32 %v2463, %v2884
        %v2886 = vpop.f32.mrb[0].mxu0
        %2887 = vmatprep.mubr.f32.mxu0 0.0
        %2888 = vmatmul.mubr.f32.gmra.mrb[0].mxu0 %v2566
        %v2889 = vpop.f32.mrb[0].mxu0
        %v2890 = vadd.f32 %v2463, %v2889
        %v2891 = vpop.f32.mrb[0].mxu0
        %2892 = vmatprep.mubr.f32.mxu0 0.0
        %2893 = vmatmul.mubr.f32.gmra.mrb[0].mxu0 %v2569
        %v2894 = vpop.f32.mrb[0].mxu0
        %v2895 = vadd.f32 %v2463, %v2894
        %v2896 = vpop.f32.mrb[0].mxu0
        %2897 = vmatprep.mubr.f32.mxu0 0.0
        %2898 = vmatmul.mubr.f32.gmra.mrb[0].mxu0 %v2572
        %v2899 = vpop.f32.mrb[0].mxu0
        %v2900 = vadd.f32 %v2463, %v2899
        %v2901 = vpop.f32.mrb[0].mxu0
        %2902 = vmatprep.mubr.f32.mxu0 0.0
        %2903 = vmatmul.mubr.f32.gmra.mrb[0].mxu0 %v2575
        %v2904 = vpop.f32.mrb[0].mxu0
        %v2905 = vadd.f32 %v2463, %v2904
        %v2906 = vpop.f32.mrb[0].mxu0
        %2907 = vmatprep.mubr.f32.mxu0 0.0
        %2908 = vmatmul.mubr.f32.gmra.mrb[0].mxu0 %v2578
        %v2909 = vpop.f32.mrb[0].mxu0
        %v2910 = vadd.f32 %v2463, %v2909
        %v2911 = vpop.f32.mrb[0].mxu0
        %2912 = vmatprep.mubr.f32.mxu0 0.0
        %2913 = vmatmul.mubr.f32.gmra.mrb[0].mxu0 %v2581
        %v2914 = vpop.f32.mrb[0].mxu0
        %v2915 = vadd.f32 %v2463, %v2914
        %v2916 = vpop.f32.mrb[0].mxu0
        %2917 = vmatprep.mubr.f32.mxu0 0.0
        %2918 = vmatmul.mubr.f32.gmra.mrb[0].mxu0 %v2584
        %v2919 = vpop.f32.mrb[0].mxu0
        %v2920 = vadd.f32 %v2463, %v2919
        %v2921 = vpop.f32.mrb[0].mxu0
        %2922 = vmatprep.mubr.f32.mxu0 0.0
        %2923 = vmatmul.mubr.f32.gmra.mrb[0].mxu0 %v2587
        %v2924 = vpop.f32.mrb[0].mxu0
        %v2925 = vadd.f32 %v2463, %v2924
        %v2926 = vpop.f32.mrb[0].mxu0
        %2927 = vmatprep.mubr.f32.mxu0 0.0
        %2928 = vmatmul.mubr.f32.gmra.mrb[0].mxu0 %v2590
        %v2929 = vpop.f32.mrb[0].mxu0
        %v2930 = vadd.f32 %v2463, %v2929
        %v2931 = vpop.f32.mrb[0].mxu0
        %2932 = vmatprep.mubr.f32.mxu0 0.0
        %2933 = vmatmul.mubr.f32.gmra.mrb[0].mxu0 %v2593
        %v2934 = vpop.f32.mrb[0].mxu0
        %v2935 = vadd.f32 %v2463, %v2934
        %v2936 = vpop.f32.mrb[0].mxu0
        %2937 = vmatprep.mubr.f32.mxu0 0.0
        %2938 = vmatmul.mubr.f32.gmra.mrb[0].mxu0 %v2596
        %v2939 = vpop.f32.mrb[0].mxu0
        %v2940 = vadd.f32 %v2463, %v2939
        %v2941 = vpop.f32.mrb[0].mxu0
        %2942 = vmatprep.mubr.f32.mxu0 0.0
        %2943 = vmatmul.mubr.f32.gmra.mrb[0].mxu0 %v2599
        %v2944 = vpop.f32.mrb[0].mxu0
        %v2945 = vadd.f32 %v2463, %v2944
        %v2946 = vpop.f32.mrb[0].mxu0
        %2947 = vmatprep.mubr.f32.mxu0 0.0
        %2948 = vmatmul.mubr.f32.gmra.mrb[0].mxu0 %v2602
        %v2949 = vpop.f32.mrb[0].mxu0
        %v2950 = vadd.f32 %v2463, %v2949
        %v2951 = vpop.f32.mrb[0].mxu0
        %2952 = vmatprep.mubr.f32.mxu0 0.0
        %2953 = vmatmul.mubr.f32.gmra.mrb[0].mxu0 %v2605
        %v2954 = vpop.f32.mrb[0].mxu0
        %v2955 = vadd.f32 %v2463, %v2954
        %v2956 = vpop.f32.mrb[0].mxu0
        %2957 = vmatprep.mubr.f32.mxu0 0.0
        %2958 = vmatmul.mubr.f32.gmra.mrb[0].mxu0 %v2608
        %v2959 = vpop.f32.mrb[0].mxu0
        %v2960 = vadd.f32 %v2463, %v2959
        %v2961 = vpop.f32.mrb[0].mxu0
        %2962 = vmatprep.mubr.f32.mxu0 0.0
        %2963 = vmatmul.mubr.f32.gmra.mrb[0].mxu0 %v2611
        %v2964 = vpop.f32.mrb[0].mxu0
        %v2965 = vadd.f32 %v2463, %v2964
        %v2966 = vpop.f32.mrb[0].mxu0
        %2967 = vmatprep.mubr.f32.mxu0 0.0
        %2968 = vmatmul.mubr.f32.gmra.mrb[0].mxu0 %v2614
        %v2969 = vpop.f32.mrb[0].mxu0
        %v2970 = vadd.f32 %v2463, %v2969
        %v2971 = vpop.f32.mrb[0].mxu0
        %2972 = vmatprep.mubr.f32.mxu0 0.0
        %2973 = vmatmul.mubr.f32.gmra.mrb[0].mxu0 %v2617
        %v2974 = vpop.f32.mrb[0].mxu0
        %v2975 = vadd.f32 %v2463, %v2974
        %v2976 = vpop.f32.mrb[0].mxu0
        %2977 = vmatprep.mubr.f32.mxu0 0.0
        %2978 = vmatmul.mubr.f32.gmra.mrb[0].mxu0 %v2620
        %v2979 = vpop.f32.mrb[0].mxu0
        %v2980 = vadd.f32 %v2463, %v2979
        %v2981 = vpop.f32.mrb[0].mxu0
        %2982 = vmatprep.mubr.f32.mxu0 0.0
        %2983 = vmatmul.mubr.f32.gmra.mrb[0].mxu0 %v2623
        %v2984 = vpop.f32.mrb[0].mxu0
        %v2985 = vadd.f32 %v2463, %v2984
        %v2986 = vpop.f32.mrb[0].mxu0
        %2987 = vmatprep.mubr.f32.mxu0 0.0
        %2988 = vmatmul.mubr.f32.gmra.mrb[0].mxu0 %v2626
        %v2989 = vpop.f32.mrb[0].mxu0
        %v2990 = vadd.f32 %v2463, %v2989
        %v2991 = vpop.f32.mrb[0].mxu0
        %2992 = vmatprep.mubr.f32.mxu0 0.0
        %2993 = vmatmul.mubr.f32.gmra.mrb[0].mxu0 %v2629
        %v2994 = vpop.f32.mrb[0].mxu0
        %v2995 = vadd.f32 %v2463, %v2994
        %v2996 = vpop.f32.mrb[0].mxu0
        %2997 = vmatprep.mubr.f32.mxu0 0.0
        %2998 = vmatmul.mubr.f32.gmra.mrb[0].mxu0 %v2632
        %v2999 = vpop.f32.mrb[0].mxu0
        %v3000 = vadd.f32 %v2463, %v2999
        %v3001 = vpop.f32.mrb[0].mxu0
        %3002 = vmatprep.mubr.f32.mxu0 0.0
        %3003 = vmatmul.mubr.f32.gmra.mrb[0].mxu0 %v2635
        %v3004 = vpop.f32.mrb[0].mxu0
        %v3005 = vadd.f32 %v2463, %v3004
        %v3006 = vpop.f32.mrb[0].mxu0
        %3007 = vmatprep.mubr.f32.mxu0 0.0
        %3008 = vmatmul.mubr.f32.gmra.mrb[0].mxu0 %v2638
        %v3009 = vpop.f32.mrb[0].mxu0
        %v3010 = vadd.f32 %v2463, %v3009
        %v3011 = vpop.f32.mrb[0].mxu0
        %3012 = vmatprep.mubr.f32.mxu0 0.0
        %3013 = vmatmul.mubr.f32.gmra.mrb[0].mxu0 %v2641
        %v3014 = vpop.f32.mrb[0].mxu0
        %v3015 = vadd.f32 %v2463, %v3014
        %v3016 = vpop.f32.mrb[0].mxu0
        %3017 = vmatprep.mubr.f32.mxu0 0.0
        %3018 = vmatmul.mubr.f32.gmra.mrb[0].mxu0 %v2644
        %v3019 = vpop.f32.mrb[0].mxu0
        %v3020 = vadd.f32 %v2463, %v3019
        %v3021 = vpop.f32.mrb[0].mxu0
        %3022 = vmatprep.mubr.f32.mxu0 0.0
        %3023 = vmatmul.mubr.f32.gmra.mrb[0].mxu0 %v2647
        %v3024 = vpop.f32.mrb[0].mxu0
        %v3025 = vadd.f32 %v2463, %v3024
        %v3026 = vpop.f32.mrb[0].mxu0
        %3027 = vmatprep.mubr.f32.mxu0 0.0
        %3028 = vmatmul.mubr.f32.gmra.mrb[0].mxu0 %v2650
        %v3029 = vpop.f32.mrb[0].mxu0
        %v3030 = vadd.f32 %v2463, %v3029
        %v3031 = vpop.f32.mrb[0].mxu0
        %3032 = vmatprep.mubr.f32.mxu0 0.0
        %3033 = vmatmul.mubr.f32.gmra.mrb[0].mxu0 %v2653
        %v3034 = vpop.f32.mrb[0].mxu0
        %v3035 = vadd.f32 %v2463, %v3034
        %v3036 = vpop.f32.mrb[0].mxu0
        %3037 = vmatprep.mubr.f32.mxu0 0.0
        %3038 = vmatmul.mubr.f32.gmra.mrb[0].mxu0 %v2656
        %v3039 = vpop.f32.mrb[0].mxu0
        %v3040 = vadd.f32 %v2463, %v3039
        %v3041 = vpop.f32.mrb[0].mxu0
        %3042 = vdwg.mxu0
        %v3043 = vmul.f32 %v2725, %v2328
        %v3044 = vmul.f32 %v2730, %v2329
        %v3045 = vmul.f32 %v2735, %v2330
        %v3046 = vmul.f32 %v2740, %v2331
        %v3047 = vmul.f32 %v2745, %v2332
        %v3048 = vmul.f32 %v2750, %v2333
        %v3049 = vmul.f32 %v2755, %v2334
        %v3050 = vmul.f32 %v2760, %v2335
        %v3051 = vmul.f32 %v2765, %v2336
        %v3052 = vmul.f32 %v2770, %v2337
        %v3053 = vmul.f32 %v2775, %v2338
        %v3054 = vmul.f32 %v2780, %v2339
        %v3055 = vmul.f32 %v2785, %v2340
        %v3056 = vmul.f32 %v2790, %v2341
        %v3057 = vmul.f32 %v2795, %v2342
        %v3058 = vmul.f32 %v2800, %v2343
        %v3059 = vmul.f32 %v2805, %v2344
        %v3060 = vmul.f32 %v2810, %v2345
        %v3061 = vmul.f32 %v2815, %v2346
        %v3062 = vmul.f32 %v2820, %v2347
        %v3063 = vmul.f32 %v2825, %v2348
        %v3064 = vmul.f32 %v2830, %v2349
        %v3065 = vmul.f32 %v2835, %v2350
        %v3066 = vmul.f32 %v2840, %v2351
        %v3067 = vmul.f32 %v2845, %v2352
        %v3068 = vmul.f32 %v2850, %v2353
        %v3069 = vmul.f32 %v2855, %v2354
        %v3070 = vmul.f32 %v2860, %v2355
        %v3071 = vmul.f32 %v2865, %v2356
        %v3072 = vmul.f32 %v2870, %v2357
        %v3073 = vmul.f32 %v2875, %v2358
        %v3074 = vmul.f32 %v2880, %v2359
        %v3075 = vmul.f32 %v2885, %v2360
        %v3076 = vmul.f32 %v2890, %v2361
        %v3077 = vmul.f32 %v2895, %v2362
        %v3078 = vmul.f32 %v2900, %v2363
        %v3079 = vmul.f32 %v2905, %v2364
        %v3080 = vmul.f32 %v2910, %v2365
        %v3081 = vmul.f32 %v2915, %v2366
        %v3082 = vmul.f32 %v2920, %v2367
        %v3083 = vmul.f32 %v2925, %v2368
        %v3084 = vmul.f32 %v2930, %v2369
        %v3085 = vmul.f32 %v2935, %v2370
        %v3086 = vmul.f32 %v2940, %v2371
        %v3087 = vmul.f32 %v2945, %v2372
        %v3088 = vmul.f32 %v2950, %v2373
        %v3089 = vmul.f32 %v2955, %v2374
        %v3090 = vmul.f32 %v2960, %v2375
        %v3091 = vmul.f32 %v2965, %v2376
        %v3092 = vmul.f32 %v2970, %v2377
        %v3093 = vmul.f32 %v2975, %v2378
        %v3094 = vmul.f32 %v2980, %v2379
        %v3095 = vmul.f32 %v2985, %v2380
        %v3096 = vmul.f32 %v2990, %v2381
        %v3097 = vmul.f32 %v2995, %v2382
        %v3098 = vmul.f32 %v3000, %v2383
        %v3099 = vmul.f32 %v3005, %v2384
        %v3100 = vmul.f32 %v3010, %v2385
        %v3101 = vmul.f32 %v3015, %v2386
        %v3102 = vmul.f32 %v3020, %v2387
        %v3103 = vmul.f32 %v3025, %v2388
        %v3104 = vmul.f32 %v3030, %v2389
        %v3105 = vmul.f32 %v3035, %v2390
        %v3106 = vmul.f32 %v3040, %v2391
        %v3107 = vld [vmem:[#allocation11] sm:$0xff]
        %v3108 = vld [vmem:[#allocation11 + $0x8] sm:$0xff]
        %v3109 = vld [vmem:[#allocation11 + $0x10] sm:$0xff]
        %v3110 = vld [vmem:[#allocation11 + $0x18] sm:$0xff]
        %v3111 = vld [vmem:[#allocation11 + $0x20] sm:$0xff]
        %v3112 = vld [vmem:[#allocation11 + $0x28] sm:$0xff]
        %v3113 = vld [vmem:[#allocation11 + $0x30] sm:$0xff]
        %v3114 = vld [vmem:[#allocation11 + $0x38] sm:$0xff]
        %vm3115 = vcmask 523264
        %v3117 = vsel %vm3115, %v3043, 0
        %v3120 = vsel %vm3115, %v3044, 0
        %v3123 = vsel %vm3115, %v3045, 0
        %v3126 = vsel %vm3115, %v3046, 0
        %v3129 = vsel %vm3115, %v3047, 0
        %v3132 = vsel %vm3115, %v3048, 0
        %v3135 = vsel %vm3115, %v3049, 0
        %v3138 = vsel %vm3115, %v3050, 0
        %v3141 = vsel %vm3115, %v3051, 0
        %v3144 = vsel %vm3115, %v3052, 0
        %v3147 = vsel %vm3115, %v3053, 0
        %v3150 = vsel %vm3115, %v3054, 0
        %v3153 = vsel %vm3115, %v3055, 0
        %v3156 = vsel %vm3115, %v3056, 0
        %v3159 = vsel %vm3115, %v3057, 0
        %v3162 = vsel %vm3115, %v3058, 0
        %v3165 = vsel %vm3115, %v3059, 0
        %v3168 = vsel %vm3115, %v3060, 0
        %v3171 = vsel %vm3115, %v3061, 0
        %v3174 = vsel %vm3115, %v3062, 0
        %v3177 = vsel %vm3115, %v3063, 0
        %v3180 = vsel %vm3115, %v3064, 0
        %v3183 = vsel %vm3115, %v3065, 0
        %v3186 = vsel %vm3115, %v3066, 0
        %v3189 = vsel %vm3115, %v3067, 0
        %v3192 = vsel %vm3115, %v3068, 0
        %v3195 = vsel %vm3115, %v3069, 0
        %v3198 = vsel %vm3115, %v3070, 0
        %v3201 = vsel %vm3115, %v3071, 0
        %v3204 = vsel %vm3115, %v3072, 0
        %v3207 = vsel %vm3115, %v3073, 0
        %v3210 = vsel %vm3115, %v3074, 0
        %v3213 = vsel %vm3115, %v3075, 0
        %v3216 = vsel %vm3115, %v3076, 0
        %v3219 = vsel %vm3115, %v3077, 0
        %v3222 = vsel %vm3115, %v3078, 0
        %v3225 = vsel %vm3115, %v3079, 0
        %v3228 = vsel %vm3115, %v3080, 0
        %v3231 = vsel %vm3115, %v3081, 0
        %v3234 = vsel %vm3115, %v3082, 0
        %v3237 = vsel %vm3115, %v3083, 0
        %v3240 = vsel %vm3115, %v3084, 0
        %v3243 = vsel %vm3115, %v3085, 0
        %v3246 = vsel %vm3115, %v3086, 0
        %v3249 = vsel %vm3115, %v3087, 0
        %v3252 = vsel %vm3115, %v3088, 0
        %v3255 = vsel %vm3115, %v3089, 0
        %v3258 = vsel %vm3115, %v3090, 0
        %v3261 = vsel %vm3115, %v3091, 0
        %v3264 = vsel %vm3115, %v3092, 0
        %v3267 = vsel %vm3115, %v3093, 0
        %v3270 = vsel %vm3115, %v3094, 0
        %v3273 = vsel %vm3115, %v3095, 0
        %v3276 = vsel %vm3115, %v3096, 0
        %v3279 = vsel %vm3115, %v3097, 0
        %v3282 = vsel %vm3115, %v3098, 0
        %v3285 = vsel %vm3115, %v3099, 0
        %v3288 = vsel %vm3115, %v3100, 0
        %v3291 = vsel %vm3115, %v3101, 0
        %v3294 = vsel %vm3115, %v3102, 0
        %v3297 = vsel %vm3115, %v3103, 0
        %v3300 = vsel %vm3115, %v3104, 0
        %v3303 = vsel %vm3115, %v3105, 0
        %v3306 = vsel %vm3115, %v3106, 0
        %3308 = vmatprep.subr.mxu0 0.0
        %3309 = vmatpush1.msra.mxu0 %v3107
        %3310 = vmatprep.subr.mxu0 0.0
        %3311 = vmatpush1.msra.mxu0 %v3108
        %3312 = vmatprep.subr.mxu0 0.0
        %3313 = vmatpush1.msra.mxu0 %v3109
        %3314 = vmatprep.subr.mxu0 0.0
        %3315 = vmatpush1.msra.mxu0 %v3110
        %3316 = vmatprep.subr.mxu0 0.0
        %3317 = vmatpush1.msra.mxu0 %v3111
        %3318 = vmatprep.subr.mxu0 0.0
        %3319 = vmatpush1.msra.mxu0 %v3112
        %3320 = vmatprep.subr.mxu0 0.0
        %3321 = vmatpush1.msra.mxu0 %v3113
        %3322 = vmatprep.subr.mxu0 0.0
        %3323 = vmatpush1.msra.mxu0 %v3114
        %3324 = vmatprep.subr.mxu0 0.0
        %3325 = vmatpush1.msra.mxu0 0.0
        %3326 = vmatprep.subr.mxu0 0.0
        %3327 = vmatpush1.msra.mxu0 0.0
        %3328 = vmatprep.subr.mxu0 0.0
        %3329 = vmatpush1.msra.mxu0 0.0
        %3330 = vmatprep.subr.mxu0 0.0
        %3331 = vmatpush1.msra.mxu0 0.0
        %3332 = vmatprep.subr.mxu0 0.0
        %3333 = vmatpush1.msra.mxu0 0.0
        %3334 = vmatprep.subr.mxu0 0.0
        %3335 = vmatpush1.msra.mxu0 0.0
        %3336 = vmatprep.subr.mxu0 0.0
        %3337 = vmatpush1.msra.mxu0 0.0
        %3338 = vmatprep.subr.mxu0 0.0
        %3339 = vmatpush1.msra.mxu0 0.0
        %3340 = vmatprep.subr.mxu0 0.0
        %3341 = vmatpush1.msra.mxu0 0.0
        %3342 = vmatprep.subr.mxu0 0.0
        %3343 = vmatpush1.msra.mxu0 0.0
        %3344 = vmatprep.subr.mxu0 0.0
        %3345 = vmatpush1.msra.mxu0 0.0
        %3346 = vmatprep.subr.mxu0 0.0
        %3347 = vmatpush1.msra.mxu0 0.0
        %3348 = vmatprep.subr.mxu0 0.0
        %3349 = vmatpush1.msra.mxu0 0.0
        %3350 = vmatprep.subr.mxu0 0.0
        %3351 = vmatpush1.msra.mxu0 0.0
        %3352 = vmatprep.subr.mxu0 0.0
        %3353 = vmatpush1.msra.mxu0 0.0
        %3354 = vmatprep.subr.mxu0 0.0
        %3355 = vmatpush1.msra.mxu0 0.0
        %3356 = vmatprep.subr.mxu0 0.0
        %3357 = vmatpush1.msra.mxu0 0.0
        %3358 = vmatprep.subr.mxu0 0.0
        %3359 = vmatpush1.msra.mxu0 0.0
        %3360 = vmatprep.subr.mxu0 0.0
        %3361 = vmatpush1.msra.mxu0 0.0
        %3362 = vmatprep.subr.mxu0 0.0
        %3363 = vmatpush1.msra.mxu0 0.0
        %3364 = vmatprep.subr.mxu0 0.0
        %3365 = vmatpush1.msra.mxu0 0.0
        %3366 = vmatprep.subr.mxu0 0.0
        %3367 = vmatpush1.msra.mxu0 0.0
        %3368 = vmatprep.subr.mxu0 0.0
        %3369 = vmatpush1.msra.mxu0 0.0
        %3370 = vmatprep.subr.mxu0 0.0
        %3371 = vmatpush1.msra.mxu0 0.0
        %3372 = vmatprep.mubr.f32.mxu0 0.0
        %3373 = vmatmul.mubr.f32.gmra.mrb[0].mxu0 %v3117
        %v3374 = vpop.f32.mrb[0].mxu0
        %v3375 = vadd.f32 0.0, %v3374
        %v3376 = vpop.f32.mrb[0].mxu0
        %3377 = vmatprep.mubr.f32.mxu0 0.0
        %3378 = vmatmul.mubr.f32.gmra.mrb[0].mxu0 %v3120
        %v3379 = vpop.f32.mrb[0].mxu0
        %v3380 = vadd.f32 0.0, %v3379
        %v3381 = vpop.f32.mrb[0].mxu0
        %3382 = vmatprep.mubr.f32.mxu0 0.0
        %3383 = vmatmul.mubr.f32.gmra.mrb[0].mxu0 %v3123
        %v3384 = vpop.f32.mrb[0].mxu0
        %v3385 = vadd.f32 0.0, %v3384
        %v3386 = vpop.f32.mrb[0].mxu0
        %3387 = vmatprep.mubr.f32.mxu0 0.0
        %3388 = vmatmul.mubr.f32.gmra.mrb[0].mxu0 %v3126
        %v3389 = vpop.f32.mrb[0].mxu0
        %v3390 = vadd.f32 0.0, %v3389
        %v3391 = vpop.f32.mrb[0].mxu0
        %3392 = vmatprep.mubr.f32.mxu0 0.0
        %3393 = vmatmul.mubr.f32.gmra.mrb[0].mxu0 %v3129
        %v3394 = vpop.f32.mrb[0].mxu0
        %v3395 = vadd.f32 0.0, %v3394
        %v3396 = vpop.f32.mrb[0].mxu0
        %3397 = vmatprep.mubr.f32.mxu0 0.0
        %3398 = vmatmul.mubr.f32.gmra.mrb[0].mxu0 %v3132
        %v3399 = vpop.f32.mrb[0].mxu0
        %v3400 = vadd.f32 0.0, %v3399
        %v3401 = vpop.f32.mrb[0].mxu0
        %3402 = vmatprep.mubr.f32.mxu0 0.0
        %3403 = vmatmul.mubr.f32.gmra.mrb[0].mxu0 %v3135
        %v3404 = vpop.f32.mrb[0].mxu0
        %v3405 = vadd.f32 0.0, %v3404
        %v3406 = vpop.f32.mrb[0].mxu0
        %3407 = vmatprep.mubr.f32.mxu0 0.0
        %3408 = vmatmul.mubr.f32.gmra.mrb[0].mxu0 %v3138
        %v3409 = vpop.f32.mrb[0].mxu0
        %v3410 = vadd.f32 0.0, %v3409
        %v3411 = vpop.f32.mrb[0].mxu0
        %3412 = vmatprep.mubr.f32.mxu0 0.0
        %3413 = vmatmul.mubr.f32.gmra.mrb[0].mxu0 %v3141
        %v3414 = vpop.f32.mrb[0].mxu0
        %v3415 = vadd.f32 0.0, %v3414
        %v3416 = vpop.f32.mrb[0].mxu0
        %3417 = vmatprep.mubr.f32.mxu0 0.0
        %3418 = vmatmul.mubr.f32.gmra.mrb[0].mxu0 %v3144
        %v3419 = vpop.f32.mrb[0].mxu0
        %v3420 = vadd.f32 0.0, %v3419
        %v3421 = vpop.f32.mrb[0].mxu0
        %3422 = vmatprep.mubr.f32.mxu0 0.0
        %3423 = vmatmul.mubr.f32.gmra.mrb[0].mxu0 %v3147
        %v3424 = vpop.f32.mrb[0].mxu0
        %v3425 = vadd.f32 0.0, %v3424
        %v3426 = vpop.f32.mrb[0].mxu0
        %3427 = vmatprep.mubr.f32.mxu0 0.0
        %3428 = vmatmul.mubr.f32.gmra.mrb[0].mxu0 %v3150
        %v3429 = vpop.f32.mrb[0].mxu0
        %v3430 = vadd.f32 0.0, %v3429
        %v3431 = vpop.f32.mrb[0].mxu0
        %3432 = vmatprep.mubr.f32.mxu0 0.0
        %3433 = vmatmul.mubr.f32.gmra.mrb[0].mxu0 %v3153
        %v3434 = vpop.f32.mrb[0].mxu0
        %v3435 = vadd.f32 0.0, %v3434
        %v3436 = vpop.f32.mrb[0].mxu0
        %3437 = vmatprep.mubr.f32.mxu0 0.0
        %3438 = vmatmul.mubr.f32.gmra.mrb[0].mxu0 %v3156
        %v3439 = vpop.f32.mrb[0].mxu0
        %v3440 = vadd.f32 0.0, %v3439
        %v3441 = vpop.f32.mrb[0].mxu0
        %3442 = vmatprep.mubr.f32.mxu0 0.0
        %3443 = vmatmul.mubr.f32.gmra.mrb[0].mxu0 %v3159
        %v3444 = vpop.f32.mrb[0].mxu0
        %v3445 = vadd.f32 0.0, %v3444
        %v3446 = vpop.f32.mrb[0].mxu0
        %3447 = vmatprep.mubr.f32.mxu0 0.0
        %3448 = vmatmul.mubr.f32.gmra.mrb[0].mxu0 %v3162
        %v3449 = vpop.f32.mrb[0].mxu0
        %v3450 = vadd.f32 0.0, %v3449
        %v3451 = vpop.f32.mrb[0].mxu0
        %3452 = vmatprep.mubr.f32.mxu0 0.0
        %3453 = vmatmul.mubr.f32.gmra.mrb[0].mxu0 %v3165
        %v3454 = vpop.f32.mrb[0].mxu0
        %v3455 = vadd.f32 0.0, %v3454
        %v3456 = vpop.f32.mrb[0].mxu0
        %3457 = vmatprep.mubr.f32.mxu0 0.0
        %3458 = vmatmul.mubr.f32.gmra.mrb[0].mxu0 %v3168
        %v3459 = vpop.f32.mrb[0].mxu0
        %v3460 = vadd.f32 0.0, %v3459
        %v3461 = vpop.f32.mrb[0].mxu0
        %3462 = vmatprep.mubr.f32.mxu0 0.0
        %3463 = vmatmul.mubr.f32.gmra.mrb[0].mxu0 %v3171
        %v3464 = vpop.f32.mrb[0].mxu0
        %v3465 = vadd.f32 0.0, %v3464
        %v3466 = vpop.f32.mrb[0].mxu0
        %3467 = vmatprep.mubr.f32.mxu0 0.0
        %3468 = vmatmul.mubr.f32.gmra.mrb[0].mxu0 %v3174
        %v3469 = vpop.f32.mrb[0].mxu0
        %v3470 = vadd.f32 0.0, %v3469
        %v3471 = vpop.f32.mrb[0].mxu0
        %3472 = vmatprep.mubr.f32.mxu0 0.0
        %3473 = vmatmul.mubr.f32.gmra.mrb[0].mxu0 %v3177
        %v3474 = vpop.f32.mrb[0].mxu0
        %v3475 = vadd.f32 0.0, %v3474
        %v3476 = vpop.f32.mrb[0].mxu0
        %3477 = vmatprep.mubr.f32.mxu0 0.0
        %3478 = vmatmul.mubr.f32.gmra.mrb[0].mxu0 %v3180
        %v3479 = vpop.f32.mrb[0].mxu0
        %v3480 = vadd.f32 0.0, %v3479
        %v3481 = vpop.f32.mrb[0].mxu0
        %3482 = vmatprep.mubr.f32.mxu0 0.0
        %3483 = vmatmul.mubr.f32.gmra.mrb[0].mxu0 %v3183
        %v3484 = vpop.f32.mrb[0].mxu0
        %v3485 = vadd.f32 0.0, %v3484
        %v3486 = vpop.f32.mrb[0].mxu0
        %3487 = vmatprep.mubr.f32.mxu0 0.0
        %3488 = vmatmul.mubr.f32.gmra.mrb[0].mxu0 %v3186
        %v3489 = vpop.f32.mrb[0].mxu0
        %v3490 = vadd.f32 0.0, %v3489
        %v3491 = vpop.f32.mrb[0].mxu0
        %3492 = vmatprep.mubr.f32.mxu0 0.0
        %3493 = vmatmul.mubr.f32.gmra.mrb[0].mxu0 %v3189
        %v3494 = vpop.f32.mrb[0].mxu0
        %v3495 = vadd.f32 0.0, %v3494
        %v3496 = vpop.f32.mrb[0].mxu0
        %3497 = vmatprep.mubr.f32.mxu0 0.0
        %3498 = vmatmul.mubr.f32.gmra.mrb[0].mxu0 %v3192
        %v3499 = vpop.f32.mrb[0].mxu0
        %v3500 = vadd.f32 0.0, %v3499
        %v3501 = vpop.f32.mrb[0].mxu0
        %3502 = vmatprep.mubr.f32.mxu0 0.0
        %3503 = vmatmul.mubr.f32.gmra.mrb[0].mxu0 %v3195
        %v3504 = vpop.f32.mrb[0].mxu0
        %v3505 = vadd.f32 0.0, %v3504
        %v3506 = vpop.f32.mrb[0].mxu0
        %3507 = vmatprep.mubr.f32.mxu0 0.0
        %3508 = vmatmul.mubr.f32.gmra.mrb[0].mxu0 %v3198
        %v3509 = vpop.f32.mrb[0].mxu0
        %v3510 = vadd.f32 0.0, %v3509
        %v3511 = vpop.f32.mrb[0].mxu0
        %3512 = vmatprep.mubr.f32.mxu0 0.0
        %3513 = vmatmul.mubr.f32.gmra.mrb[0].mxu0 %v3201
        %v3514 = vpop.f32.mrb[0].mxu0
        %v3515 = vadd.f32 0.0, %v3514
        %v3516 = vpop.f32.mrb[0].mxu0
        %3517 = vmatprep.mubr.f32.mxu0 0.0
        %3518 = vmatmul.mubr.f32.gmra.mrb[0].mxu0 %v3204
        %v3519 = vpop.f32.mrb[0].mxu0
        %v3520 = vadd.f32 0.0, %v3519
        %v3521 = vpop.f32.mrb[0].mxu0
        %3522 = vmatprep.mubr.f32.mxu0 0.0
        %3523 = vmatmul.mubr.f32.gmra.mrb[0].mxu0 %v3207
        %v3524 = vpop.f32.mrb[0].mxu0
        %v3525 = vadd.f32 0.0, %v3524
        %v3526 = vpop.f32.mrb[0].mxu0
        %3527 = vmatprep.mubr.f32.mxu0 0.0
        %3528 = vmatmul.mubr.f32.gmra.mrb[0].mxu0 %v3210
        %v3529 = vpop.f32.mrb[0].mxu0
        %v3530 = vadd.f32 0.0, %v3529
        %v3531 = vpop.f32.mrb[0].mxu0
        %3532 = vmatprep.mubr.f32.mxu0 0.0
        %3533 = vmatmul.mubr.f32.gmra.mrb[0].mxu0 %v3213
        %v3534 = vpop.f32.mrb[0].mxu0
        %v3535 = vadd.f32 0.0, %v3534
        %v3536 = vpop.f32.mrb[0].mxu0
        %3537 = vmatprep.mubr.f32.mxu0 0.0
        %3538 = vmatmul.mubr.f32.gmra.mrb[0].mxu0 %v3216
        %v3539 = vpop.f32.mrb[0].mxu0
        %v3540 = vadd.f32 0.0, %v3539
        %v3541 = vpop.f32.mrb[0].mxu0
        %3542 = vmatprep.mubr.f32.mxu0 0.0
        %3543 = vmatmul.mubr.f32.gmra.mrb[0].mxu0 %v3219
        %v3544 = vpop.f32.mrb[0].mxu0
        %v3545 = vadd.f32 0.0, %v3544
        %v3546 = vpop.f32.mrb[0].mxu0
        %3547 = vmatprep.mubr.f32.mxu0 0.0
        %3548 = vmatmul.mubr.f32.gmra.mrb[0].mxu0 %v3222
        %v3549 = vpop.f32.mrb[0].mxu0
        %v3550 = vadd.f32 0.0, %v3549
        %v3551 = vpop.f32.mrb[0].mxu0
        %3552 = vmatprep.mubr.f32.mxu0 0.0
        %3553 = vmatmul.mubr.f32.gmra.mrb[0].mxu0 %v3225
        %v3554 = vpop.f32.mrb[0].mxu0
        %v3555 = vadd.f32 0.0, %v3554
        %v3556 = vpop.f32.mrb[0].mxu0
        %3557 = vmatprep.mubr.f32.mxu0 0.0
        %3558 = vmatmul.mubr.f32.gmra.mrb[0].mxu0 %v3228
        %v3559 = vpop.f32.mrb[0].mxu0
        %v3560 = vadd.f32 0.0, %v3559
        %v3561 = vpop.f32.mrb[0].mxu0
        %3562 = vmatprep.mubr.f32.mxu0 0.0
        %3563 = vmatmul.mubr.f32.gmra.mrb[0].mxu0 %v3231
        %v3564 = vpop.f32.mrb[0].mxu0
        %v3565 = vadd.f32 0.0, %v3564
        %v3566 = vpop.f32.mrb[0].mxu0
        %3567 = vmatprep.mubr.f32.mxu0 0.0
        %3568 = vmatmul.mubr.f32.gmra.mrb[0].mxu0 %v3234
        %v3569 = vpop.f32.mrb[0].mxu0
        %v3570 = vadd.f32 0.0, %v3569
        %v3571 = vpop.f32.mrb[0].mxu0
        %3572 = vmatprep.mubr.f32.mxu0 0.0
        %3573 = vmatmul.mubr.f32.gmra.mrb[0].mxu0 %v3237
        %v3574 = vpop.f32.mrb[0].mxu0
        %v3575 = vadd.f32 0.0, %v3574
        %v3576 = vpop.f32.mrb[0].mxu0
        %3577 = vmatprep.mubr.f32.mxu0 0.0
        %3578 = vmatmul.mubr.f32.gmra.mrb[0].mxu0 %v3240
        %v3579 = vpop.f32.mrb[0].mxu0
        %v3580 = vadd.f32 0.0, %v3579
        %v3581 = vpop.f32.mrb[0].mxu0
        %3582 = vmatprep.mubr.f32.mxu0 0.0
        %3583 = vmatmul.mubr.f32.gmra.mrb[0].mxu0 %v3243
        %v3584 = vpop.f32.mrb[0].mxu0
        %v3585 = vadd.f32 0.0, %v3584
        %v3586 = vpop.f32.mrb[0].mxu0
        %3587 = vmatprep.mubr.f32.mxu0 0.0
        %3588 = vmatmul.mubr.f32.gmra.mrb[0].mxu0 %v3246
        %v3589 = vpop.f32.mrb[0].mxu0
        %v3590 = vadd.f32 0.0, %v3589
        %v3591 = vpop.f32.mrb[0].mxu0
        %3592 = vmatprep.mubr.f32.mxu0 0.0
        %3593 = vmatmul.mubr.f32.gmra.mrb[0].mxu0 %v3249
        %v3594 = vpop.f32.mrb[0].mxu0
        %v3595 = vadd.f32 0.0, %v3594
        %v3596 = vpop.f32.mrb[0].mxu0
        %3597 = vmatprep.mubr.f32.mxu0 0.0
        %3598 = vmatmul.mubr.f32.gmra.mrb[0].mxu0 %v3252
        %v3599 = vpop.f32.mrb[0].mxu0
        %v3600 = vadd.f32 0.0, %v3599
        %v3601 = vpop.f32.mrb[0].mxu0
        %3602 = vmatprep.mubr.f32.mxu0 0.0
        %3603 = vmatmul.mubr.f32.gmra.mrb[0].mxu0 %v3255
        %v3604 = vpop.f32.mrb[0].mxu0
        %v3605 = vadd.f32 0.0, %v3604
        %v3606 = vpop.f32.mrb[0].mxu0
        %3607 = vmatprep.mubr.f32.mxu0 0.0
        %3608 = vmatmul.mubr.f32.gmra.mrb[0].mxu0 %v3258
        %v3609 = vpop.f32.mrb[0].mxu0
        %v3610 = vadd.f32 0.0, %v3609
        %v3611 = vpop.f32.mrb[0].mxu0
        %3612 = vmatprep.mubr.f32.mxu0 0.0
        %3613 = vmatmul.mubr.f32.gmra.mrb[0].mxu0 %v3261
        %v3614 = vpop.f32.mrb[0].mxu0
        %v3615 = vadd.f32 0.0, %v3614
        %v3616 = vpop.f32.mrb[0].mxu0
        %3617 = vmatprep.mubr.f32.mxu0 0.0
        %3618 = vmatmul.mubr.f32.gmra.mrb[0].mxu0 %v3264
        %v3619 = vpop.f32.mrb[0].mxu0
        %v3620 = vadd.f32 0.0, %v3619
        %v3621 = vpop.f32.mrb[0].mxu0
        %3622 = vmatprep.mubr.f32.mxu0 0.0
        %3623 = vmatmul.mubr.f32.gmra.mrb[0].mxu0 %v3267
        %v3624 = vpop.f32.mrb[0].mxu0
        %v3625 = vadd.f32 0.0, %v3624
        %v3626 = vpop.f32.mrb[0].mxu0
        %3627 = vmatprep.mubr.f32.mxu0 0.0
        %3628 = vmatmul.mubr.f32.gmra.mrb[0].mxu0 %v3270
        %v3629 = vpop.f32.mrb[0].mxu0
        %v3630 = vadd.f32 0.0, %v3629
        %v3631 = vpop.f32.mrb[0].mxu0
        %3632 = vmatprep.mubr.f32.mxu0 0.0
        %3633 = vmatmul.mubr.f32.gmra.mrb[0].mxu0 %v3273
        %v3634 = vpop.f32.mrb[0].mxu0
        %v3635 = vadd.f32 0.0, %v3634
        %v3636 = vpop.f32.mrb[0].mxu0
        %3637 = vmatprep.mubr.f32.mxu0 0.0
        %3638 = vmatmul.mubr.f32.gmra.mrb[0].mxu0 %v3276
        %v3639 = vpop.f32.mrb[0].mxu0
        %v3640 = vadd.f32 0.0, %v3639
        %v3641 = vpop.f32.mrb[0].mxu0
        %3642 = vmatprep.mubr.f32.mxu0 0.0
        %3643 = vmatmul.mubr.f32.gmra.mrb[0].mxu0 %v3279
        %v3644 = vpop.f32.mrb[0].mxu0
        %v3645 = vadd.f32 0.0, %v3644
        %v3646 = vpop.f32.mrb[0].mxu0
        %3647 = vmatprep.mubr.f32.mxu0 0.0
        %3648 = vmatmul.mubr.f32.gmra.mrb[0].mxu0 %v3282
        %v3649 = vpop.f32.mrb[0].mxu0
        %v3650 = vadd.f32 0.0, %v3649
        %v3651 = vpop.f32.mrb[0].mxu0
        %3652 = vmatprep.mubr.f32.mxu0 0.0
        %3653 = vmatmul.mubr.f32.gmra.mrb[0].mxu0 %v3285
        %v3654 = vpop.f32.mrb[0].mxu0
        %v3655 = vadd.f32 0.0, %v3654
        %v3656 = vpop.f32.mrb[0].mxu0
        %3657 = vmatprep.mubr.f32.mxu0 0.0
        %3658 = vmatmul.mubr.f32.gmra.mrb[0].mxu0 %v3288
        %v3659 = vpop.f32.mrb[0].mxu0
        %v3660 = vadd.f32 0.0, %v3659
        %v3661 = vpop.f32.mrb[0].mxu0
        %3662 = vmatprep.mubr.f32.mxu0 0.0
        %3663 = vmatmul.mubr.f32.gmra.mrb[0].mxu0 %v3291
        %v3664 = vpop.f32.mrb[0].mxu0
        %v3665 = vadd.f32 0.0, %v3664
        %v3666 = vpop.f32.mrb[0].mxu0
        %3667 = vmatprep.mubr.f32.mxu0 0.0
        %3668 = vmatmul.mubr.f32.gmra.mrb[0].mxu0 %v3294
        %v3669 = vpop.f32.mrb[0].mxu0
        %v3670 = vadd.f32 0.0, %v3669
        %v3671 = vpop.f32.mrb[0].mxu0
        %3672 = vmatprep.mubr.f32.mxu0 0.0
        %3673 = vmatmul.mubr.f32.gmra.mrb[0].mxu0 %v3297
        %v3674 = vpop.f32.mrb[0].mxu0
        %v3675 = vadd.f32 0.0, %v3674
        %v3676 = vpop.f32.mrb[0].mxu0
        %3677 = vmatprep.mubr.f32.mxu0 0.0
        %3678 = vmatmul.mubr.f32.gmra.mrb[0].mxu0 %v3300
        %v3679 = vpop.f32.mrb[0].mxu0
        %v3680 = vadd.f32 0.0, %v3679
        %v3681 = vpop.f32.mrb[0].mxu0
        %3682 = vmatprep.mubr.f32.mxu0 0.0
        %3683 = vmatmul.mubr.f32.gmra.mrb[0].mxu0 %v3303
        %v3684 = vpop.f32.mrb[0].mxu0
        %v3685 = vadd.f32 0.0, %v3684
        %v3686 = vpop.f32.mrb[0].mxu0
        %3687 = vmatprep.mubr.f32.mxu0 0.0
        %3688 = vmatmul.mubr.f32.gmra.mrb[0].mxu0 %v3306
        %v3689 = vpop.f32.mrb[0].mxu0
        %v3690 = vadd.f32 0.0, %v3689
        %v3691 = vpop.f32.mrb[0].mxu0
        %3692 = vdwg.mxu0
        %3693 = vst.msk [vmem:[%s387] sm:$0xff] %vm527, %v3375
        %3694 = vst.msk [vmem:[%s387 + $0x8] sm:$0xff] %vm527, %v3380
        %3695 = vst.msk [vmem:[%s387 + $0x10] sm:$0xff] %vm527, %v3385
        %3696 = vst.msk [vmem:[%s387 + $0x18] sm:$0xff] %vm527, %v3390
        %3697 = vst.msk [vmem:[%s387 + $0x20] sm:$0xff] %vm527, %v3395
        %3698 = vst.msk [vmem:[%s387 + $0x28] sm:$0xff] %vm527, %v3400
        %3699 = vst.msk [vmem:[%s387 + $0x30] sm:$0xff] %vm527, %v3405
        %3700 = vst.msk [vmem:[%s387 + $0x38] sm:$0xff] %vm527, %v3410
        %3701 = vst.msk [vmem:[%s387 + $0x40] sm:$0xff] %vm527, %v3415
        %3702 = vst.msk [vmem:[%s387 + $0x48] sm:$0xff] %vm527, %v3420
        %3703 = vst.msk [vmem:[%s387 + $0x50] sm:$0xff] %vm527, %v3425
        %3704 = vst.msk [vmem:[%s387 + $0x58] sm:$0xff] %vm527, %v3430
        %3705 = vst.msk [vmem:[%s387 + $0x60] sm:$0xff] %vm527, %v3435
        %3706 = vst.msk [vmem:[%s387 + $0x68] sm:$0xff] %vm527, %v3440
        %3707 = vst.msk [vmem:[%s387 + $0x70] sm:$0xff] %vm527, %v3445
        %3708 = vst.msk [vmem:[%s387 + $0x78] sm:$0xff] %vm527, %v3450
        %3709 = vst.msk [vmem:[%s387 + $0x80] sm:$0xff] %vm527, %v3455
        %3710 = vst.msk [vmem:[%s387 + $0x88] sm:$0xff] %vm527, %v3460
        %3711 = vst.msk [vmem:[%s387 + $0x90] sm:$0xff] %vm527, %v3465
        %3712 = vst.msk [vmem:[%s387 + $0x98] sm:$0xff] %vm527, %v3470
        %3713 = vst.msk [vmem:[%s387 + $0xa0] sm:$0xff] %vm527, %v3475
        %3714 = vst.msk [vmem:[%s387 + $0xa8] sm:$0xff] %vm527, %v3480
        %3715 = vst.msk [vmem:[%s387 + $0xb0] sm:$0xff] %vm527, %v3485
        %3716 = vst.msk [vmem:[%s387 + $0xb8] sm:$0xff] %vm527, %v3490
        %3717 = vst.msk [vmem:[%s387 + $0xc0] sm:$0xff] %vm527, %v3495
        %3718 = vst.msk [vmem:[%s387 + $0xc8] sm:$0xff] %vm527, %v3500
        %3719 = vst.msk [vmem:[%s387 + $0xd0] sm:$0xff] %vm527, %v3505
        %3720 = vst.msk [vmem:[%s387 + $0xd8] sm:$0xff] %vm527, %v3510
        %3721 = vst.msk [vmem:[%s387 + $0xe0] sm:$0xff] %vm527, %v3515
        %3722 = vst.msk [vmem:[%s387 + $0xe8] sm:$0xff] %vm527, %v3520
        %3723 = vst.msk [vmem:[%s387 + $0xf0] sm:$0xff] %vm527, %v3525
        %3724 = vst.msk [vmem:[%s387 + $0xf8] sm:$0xff] %vm527, %v3530
        %3725 = vst.msk [vmem:[%s387 + $0x100] sm:$0xff] %vm527, %v3535
        %3726 = vst.msk [vmem:[%s387 + $0x108] sm:$0xff] %vm527, %v3540
        %3727 = vst.msk [vmem:[%s387 + $0x110] sm:$0xff] %vm527, %v3545
        %3728 = vst.msk [vmem:[%s387 + $0x118] sm:$0xff] %vm527, %v3550
        %3729 = vst.msk [vmem:[%s387 + $0x120] sm:$0xff] %vm527, %v3555
        %3730 = vst.msk [vmem:[%s387 + $0x128] sm:$0xff] %vm527, %v3560
        %3731 = vst.msk [vmem:[%s387 + $0x130] sm:$0xff] %vm527, %v3565
        %3732 = vst.msk [vmem:[%s387 + $0x138] sm:$0xff] %vm527, %v3570
        %3733 = vst.msk [vmem:[%s387 + $0x140] sm:$0xff] %vm527, %v3575
        %3734 = vst.msk [vmem:[%s387 + $0x148] sm:$0xff] %vm527, %v3580
        %3735 = vst.msk [vmem:[%s387 + $0x150] sm:$0xff] %vm527, %v3585
        %3736 = vst.msk [vmem:[%s387 + $0x158] sm:$0xff] %vm527, %v3590
        %3737 = vst.msk [vmem:[%s387 + $0x160] sm:$0xff] %vm527, %v3595
        %3738 = vst.msk [vmem:[%s387 + $0x168] sm:$0xff] %vm527, %v3600
        %3739 = vst.msk [vmem:[%s387 + $0x170] sm:$0xff] %vm527, %v3605
        %3740 = vst.msk [vmem:[%s387 + $0x178] sm:$0xff] %vm527, %v3610
        %3741 = vst.msk [vmem:[%s387 + $0x180] sm:$0xff] %vm527, %v3615
        %3742 = vst.msk [vmem:[%s387 + $0x188] sm:$0xff] %vm527, %v3620
        %3743 = vst.msk [vmem:[%s387 + $0x190] sm:$0xff] %vm527, %v3625
        %3744 = vst.msk [vmem:[%s387 + $0x198] sm:$0xff] %vm527, %v3630
        %3745 = vst.msk [vmem:[%s387 + $0x1a0] sm:$0xff] %vm527, %v3635
        %3746 = vst.msk [vmem:[%s387 + $0x1a8] sm:$0xff] %vm527, %v3640
        %3747 = vst.msk [vmem:[%s387 + $0x1b0] sm:$0xff] %vm527, %v3645
        %3748 = vst.msk [vmem:[%s387 + $0x1b8] sm:$0xff] %vm527, %v3650
        %3749 = vst.msk [vmem:[%s387 + $0x1c0] sm:$0xff] %vm527, %v3655
        %3750 = vst.msk [vmem:[%s387 + $0x1c8] sm:$0xff] %vm527, %v3660
        %3751 = vst.msk [vmem:[%s387 + $0x1d0] sm:$0xff] %vm527, %v3665
        %3752 = vst.msk [vmem:[%s387 + $0x1d8] sm:$0xff] %vm527, %v3670
        %3753 = vst.msk [vmem:[%s387 + $0x1e0] sm:$0xff] %vm527, %v3675
        %3754 = vst.msk [vmem:[%s387 + $0x1e8] sm:$0xff] %vm527, %v3680
        %3755 = vst.msk [vmem:[%s387 + $0x1f0] sm:$0xff] %vm527, %v3685
        %3756 = vst.msk [vmem:[%s387 + $0x1f8] sm:$0xff] %vm527, %v3690
        %s3757 = sand.u32 %s190, 1
        %s3758 = scalar_lea.sflag [#allocation4], %s3757
        %s3759 = sand.u32 %s190, 1
        %s3760 = smul.addr %s3759, 512
        %s3761 = scalar_lea.vmem [#allocation13], %s3760
        // Predicated region
        $region69: #{cgae_forward.1} parent=43 // pred_check
          %p3762 = pneg %p200
        $region70: #{cgae_forward.1} parent=43 // pred_check_branch
          %3764 = sbr.rel (%p3762) target = $region72
        $region71: #{cgae_forward.1} parent=43 // pred_region
          %s3765 = smul.u32 64, %s33
          %s3767 = ssub.s32 8192, 8192
          %3768 = vsyncadd %s3758, %s3767
          %s3769 = smul.addr %s32, 64
          %s3770 = sadd.s32 %s3765, %s3769
          %s3771 = smul.addr %s3770, 128
          %s3772 = scalar_lea.hbm %s6, %s3771
          %s3773 = sshll.u32 %s3761, 4
          %s3774 = int_to_ptr.vmem [resolvable:$true] %s3773
          %3779 = dma.vmem_to_hbm [thread:$0]  %s3774, 8192, %s3772, %s3758, 128, 128, 8
        $region72: #{cgae_forward.1} parent=43 // pred_fallthru
          _
      $region44: #{cgae_forward.1} parent=5 // pred_fallthru
        _
      %p3780 = scmp.le.s32.totalorder 2, %s23
      // Predicated region
      $region73: #{cgae_forward.1} parent=5 // pred_check
        %p3781 = pneg %p3780
      $region74: #{cgae_forward.1} parent=5 // pred_check_branch
        %3783 = sbr.rel (%p3781) target = $region76
      $region75: #{cgae_forward.1} parent=5 // pred_region
        %s3784 = ssub.s32 %s23, 2
        // Predicated region
        $region77: #{cgae_forward.1} parent=75 // pred_check
          %p3785 = pneg %p206
        $region78: #{cgae_forward.1} parent=75 // pred_check_branch
          %3787 = sbr.rel (%p3785) target = $region80
        $region79: #{cgae_forward.1} parent=75 // pred_region
          %s3788 = sand.u32 %s191, 1
          %s3789 = scalar_lea.sflag [#allocation4], %s3788
          %s3790 = sand.u32 %s191, 1
          %s3791 = smul.addr %s3790, 512
          %s3792 = scalar_lea.vmem [#allocation13], %s3791
          %3793 = dma.done %s3789, 8192
        $region80: #{cgae_forward.1} parent=75 // pred_fallthru
          _
      $region76: #{cgae_forward.1} parent=5 // pred_fallthru
        _
    $region6: #{cgae_forward.1} parent=1 // loop_footer
      %s27 = sadd.s32 1, %s23
    $region7: #{cgae_forward.1} parent=1 // loop_footer_branch
      %22 = sbr.rel target = $region3
    $region8: #{cgae_forward.1} parent=1 // loop_exit
      _
    %3794 = vsyncpa [#allocation3], 1
    %s3795 = scalar_lea.sflag [#allocation3], 1
    %3796 = vsyncpa %s3795, 1
    %3797 = vsyncpa [#allocation6], 1
    %s3798 = scalar_lea.sflag [#allocation6], 1
    %3799 = vsyncpa %s3798, 1
    %3800 = vsyncpa [#allocation9], 1
    %3801 = vsyncpa [#allocation12], 1
    %3802 = vsyncpa [#allocation4], 1
    %s3803 = scalar_lea.sflag [#allocation4], 1
    %3804 = vsyncpa %s3803, 1

</llo_original>
